<compile_context>
chip_gen: v7x
topology: tpu7x:2x2x1
jax: 0.10.0
libtpu: 0.0.40
codegen_flags: <defaults>
</compile_context>

<pallas_src>
import jax
import jax.numpy as jnp
from jax import lax
from jax.experimental import pallas as pl
from jax.experimental.pallas import tpu as pltpu


def _round_up(x: int, m: int) -> int:
    return ((x + m - 1) // m) * m


def _pick_row_tile(h_out: int, w_out: int, n_batch: int, max_rows: int = 4096) -> int:
    """Rows of output height per grid step.

    Constraints: TH divides H_out; the out-block's second-to-last dim
    (TH * W_out) is a multiple of 8 unless TH == H_out; TH * W_out stays under
    a VMEM row budget; and, when the batch alone can't fill both v7x
    TensorCores, prefer a split that yields >= 2 total grid steps.
    """
    divs = [d for d in range(1, h_out + 1) if h_out % d == 0]
    valid = [d for d in divs if (d * w_out) % 8 == 0 or d == h_out]
    pool = [d for d in valid if d * w_out <= max_rows] or valid
    if n_batch < 2:
        split = [d for d in pool if n_batch * (h_out // d) >= 2]
        if split:
            pool = split
    return max(pool)


def conv2d_same(x_nchw, w_oihw, *, operand_dtype=jnp.bfloat16, max_acc_rows=4096):
    """Stride-1 conv with padding=(K-1)//2, no bias (nn.Conv2d semantics).

    x_nchw: (N, Cin, H, W)    w_oihw: (Cout, Cin, K, K)
    Returns (N, Cout, H_out, W_out), matching PyTorch for both odd and even K.
    operand_dtype=None keeps f32 operands (tighter numerics, more HBM bytes).
    """
    N, Cin, H, W = x_nchw.shape
    Cout, Cin_w, K, K2 = w_oihw.shape
    assert Cin_w == Cin and K2 == K
    pad = (K - 1) // 2
    # Exact PyTorch output size for stride 1 / padding=(K-1)//2 (handles even K).
    H_out = H + 2 * pad - K + 1
    W_out = W + 2 * pad - K + 1
    H_pad = H + 2 * pad
    W_pad = W + 2 * pad

    out_dtype = x_nchw.dtype
    op_dtype = operand_dtype if operand_dtype is not None else x_nchw.dtype

    # ---- wrapper-side layout plumbing (one cheap pass each, no im2col) ----
    x_nhwc = jnp.transpose(x_nchw, (0, 2, 3, 1)).astype(op_dtype)     # (N,H,W,Cin)
    x_p = jnp.pad(x_nhwc, ((0, 0), (pad, pad), (pad, pad), (0, 0)))   # (N,Hp,Wp,Cin)

    # Weights: (Cout,Cin,K,K) -> tap-major (K*K, Cin, Cout_pad); only Cout is
    # padded (to 128) so the kernel's stores are lane-dense and unmasked.
    Cout_pad = _round_up(Cout, 128)
    w_t = jnp.transpose(w_oihw, (2, 3, 1, 0)).reshape(K * K, Cin, Cout)
    w_t = jnp.pad(w_t, ((0, 0), (0, 0), (0, Cout_pad - Cout))).astype(op_dtype)

    TH = _pick_row_tile(H_out, W_out, N, max_acc_rows)
    RB = H_out // TH                       # row blocks per image
    M_blk = TH * W_out                     # output rows per grid step

    def kernel(x_ref, w_ref, o_ref):
        # x_ref: (H_pad, W_pad, Cin)   whole padded image of one sample (VMEM)
        # w_ref: (K*K, Cin, Cout_pad)  constant tap-major weights
        # o_ref: (M_blk, Cout_pad)     lane-dense output tile (written once)
        r = pl.program_id(1)
        row0 = pl.multiple_of(r * TH, TH)
        acc = jnp.zeros((M_blk, Cout_pad), jnp.float32)
        for kh in range(K):
            band = x_ref[pl.ds(row0 + kh, TH), :, :]          # (TH, W_pad, Cin)
            for kw in range(K):
                tap = band[:, kw:kw + W_out, :].reshape(M_blk, Cin)
                acc = acc + jnp.dot(tap, w_ref[kh * K + kw],
                                    preferred_element_type=jnp.float32)
        o_ref[...] = acc.astype(o_ref.dtype)

    op_bytes = jnp.dtype(op_dtype).itemsize
    out_bytes = jnp.dtype(out_dtype).itemsize
    cost = pl.CostEstimate(
        flops=2 * N * H_out * W_out * K * K * Cin * Cout_pad,
        transcendentals=0,
        bytes_accessed=(N * H_pad * W_pad * Cin * op_bytes
                        + K * K * Cin * Cout_pad * op_bytes
                        + N * H_out * W_out * Cout_pad * out_bytes),
    )

    # Per-step VMEM: 2*(Hp*Wp*Cin) + 2*(K*K*Cin*Cout_pad) + 2*(M_blk*Cout_pad)
    # + acc  ~= well under 1 MiB here, so no vmem_limit_bytes override needed.
    # NOTE: for very large images / Cin where a whole padded image no longer
    # fits VMEM, switch the input to memory_space=pl.ANY and manual row-band
    # DMAs with a halo (pattern P4); not needed at benchmark shapes.
    # NOTE: for large Cin*Cout, pin the weight block (pipeline_mode /
    # VMEM-scratch copy) to avoid double-buffering it; here it is ~K*K*Cin*128
    # elements, i.e. negligible.
    out = pl.pallas_call(
        kernel,
        out_shape=jax.ShapeDtypeStruct((N, H_out * W_out, Cout_pad), out_dtype),
        grid_spec=pltpu.PrefetchScalarGridSpec(
            num_scalar_prefetch=0,
            grid=(N, RB),
            in_specs=[
                # Whole padded image of sample n; index is constant over the
                # (inner) row-block axis, so it is DMA'd once per sample.
                pl.BlockSpec((None, H_pad, W_pad, Cin), lambda n, r: (n, 0, 0, 0)),
                # Constant weight block, DMA'd once per core.
                pl.BlockSpec((K * K, Cin, Cout_pad), lambda n, r: (0, 0, 0)),
            ],
            out_specs=pl.BlockSpec((None, M_blk, Cout_pad), lambda n, r: (n, r, 0)),
        ),
        compiler_params=pltpu.CompilerParams(
            dimension_semantics=("parallel", "parallel"),
        ),
        cost_estimate=cost,
    )(x_p, w_t)

    # Strip Cout padding, restore NCHW (module contract).
    out = out[:, :, :Cout].reshape(N, H_out, W_out, Cout)
    return jnp.transpose(out, (0, 3, 1, 2))


if __name__ == "__main__":
    # Small shapes consistent with the module: batch=2, Cin=4, Cout=8, 16x16, K=3.
    N, Cin, Cout, H, W, K = 2, 4, 8, 16, 16, 3

    key = jax.random.PRNGKey(0)
    kx, kw = jax.random.split(key)
    x = jax.random.normal(kx, (N, Cin, H, W), dtype=jnp.float32)
    # Deterministic weight init (Kaiming-uniform-ish scale, like nn.Conv2d default).
    fan_in = Cin * K * K
    bound = 1.0 / (fan_in ** 0.5)
    w = jax.random.uniform(kw, (Cout, Cin, K, K), dtype=jnp.float32,
                           minval=-bound, maxval=bound)

    conv_fn = jax.jit(conv2d_same)
    out = conv_fn(x, w)
    out = jax.block_until_ready(out)

    # Cross-check against XLA's conv on bf16-rounded operands (the kernel uses
    # bf16 operands with f32 accumulation by default), full-precision accumulate.
    pad = (K - 1) // 2
    x_r = x.astype(jnp.bfloat16).astype(jnp.float32)
    w_r = w.astype(jnp.bfloat16).astype(jnp.float32)
    ref = lax.conv_general_dilated(
        x_r, w_r, window_strides=(1, 1),
        padding=[(pad, pad), (pad, pad)],
        dimension_numbers=("NCHW", "OIHW", "NCHW"),
        precision=lax.Precision.HIGHEST)
    assert out.shape == ref.shape == (N, Cout, H, W)
    assert jnp.allclose(out, ref, atol=1e-3, rtol=1e-3)

    print("KERNEL_OK")
</pallas_src>

<mosaic_0001>
module attributes {stable_mosaic.version = 11 : i64} {
  func.func @kernel(%arg0: i32, %arg1: i32, %arg2: memref<1x18x18x4xbf16, #tpu.memory_space<vmem>>, %arg3: memref<9x4x128xbf16, #tpu.memory_space<vmem>>, %arg4: memref<1x256x128xf32, #tpu.memory_space<vmem>>) attributes {dimension_semantics = [#tpu.dimension_semantics<parallel>, #tpu.dimension_semantics<parallel>], iteration_bounds = array<i64: 2, 1>, scalar_prefetch = 0 : i64, scratch_operands = 0 : i64, tpu.core_type = #tpu.core_type<tc>, window_params = [{transform_indices = @transform_0, window_bounds = array<i64: 1, 18, 18, 4>}, {pipeline_mode = #tpu.pipeline_mode<synchronous>, transform_indices = @transform_1, window_bounds = array<i64: 9, 4, 128>}, {transform_indices = @transform_2, window_bounds = array<i64: 1, 256, 128>}]} {
    %c16_i32 = arith.constant 16 : i32
    %0 = arith.muli %arg1, %c16_i32 : i32
    %1 = tpu.assume_multiple %0, 16 : i32
    %cst = arith.constant 0.000000e+00 : f32
    %2 = vector.broadcast %cst : f32 to vector<256x128xf32>
    %c0_i32 = arith.constant 0 : i32
    %3 = arith.addi %1, %c0_i32 : i32
    %c0 = arith.constant 0 : index
    %4 = arith.index_cast %3 : i32 to index
    %c0_0 = arith.constant 0 : index
    %c0_1 = arith.constant 0 : index
    %5 = vector.load %arg2[%c0, %4, %c0_0, %c0_1] : memref<1x18x18x4xbf16, #tpu.memory_space<vmem>>, vector<1x16x18x4xbf16>
    %6 = vector.shape_cast %5 : vector<1x16x18x4xbf16> to vector<16x18x4xbf16>
    %7 = vector.extract_strided_slice %6 {offsets = [0, 0, 0], sizes = [16, 16, 4], strides = [1, 1, 1]} : vector<16x18x4xbf16> to vector<16x16x4xbf16>
    %8 = vector.shape_cast %7 : vector<16x16x4xbf16> to vector<256x4xbf16>
    %c0_2 = arith.constant 0 : index
    %c0_3 = arith.constant 0 : index
    %c0_4 = arith.constant 0 : index
    %9 = vector.load %arg3[%c0_2, %c0_3, %c0_4] : memref<9x4x128xbf16, #tpu.memory_space<vmem>>, vector<1x4x128xbf16>
    %10 = vector.shape_cast %9 : vector<1x4x128xbf16> to vector<4x128xbf16>
    %cst_5 = arith.constant dense<0.000000e+00> : vector<256x128xf32>
    %11 = tpu.matmul %8, %10, %cst_5 {dimension_numbers = #tpu.dot_dimension_numbers<[1], [0], [0], [1], [0, 0, 1, 1], [], []>} : vector<256x4xbf16>, vector<4x128xbf16>, vector<256x128xf32> -> vector<256x128xf32>
    %12 = arith.addf %2, %11 : vector<256x128xf32>
    %13 = vector.extract_strided_slice %6 {offsets = [0, 1, 0], sizes = [16, 16, 4], strides = [1, 1, 1]} : vector<16x18x4xbf16> to vector<16x16x4xbf16>
    %14 = vector.shape_cast %13 : vector<16x16x4xbf16> to vector<256x4xbf16>
    %c1 = arith.constant 1 : index
    %c0_6 = arith.constant 0 : index
    %c0_7 = arith.constant 0 : index
    %15 = vector.load %arg3[%c1, %c0_6, %c0_7] : memref<9x4x128xbf16, #tpu.memory_space<vmem>>, vector<1x4x128xbf16>
    %16 = vector.shape_cast %15 : vector<1x4x128xbf16> to vector<4x128xbf16>
    %cst_8 = arith.constant dense<0.000000e+00> : vector<256x128xf32>
    %17 = tpu.matmul %14, %16, %cst_8 {dimension_numbers = #tpu.dot_dimension_numbers<[1], [0], [0], [1], [0, 0, 1, 1], [], []>} : vector<256x4xbf16>, vector<4x128xbf16>, vector<256x128xf32> -> vector<256x128xf32>
    %18 = arith.addf %12, %17 : vector<256x128xf32>
    %19 = vector.extract_strided_slice %6 {offsets = [0, 2, 0], sizes = [16, 16, 4], strides = [1, 1, 1]} : vector<16x18x4xbf16> to vector<16x16x4xbf16>
    %20 = vector.shape_cast %19 : vector<16x16x4xbf16> to vector<256x4xbf16>
    %c2 = arith.constant 2 : index
    %c0_9 = arith.constant 0 : index
    %c0_10 = arith.constant 0 : index
    %21 = vector.load %arg3[%c2, %c0_9, %c0_10] : memref<9x4x128xbf16, #tpu.memory_space<vmem>>, vector<1x4x128xbf16>
    %22 = vector.shape_cast %21 : vector<1x4x128xbf16> to vector<4x128xbf16>
    %cst_11 = arith.constant dense<0.000000e+00> : vector<256x128xf32>
    %23 = tpu.matmul %20, %22, %cst_11 {dimension_numbers = #tpu.dot_dimension_numbers<[1], [0], [0], [1], [0, 0, 1, 1], [], []>} : vector<256x4xbf16>, vector<4x128xbf16>, vector<256x128xf32> -> vector<256x128xf32>
    %24 = arith.addf %18, %23 : vector<256x128xf32>
    %c1_i32 = arith.constant 1 : i32
    %25 = arith.addi %1, %c1_i32 : i32
    %c0_12 = arith.constant 0 : index
    %26 = arith.index_cast %25 : i32 to index
    %c0_13 = arith.constant 0 : index
    %c0_14 = arith.constant 0 : index
    %27 = vector.load %arg2[%c0_12, %26, %c0_13, %c0_14] : memref<1x18x18x4xbf16, #tpu.memory_space<vmem>>, vector<1x16x18x4xbf16>
    %28 = vector.shape_cast %27 : vector<1x16x18x4xbf16> to vector<16x18x4xbf16>
    %29 = vector.extract_strided_slice %28 {offsets = [0, 0, 0], sizes = [16, 16, 4], strides = [1, 1, 1]} : vector<16x18x4xbf16> to vector<16x16x4xbf16>
    %30 = vector.shape_cast %29 : vector<16x16x4xbf16> to vector<256x4xbf16>
    %c3 = arith.constant 3 : index
    %c0_15 = arith.constant 0 : index
    %c0_16 = arith.constant 0 : index
    %31 = vector.load %arg3[%c3, %c0_15, %c0_16] : memref<9x4x128xbf16, #tpu.memory_space<vmem>>, vector<1x4x128xbf16>
    %32 = vector.shape_cast %31 : vector<1x4x128xbf16> to vector<4x128xbf16>
    %cst_17 = arith.constant dense<0.000000e+00> : vector<256x128xf32>
    %33 = tpu.matmul %30, %32, %cst_17 {dimension_numbers = #tpu.dot_dimension_numbers<[1], [0], [0], [1], [0, 0, 1, 1], [], []>} : vector<256x4xbf16>, vector<4x128xbf16>, vector<256x128xf32> -> vector<256x128xf32>
    %34 = arith.addf %24, %33 : vector<256x128xf32>
    %35 = vector.extract_strided_slice %28 {offsets = [0, 1, 0], sizes = [16, 16, 4], strides = [1, 1, 1]} : vector<16x18x4xbf16> to vector<16x16x4xbf16>
    %36 = vector.shape_cast %35 : vector<16x16x4xbf16> to vector<256x4xbf16>
    %c4 = arith.constant 4 : index
    %c0_18 = arith.constant 0 : index
    %c0_19 = arith.constant 0 : index
    %37 = vector.load %arg3[%c4, %c0_18, %c0_19] : memref<9x4x128xbf16, #tpu.memory_space<vmem>>, vector<1x4x128xbf16>
    %38 = vector.shape_cast %37 : vector<1x4x128xbf16> to vector<4x128xbf16>
    %cst_20 = arith.constant dense<0.000000e+00> : vector<256x128xf32>
    %39 = tpu.matmul %36, %38, %cst_20 {dimension_numbers = #tpu.dot_dimension_numbers<[1], [0], [0], [1], [0, 0, 1, 1], [], []>} : vector<256x4xbf16>, vector<4x128xbf16>, vector<256x128xf32> -> vector<256x128xf32>
    %40 = arith.addf %34, %39 : vector<256x128xf32>
    %41 = vector.extract_strided_slice %28 {offsets = [0, 2, 0], sizes = [16, 16, 4], strides = [1, 1, 1]} : vector<16x18x4xbf16> to vector<16x16x4xbf16>
    %42 = vector.shape_cast %41 : vector<16x16x4xbf16> to vector<256x4xbf16>
    %c5 = arith.constant 5 : index
    %c0_21 = arith.constant 0 : index
    %c0_22 = arith.constant 0 : index
    %43 = vector.load %arg3[%c5, %c0_21, %c0_22] : memref<9x4x128xbf16, #tpu.memory_space<vmem>>, vector<1x4x128xbf16>
    %44 = vector.shape_cast %43 : vector<1x4x128xbf16> to vector<4x128xbf16>
    %cst_23 = arith.constant dense<0.000000e+00> : vector<256x128xf32>
    %45 = tpu.matmul %42, %44, %cst_23 {dimension_numbers = #tpu.dot_dimension_numbers<[1], [0], [0], [1], [0, 0, 1, 1], [], []>} : vector<256x4xbf16>, vector<4x128xbf16>, vector<256x128xf32> -> vector<256x128xf32>
    %46 = arith.addf %40, %45 : vector<256x128xf32>
    %c2_i32 = arith.constant 2 : i32
    %47 = arith.addi %1, %c2_i32 : i32
    %c0_24 = arith.constant 0 : index
    %48 = arith.index_cast %47 : i32 to index
    %c0_25 = arith.constant 0 : index
    %c0_26 = arith.constant 0 : index
    %49 = vector.load %arg2[%c0_24, %48, %c0_25, %c0_26] : memref<1x18x18x4xbf16, #tpu.memory_space<vmem>>, vector<1x16x18x4xbf16>
    %50 = vector.shape_cast %49 : vector<1x16x18x4xbf16> to vector<16x18x4xbf16>
    %51 = vector.extract_strided_slice %50 {offsets = [0, 0, 0], sizes = [16, 16, 4], strides = [1, 1, 1]} : vector<16x18x4xbf16> to vector<16x16x4xbf16>
    %52 = vector.shape_cast %51 : vector<16x16x4xbf16> to vector<256x4xbf16>
    %c6 = arith.constant 6 : index
    %c0_27 = arith.constant 0 : index
    %c0_28 = arith.constant 0 : index
    %53 = vector.load %arg3[%c6, %c0_27, %c0_28] : memref<9x4x128xbf16, #tpu.memory_space<vmem>>, vector<1x4x128xbf16>
    %54 = vector.shape_cast %53 : vector<1x4x128xbf16> to vector<4x128xbf16>
    %cst_29 = arith.constant dense<0.000000e+00> : vector<256x128xf32>
    %55 = tpu.matmul %52, %54, %cst_29 {dimension_numbers = #tpu.dot_dimension_numbers<[1], [0], [0], [1], [0, 0, 1, 1], [], []>} : vector<256x4xbf16>, vector<4x128xbf16>, vector<256x128xf32> -> vector<256x128xf32>
    %56 = arith.addf %46, %55 : vector<256x128xf32>
    %57 = vector.extract_strided_slice %50 {offsets = [0, 1, 0], sizes = [16, 16, 4], strides = [1, 1, 1]} : vector<16x18x4xbf16> to vector<16x16x4xbf16>
    %58 = vector.shape_cast %57 : vector<16x16x4xbf16> to vector<256x4xbf16>
    %c7 = arith.constant 7 : index
    %c0_30 = arith.constant 0 : index
    %c0_31 = arith.constant 0 : index
    %59 = vector.load %arg3[%c7, %c0_30, %c0_31] : memref<9x4x128xbf16, #tpu.memory_space<vmem>>, vector<1x4x128xbf16>
    %60 = vector.shape_cast %59 : vector<1x4x128xbf16> to vector<4x128xbf16>
    %cst_32 = arith.constant dense<0.000000e+00> : vector<256x128xf32>
    %61 = tpu.matmul %58, %60, %cst_32 {dimension_numbers = #tpu.dot_dimension_numbers<[1], [0], [0], [1], [0, 0, 1, 1], [], []>} : vector<256x4xbf16>, vector<4x128xbf16>, vector<256x128xf32> -> vector<256x128xf32>
    %62 = arith.addf %56, %61 : vector<256x128xf32>
    %63 = vector.extract_strided_slice %50 {offsets = [0, 2, 0], sizes = [16, 16, 4], strides = [1, 1, 1]} : vector<16x18x4xbf16> to vector<16x16x4xbf16>
    %64 = vector.shape_cast %63 : vector<16x16x4xbf16> to vector<256x4xbf16>
    %c8 = arith.constant 8 : index
    %c0_33 = arith.constant 0 : index
    %c0_34 = arith.constant 0 : index
    %65 = vector.load %arg3[%c8, %c0_33, %c0_34] : memref<9x4x128xbf16, #tpu.memory_space<vmem>>, vector<1x4x128xbf16>
    %66 = vector.shape_cast %65 : vector<1x4x128xbf16> to vector<4x128xbf16>
    %cst_35 = arith.constant dense<0.000000e+00> : vector<256x128xf32>
    %67 = tpu.matmul %64, %66, %cst_35 {dimension_numbers = #tpu.dot_dimension_numbers<[1], [0], [0], [1], [0, 0, 1, 1], [], []>} : vector<256x4xbf16>, vector<4x128xbf16>, vector<256x128xf32> -> vector<256x128xf32>
    %68 = arith.addf %62, %67 : vector<256x128xf32>
    %c0_36 = arith.constant 0 : index
    %c0_37 = arith.constant 0 : index
    %c0_38 = arith.constant 0 : index
    %69 = vector.load %arg4[%c0_36, %c0_37, %c0_38] : memref<1x256x128xf32, #tpu.memory_space<vmem>>, vector<1x256x128xf32>
    %70 = vector.shape_cast %69 : vector<1x256x128xf32> to vector<256x128xf32>
    %71 = vector.shape_cast %68 : vector<256x128xf32> to vector<1x256x128xf32>
    tpu.vector_store %arg4[%c0_36, %c0_37, %c0_38], %71 {strides = array<i32>} : memref<1x256x128xf32, #tpu.memory_space<vmem>>, vector<1x256x128xf32>,
    return
  }
  func.func @transform_0(%arg0: i32, %arg1: i32) -> (i32, i32, i32, i32) {
    %c0_i32 = arith.constant 0 : i32
    %c0_i32_0 = arith.constant 0 : i32
    %c0_i32_1 = arith.constant 0 : i32
    %c0_i32_2 = arith.constant 0 : i32
    return %arg0, %c0_i32, %c0_i32_0, %c0_i32_1 : i32, i32, i32, i32
  }
  func.func @transform_1(%arg0: i32, %arg1: i32) -> (i32, i32, i32) {
    %c0_i32 = arith.constant 0 : i32
    %c0_i32_0 = arith.constant 0 : i32
    %c0_i32_1 = arith.constant 0 : i32
    %c0_i32_2 = arith.constant 0 : i32
    return %c0_i32, %c0_i32_0, %c0_i32_1 : i32, i32, i32
  }
  func.func @transform_2(%arg0: i32, %arg1: i32) -> (i32, i32, i32) {
    %c0_i32 = arith.constant 0 : i32
    %c0_i32_0 = arith.constant 0 : i32
    return %arg0, %arg1, %c0_i32 : i32, i32, i32
  }
}

</mosaic_0001>

<llo_original>
// kernel: conv2d_same.1
$region0: #{conv2d_same.1}
  #allocation0 [shape = 'u32[]', space=smem, size = 0x4, offset = 0x4, fixed_abs, tag = 'smem constant byte address 0x4 - core index']
  #allocation1 [shape = 'u32[144,128]{1,0:T(1,128)}', space=vmem, size = 0x12000, scoped, tag = 'internal scratch']
  %s0 = inlined_call_operand.vmem [shape: bf16[2,18,18,4], index: 0, kind: input, shape index: {}]
  %s1 = inlined_call_operand.vmem [shape: bf16[9,4,128], index: 1, kind: input, shape index: {}]
  %s2 = inlined_call_operand.vmem [shape: f32[2,256,128], index: 2, kind: output, shape index: {}]
  %s3 = sld [smem:[#allocation0]]
  $region41: #{conv2d_same.1} parent=0
    _
  %s5 = ssub.s32 1, %s3
  %s6 = scalar_select 0, %s5, %s3
  loop: start=0, step=1, limit=4
  $region2: #{conv2d_same.1} parent=0 // loop_pre_header
    _
  $region3: #{conv2d_same.1} parent=0 // loop_header
    %s8 = sphi 0, %s12
    %p9 = scmp.ge.s32.totalorder %s8, 4
    %s15 = sphi 0, %s27
    %s16 = sphi 0, %s23
    %s17 = sphi 0, %s15
    %s18 = sphi 0, %s16
    %s19 = sphi 0, %s17
    %s20 = sphi 0, %s18
    %s30 = sphi 0, %s32
    %s33 = sphi 0, %s30
    %s34 = sphi 0, %s33
    %s50 = sphi 0, %s34
    %s54 = sphi 0, %s54
    %s56 = sphi 0, %s54
    %s57 = sphi 0, %s56
    %s71 = sphi 0, %s57
    %s79 = sphi 0, %s81
    %s82 = sphi 0, %s79
    %s83 = sphi 0, %s82
    %s99 = sphi 0, %s83
  $region4: #{conv2d_same.1} parent=0 // loop_header_branch
    %11 = sbr.rel (%p9) target = $region8
  $region5: #{conv2d_same.1} parent=0 // loop_body
    %s13 = ssub.s32 %s8, 1
    %s14 = ssub.s32 %s8, 2
    %s21 = sadd.s32 1, %s16
    %p22 = scmp.ge.s32.totalorder %s21, 1
    %s23 = scalar_select %p22, 0, %s21
    %s24 = sadd.s32 1, %s15
    %s25 = scalar_select %p22, %s24, %s15
    %p26 = scmp.ge.s32.totalorder %s25, 2
    %s27 = scalar_select %p26, 0, %s25
    %s28 = ssub.s32 %s15, %s27
    %p29 = scmp.eq.s32.totalorder %s28, 0
    %s31 = sadd.s32 %s30, 1
    %s32 = scalar_select %p29, %s30, %s31
    %p35 = pneg %p29
    %p36 = scmp.eq.s32.totalorder %s8, 1
    %p37 = por %p35, %p36
    %p38 = scmp.ne.s32.totalorder %s30, %s33
    %p39 = scmp.eq.s32.totalorder %s8, 0
    %p40 = por %p38, %p39
    %p41 = scmp.ne.s32.totalorder %s30, %s33
    %p42 = scmp.eq.s32.totalorder %s13, 1
    %p43 = por %p41, %p42
    %p44 = scmp.ne.s32.totalorder %s33, %s34
    %p45 = scmp.eq.s32.totalorder %s13, 0
    %p46 = por %p44, %p45
    %p47 = scmp.ne.s32.totalorder %s33, %s34
    %p48 = scmp.eq.s32.totalorder %s14, 1
    %p49 = por %p47, %p48
    %p51 = scmp.ne.s32.totalorder %s34, %s50
    %p52 = scmp.eq.s32.totalorder %s14, 0
    %p53 = por %p51, %p52
    %s55 = sadd.s32 %s54, 1
    %p58 = scmp.eq.s32.totalorder %s8, 1
    %p59 = scmp.ne.s32.totalorder %s54, %s56
    %p60 = scmp.eq.s32.totalorder %s8, 0
    %p61 = por %p59, %p60
    %p62 = scmp.ne.s32.totalorder %s54, %s56
    %p63 = scmp.eq.s32.totalorder %s13, 1
    %p64 = por %p62, %p63
    %p65 = scmp.ne.s32.totalorder %s56, %s57
    %p66 = scmp.eq.s32.totalorder %s13, 0
    %p67 = por %p65, %p66
    %p68 = scmp.ne.s32.totalorder %s56, %s57
    %p69 = scmp.eq.s32.totalorder %s14, 1
    %p70 = por %p68, %p69
    %p72 = scmp.ne.s32.totalorder %s57, %s71
    %p73 = scmp.eq.s32.totalorder %s14, 0
    %p74 = por %p72, %p73
    %s75 = ssub.s32 %s15, %s27
    %s76 = ssub.s32 %s16, %s23
    %s77 = sor.u32 %s75, %s76
    %p78 = scmp.eq.s32.totalorder %s77, 0
    %s80 = sadd.s32 %s79, 1
    %s81 = scalar_select %p78, %s79, %s80
    %p84 = pneg %p78
    %p85 = scmp.eq.s32.totalorder %s8, 1
    %p86 = por %p84, %p85
    %p87 = scmp.ne.s32.totalorder %s79, %s82
    %p88 = scmp.eq.s32.totalorder %s8, 0
    %p89 = por %p87, %p88
    %p90 = scmp.ne.s32.totalorder %s79, %s82
    %p91 = scmp.eq.s32.totalorder %s13, 1
    %p92 = por %p90, %p91
    %p93 = scmp.ne.s32.totalorder %s82, %s83
    %p94 = scmp.eq.s32.totalorder %s13, 0
    %p95 = por %p93, %p94
    %p96 = scmp.ne.s32.totalorder %s82, %s83
    %p97 = scmp.eq.s32.totalorder %s14, 1
    %p98 = por %p96, %p97
    %p100 = scmp.ne.s32.totalorder %s83, %s99
    %p101 = scmp.eq.s32.totalorder %s14, 0
    %p102 = por %p100, %p101
    %p103 = scmp.le.s32.totalorder 1, %s8
    %p104 = scmp.lt.s32.totalorder %s8, 3
    %p105 = pnand %p103, %p104
    %p106 = pneg %p105
    // Predicated region
    $region9: #{conv2d_same.1} parent=5 // pred_check
      _
    $region10: #{conv2d_same.1} parent=5 // pred_check_branch
      %108 = sbr.rel (%p105) target = $region12
    $region11: #{conv2d_same.1} parent=5 // pred_region
      %s109 = ssub.s32 %s8, 1
      // Predicated region
      $region13: #{conv2d_same.1} parent=11 // pred_check
        %p110 = pneg %p67
      $region14: #{conv2d_same.1} parent=11 // pred_check_branch
        %112 = sbr.rel (%p110) target = $region16
      $region15: #{conv2d_same.1} parent=11 // pred_region
        _
      $region16: #{conv2d_same.1} parent=11 // pred_fallthru
        _
    $region12: #{conv2d_same.1} parent=5 // pred_fallthru
      _
    %p113 = scmp.lt.s32.totalorder %s8, 2
    // Predicated region
    $region17: #{conv2d_same.1} parent=5 // pred_check
      %p114 = pneg %p113
    $region18: #{conv2d_same.1} parent=5 // pred_check_branch
      %116 = sbr.rel (%p114) target = $region20
    $region19: #{conv2d_same.1} parent=5 // pred_region
      // Predicated region
      $region21: #{conv2d_same.1} parent=19 // pred_check
        %p117 = pneg %p40
      $region22: #{conv2d_same.1} parent=19 // pred_check_branch
        %119 = sbr.rel (%p117) target = $region24
      $region23: #{conv2d_same.1} parent=19 // pred_region
        %p120 = scmp.lt.s32.totalorder %s15, 1
        %s121 = scalar_select %p120, %s15, 1
        %s122 = smul.addr %s121, 54
        %s123 = smul.addr %s122, 4
        %s124 = scalar_lea.vmem %s0, %s123
      $region24: #{conv2d_same.1} parent=19 // pred_fallthru
        _
    $region20: #{conv2d_same.1} parent=5 // pred_fallthru
      _
    %p125 = scmp.le.s32.totalorder 1, %s8
    %p126 = scmp.lt.s32.totalorder %s8, 3
    %p127 = pnand %p125, %p126
    %p128 = pneg %p127
    // Predicated region
    $region25: #{conv2d_same.1} parent=5 // pred_check
      _
    $region26: #{conv2d_same.1} parent=5 // pred_check_branch
      %130 = sbr.rel (%p127) target = $region28
    $region27: #{conv2d_same.1} parent=5 // pred_region
      %s131 = ssub.s32 %s8, 1
      %p132 = scmp.lt.s32.totalorder %s17, 1
      %s133 = scalar_select %p132, %s17, 1
      %s134 = smul.addr %s133, 54
      %s135 = smul.addr %s134, 4
      %s136 = scalar_lea.vmem %s0, %s135
      %p137 = pneg %p46
      %p138 = pneg %p43
      %p139 = pneg %p67
      %p140 = pneg %p64
      %p141 = pneg %p95
      %p142 = pneg %p92
      %s143 = smul.u32 32, %s18
      %p144 = scmp.lt.s32.totalorder %s17, 1
      %s145 = scalar_select %p144, %s17, 1
      %p146 = scmp.lt.s32.totalorder %s143, 31
      %s147 = scalar_select %p146, %s143, 31
      %s148 = smul.addr %s145, 32
      %s149 = sadd.s32 %s147, %s148
      %s150 = smul.addr %s149, 8
      %s151 = scalar_lea.vmem %s2, %s150
      %p152 = scmp.lt.s32.totalorder %s17, 1
      %s153 = scalar_select %p152, %s17, 1
      %s154 = smul.addr %s153, 54
      %s155 = smul.addr %s154, 4
      %s156 = scalar_lea.vmem %s0, %s155
      %s157 = smul.u32 32, %s18
      %p158 = scmp.lt.s32.totalorder %s17, 1
      %s159 = scalar_select %p158, %s17, 1
      %p160 = scmp.lt.s32.totalorder %s157, 31
      %s161 = scalar_select %p160, %s157, 31
      %s162 = smul.addr %s159, 32
      %s163 = sadd.s32 %s161, %s162
      %s164 = smul.addr %s163, 8
      %s165 = scalar_lea.vmem %s2, %s164
      %s166 = smul.u32 32, %s18
      %s168 = smul.u32 %s18, 16
      %s169 = smul.u32 %s168, 3
      %s170 = smul.addr %s169, 4
      %s171 = scalar_lea.vmem %s156, %s170
      %v172 = vld [vmem:[%s171] sm:$0xf]
      %v173 = vld [vmem:[%s171 + $0x4] sm:$0xf]
      %v174 = vld [vmem:[%s171 + $0x8] sm:$0x1]
      %v175 = vld [vmem:[%s171 + $0xc] sm:$0xf]
      %v176 = vld [vmem:[%s171 + $0x10] sm:$0xf]
      %v177 = vld [vmem:[%s171 + $0x14] sm:$0x1]
      %v178 = vld [vmem:[%s171 + $0x18] sm:$0xf]
      %v179 = vld [vmem:[%s171 + $0x1c] sm:$0xf]
      %v180 = vld [vmem:[%s171 + $0x20] sm:$0x1]
      %v181 = vld [vmem:[%s171 + $0x24] sm:$0xf]
      %v182 = vld [vmem:[%s171 + $0x28] sm:$0xf]
      %v183 = vld [vmem:[%s171 + $0x2c] sm:$0x1]
      %v184 = vld [vmem:[%s171 + $0x30] sm:$0xf]
      %v185 = vld [vmem:[%s171 + $0x34] sm:$0xf]
      %v186 = vld [vmem:[%s171 + $0x38] sm:$0x1]
      %v187 = vld [vmem:[%s171 + $0x3c] sm:$0xf]
      %v188 = vld [vmem:[%s171 + $0x40] sm:$0xf]
      %v189 = vld [vmem:[%s171 + $0x44] sm:$0x1]
      %v190 = vld [vmem:[%s171 + $0x48] sm:$0xf]
      %v191 = vld [vmem:[%s171 + $0x4c] sm:$0xf]
      %v192 = vld [vmem:[%s171 + $0x50] sm:$0x1]
      %v193 = vld [vmem:[%s171 + $0x54] sm:$0xf]
      %v194 = vld [vmem:[%s171 + $0x58] sm:$0xf]
      %v195 = vld [vmem:[%s171 + $0x5c] sm:$0x1]
      %v196 = vld [vmem:[%s171 + $0x60] sm:$0xf]
      %v197 = vld [vmem:[%s171 + $0x64] sm:$0xf]
      %v198 = vld [vmem:[%s171 + $0x68] sm:$0x1]
      %v199 = vld [vmem:[%s171 + $0x6c] sm:$0xf]
      %v200 = vld [vmem:[%s171 + $0x70] sm:$0xf]
      %v201 = vld [vmem:[%s171 + $0x74] sm:$0x1]
      %v202 = vld [vmem:[%s171 + $0x78] sm:$0xf]
      %v203 = vld [vmem:[%s171 + $0x7c] sm:$0xf]
      %v204 = vld [vmem:[%s171 + $0x80] sm:$0x1]
      %v205 = vld [vmem:[%s171 + $0x84] sm:$0xf]
      %v206 = vld [vmem:[%s171 + $0x88] sm:$0xf]
      %v207 = vld [vmem:[%s171 + $0x8c] sm:$0x1]
      %v208 = vld [vmem:[%s171 + $0x90] sm:$0xf]
      %v209 = vld [vmem:[%s171 + $0x94] sm:$0xf]
      %v210 = vld [vmem:[%s171 + $0x98] sm:$0x1]
      %v211 = vld [vmem:[%s171 + $0x9c] sm:$0xf]
      %v212 = vld [vmem:[%s171 + $0xa0] sm:$0xf]
      %v213 = vld [vmem:[%s171 + $0xa4] sm:$0x1]
      %v214 = vld [vmem:[%s171 + $0xa8] sm:$0xf]
      %v215 = vld [vmem:[%s171 + $0xac] sm:$0xf]
      %v216 = vld [vmem:[%s171 + $0xb0] sm:$0x1]
      %v217 = vld [vmem:[%s171 + $0xb4] sm:$0xf]
      %v218 = vld [vmem:[%s171 + $0xb8] sm:$0xf]
      %v219 = vld [vmem:[%s171 + $0xbc] sm:$0x1]
      %v220 = vld [vmem:[%s1] sm:$0x3]
      %vm221 = vsmask.f32 3328
      %vm222 = vsmask.f32 7440
      %vm223 = vmor %vm221, %vm222
      %v225 = vshrl.u32 %v172, 16
      %v227 = vrot.slane %v225, 4
      %v228 = vshll.u32 %v172, 16
      %v230 = vrot.slane %v228, 5
      %v231 = vor.u32 %v227, %v230
      %v232 = vrot.slane %v231, 4
      %v234 = vshll.u32 %v173, 16
      %v236 = vrot.slane %v234, 5
      %v237 = vsel %vm223, %v232, %v236
      %v238 = vshrl.u32 %v173, 16
      %v240 = vrot.slane %v238, 4
      %v241 = vor.u32 %v240, %v236
      %v242 = vrot.slane %v241, 4
      %v244 = vshll.u32 %v174, 16
      %v246 = vrot.slane %v244, 5
      %v247 = vsel %vm223, %v242, %v246
      %v249 = vshrl.u32 %v175, 16
      %v251 = vrot.slane %v249, 4
      %v252 = vshll.u32 %v175, 16
      %v254 = vrot.slane %v252, 5
      %v255 = vor.u32 %v251, %v254
      %v256 = vrot.slane %v255, 4
      %v258 = vshll.u32 %v176, 16
      %v260 = vrot.slane %v258, 5
      %v261 = vsel %vm223, %v256, %v260
      %v262 = vshrl.u32 %v176, 16
      %v264 = vrot.slane %v262, 4
      %v265 = vor.u32 %v264, %v260
      %v266 = vrot.slane %v265, 4
      %v268 = vshll.u32 %v177, 16
      %v270 = vrot.slane %v268, 5
      %v271 = vsel %vm223, %v266, %v270
      %v273 = vshrl.u32 %v178, 16
      %v275 = vrot.slane %v273, 4
      %v276 = vshll.u32 %v178, 16
      %v278 = vrot.slane %v276, 5
      %v279 = vor.u32 %v275, %v278
      %v280 = vrot.slane %v279, 4
      %v282 = vshll.u32 %v179, 16
      %v284 = vrot.slane %v282, 5
      %v285 = vsel %vm223, %v280, %v284
      %v286 = vshrl.u32 %v179, 16
      %v288 = vrot.slane %v286, 4
      %v289 = vor.u32 %v288, %v284
      %v290 = vrot.slane %v289, 4
      %v292 = vshll.u32 %v180, 16
      %v294 = vrot.slane %v292, 5
      %v295 = vsel %vm223, %v290, %v294
      %v297 = vshrl.u32 %v181, 16
      %v299 = vrot.slane %v297, 4
      %v300 = vshll.u32 %v181, 16
      %v302 = vrot.slane %v300, 5
      %v303 = vor.u32 %v299, %v302
      %v304 = vrot.slane %v303, 4
      %v306 = vshll.u32 %v182, 16
      %v308 = vrot.slane %v306, 5
      %v309 = vsel %vm223, %v304, %v308
      %v310 = vshrl.u32 %v182, 16
      %v312 = vrot.slane %v310, 4
      %v313 = vor.u32 %v312, %v308
      %v314 = vrot.slane %v313, 4
      %v316 = vshll.u32 %v183, 16
      %v318 = vrot.slane %v316, 5
      %v319 = vsel %vm223, %v314, %v318
      %v321 = vshrl.u32 %v184, 16
      %v323 = vrot.slane %v321, 4
      %v324 = vshll.u32 %v184, 16
      %v326 = vrot.slane %v324, 5
      %v327 = vor.u32 %v323, %v326
      %v328 = vrot.slane %v327, 4
      %v330 = vshll.u32 %v185, 16
      %v332 = vrot.slane %v330, 5
      %v333 = vsel %vm223, %v328, %v332
      %v334 = vshrl.u32 %v185, 16
      %v336 = vrot.slane %v334, 4
      %v337 = vor.u32 %v336, %v332
      %v338 = vrot.slane %v337, 4
      %v340 = vshll.u32 %v186, 16
      %v342 = vrot.slane %v340, 5
      %v343 = vsel %vm223, %v338, %v342
      %v345 = vshrl.u32 %v187, 16
      %v347 = vrot.slane %v345, 4
      %v348 = vshll.u32 %v187, 16
      %v350 = vrot.slane %v348, 5
      %v351 = vor.u32 %v347, %v350
      %v352 = vrot.slane %v351, 4
      %v354 = vshll.u32 %v188, 16
      %v356 = vrot.slane %v354, 5
      %v357 = vsel %vm223, %v352, %v356
      %v358 = vshrl.u32 %v188, 16
      %v360 = vrot.slane %v358, 4
      %v361 = vor.u32 %v360, %v356
      %v362 = vrot.slane %v361, 4
      %v364 = vshll.u32 %v189, 16
      %v366 = vrot.slane %v364, 5
      %v367 = vsel %vm223, %v362, %v366
      %v369 = vshrl.u32 %v190, 16
      %v371 = vrot.slane %v369, 4
      %v372 = vshll.u32 %v190, 16
      %v374 = vrot.slane %v372, 5
      %v375 = vor.u32 %v371, %v374
      %v376 = vrot.slane %v375, 4
      %v378 = vshll.u32 %v191, 16
      %v380 = vrot.slane %v378, 5
      %v381 = vsel %vm223, %v376, %v380
      %v382 = vshrl.u32 %v191, 16
      %v384 = vrot.slane %v382, 4
      %v385 = vor.u32 %v384, %v380
      %v386 = vrot.slane %v385, 4
      %v388 = vshll.u32 %v192, 16
      %v390 = vrot.slane %v388, 5
      %v391 = vsel %vm223, %v386, %v390
      %v393 = vshrl.u32 %v193, 16
      %v395 = vrot.slane %v393, 4
      %v396 = vshll.u32 %v193, 16
      %v398 = vrot.slane %v396, 5
      %v399 = vor.u32 %v395, %v398
      %v400 = vrot.slane %v399, 4
      %v402 = vshll.u32 %v194, 16
      %v404 = vrot.slane %v402, 5
      %v405 = vsel %vm223, %v400, %v404
      %v406 = vshrl.u32 %v194, 16
      %v408 = vrot.slane %v406, 4
      %v409 = vor.u32 %v408, %v404
      %v410 = vrot.slane %v409, 4
      %v412 = vshll.u32 %v195, 16
      %v414 = vrot.slane %v412, 5
      %v415 = vsel %vm223, %v410, %v414
      %v417 = vshrl.u32 %v196, 16
      %v419 = vrot.slane %v417, 4
      %v420 = vshll.u32 %v196, 16
      %v422 = vrot.slane %v420, 5
      %v423 = vor.u32 %v419, %v422
      %v424 = vrot.slane %v423, 4
      %v426 = vshll.u32 %v197, 16
      %v428 = vrot.slane %v426, 5
      %v429 = vsel %vm223, %v424, %v428
      %v430 = vshrl.u32 %v197, 16
      %v432 = vrot.slane %v430, 4
      %v433 = vor.u32 %v432, %v428
      %v434 = vrot.slane %v433, 4
      %v436 = vshll.u32 %v198, 16
      %v438 = vrot.slane %v436, 5
      %v439 = vsel %vm223, %v434, %v438
      %v441 = vshrl.u32 %v199, 16
      %v443 = vrot.slane %v441, 4
      %v444 = vshll.u32 %v199, 16
      %v446 = vrot.slane %v444, 5
      %v447 = vor.u32 %v443, %v446
      %v448 = vrot.slane %v447, 4
      %v450 = vshll.u32 %v200, 16
      %v452 = vrot.slane %v450, 5
      %v453 = vsel %vm223, %v448, %v452
      %v454 = vshrl.u32 %v200, 16
      %v456 = vrot.slane %v454, 4
      %v457 = vor.u32 %v456, %v452
      %v458 = vrot.slane %v457, 4
      %v460 = vshll.u32 %v201, 16
      %v462 = vrot.slane %v460, 5
      %v463 = vsel %vm223, %v458, %v462
      %v465 = vshrl.u32 %v202, 16
      %v467 = vrot.slane %v465, 4
      %v468 = vshll.u32 %v202, 16
      %v470 = vrot.slane %v468, 5
      %v471 = vor.u32 %v467, %v470
      %v472 = vrot.slane %v471, 4
      %v474 = vshll.u32 %v203, 16
      %v476 = vrot.slane %v474, 5
      %v477 = vsel %vm223, %v472, %v476
      %v478 = vshrl.u32 %v203, 16
      %v480 = vrot.slane %v478, 4
      %v481 = vor.u32 %v480, %v476
      %v482 = vrot.slane %v481, 4
      %v484 = vshll.u32 %v204, 16
      %v486 = vrot.slane %v484, 5
      %v487 = vsel %vm223, %v482, %v486
      %v489 = vshrl.u32 %v205, 16
      %v491 = vrot.slane %v489, 4
      %v492 = vshll.u32 %v205, 16
      %v494 = vrot.slane %v492, 5
      %v495 = vor.u32 %v491, %v494
      %v496 = vrot.slane %v495, 4
      %v498 = vshll.u32 %v206, 16
      %v500 = vrot.slane %v498, 5
      %v501 = vsel %vm223, %v496, %v500
      %v502 = vshrl.u32 %v206, 16
      %v504 = vrot.slane %v502, 4
      %v505 = vor.u32 %v504, %v500
      %v506 = vrot.slane %v505, 4
      %v508 = vshll.u32 %v207, 16
      %v510 = vrot.slane %v508, 5
      %v511 = vsel %vm223, %v506, %v510
      %v513 = vshrl.u32 %v208, 16
      %v515 = vrot.slane %v513, 4
      %v516 = vshll.u32 %v208, 16
      %v518 = vrot.slane %v516, 5
      %v519 = vor.u32 %v515, %v518
      %v520 = vrot.slane %v519, 4
      %v522 = vshll.u32 %v209, 16
      %v524 = vrot.slane %v522, 5
      %v525 = vsel %vm223, %v520, %v524
      %v526 = vshrl.u32 %v209, 16
      %v528 = vrot.slane %v526, 4
      %v529 = vor.u32 %v528, %v524
      %v530 = vrot.slane %v529, 4
      %v532 = vshll.u32 %v210, 16
      %v534 = vrot.slane %v532, 5
      %v535 = vsel %vm223, %v530, %v534
      %v537 = vshrl.u32 %v211, 16
      %v539 = vrot.slane %v537, 4
      %v540 = vshll.u32 %v211, 16
      %v542 = vrot.slane %v540, 5
      %v543 = vor.u32 %v539, %v542
      %v544 = vrot.slane %v543, 4
      %v546 = vshll.u32 %v212, 16
      %v548 = vrot.slane %v546, 5
      %v549 = vsel %vm223, %v544, %v548
      %v550 = vshrl.u32 %v212, 16
      %v552 = vrot.slane %v550, 4
      %v553 = vor.u32 %v552, %v548
      %v554 = vrot.slane %v553, 4
      %v556 = vshll.u32 %v213, 16
      %v558 = vrot.slane %v556, 5
      %v559 = vsel %vm223, %v554, %v558
      %v561 = vshrl.u32 %v214, 16
      %v563 = vrot.slane %v561, 4
      %v564 = vshll.u32 %v214, 16
      %v566 = vrot.slane %v564, 5
      %v567 = vor.u32 %v563, %v566
      %v568 = vrot.slane %v567, 4
      %v570 = vshll.u32 %v215, 16
      %v572 = vrot.slane %v570, 5
      %v573 = vsel %vm223, %v568, %v572
      %v574 = vshrl.u32 %v215, 16
      %v576 = vrot.slane %v574, 4
      %v577 = vor.u32 %v576, %v572
      %v578 = vrot.slane %v577, 4
      %v580 = vshll.u32 %v216, 16
      %v582 = vrot.slane %v580, 5
      %v583 = vsel %vm223, %v578, %v582
      %v585 = vshrl.u32 %v217, 16
      %v587 = vrot.slane %v585, 4
      %v588 = vshll.u32 %v217, 16
      %v590 = vrot.slane %v588, 5
      %v591 = vor.u32 %v587, %v590
      %v592 = vrot.slane %v591, 4
      %v594 = vshll.u32 %v218, 16
      %v596 = vrot.slane %v594, 5
      %v597 = vsel %vm223, %v592, %v596
      %v598 = vshrl.u32 %v218, 16
      %v600 = vrot.slane %v598, 4
      %v601 = vor.u32 %v600, %v596
      %v602 = vrot.slane %v601, 4
      %v604 = vshll.u32 %v219, 16
      %v606 = vrot.slane %v604, 5
      %v607 = vsel %vm223, %v602, %v606
      %s608 = scalar_lea.vmem %s1, 2
      %v609 = vld [vmem:[%s608] sm:$0x3]
      %v610 = vunpack.c.l.b16 %v237
      %v611 = vunpack.c.l.b16 %v247
      %v612 = vunpack.c.l.b16 %v261
      %v613 = vunpack.c.l.b16 %v271
      %v614 = vunpack.c.l.b16 %v285
      %v615 = vunpack.c.l.b16 %v295
      %v616 = vunpack.c.l.b16 %v309
      %v617 = vunpack.c.l.b16 %v319
      %v618 = vunpack.c.l.b16 %v333
      %v619 = vunpack.c.l.b16 %v343
      %v620 = vunpack.c.l.b16 %v357
      %v621 = vunpack.c.l.b16 %v367
      %v622 = vunpack.c.l.b16 %v381
      %v623 = vunpack.c.l.b16 %v391
      %v624 = vunpack.c.l.b16 %v405
      %v625 = vunpack.c.l.b16 %v415
      %v626 = vunpack.c.l.b16 %v429
      %v627 = vunpack.c.l.b16 %v439
      %v628 = vunpack.c.l.b16 %v453
      %v629 = vunpack.c.l.b16 %v463
      %v630 = vunpack.c.l.b16 %v477
      %v631 = vunpack.c.l.b16 %v487
      %v632 = vunpack.c.l.b16 %v501
      %v633 = vunpack.c.l.b16 %v511
      %v634 = vunpack.c.l.b16 %v525
      %v635 = vunpack.c.l.b16 %v535
      %v636 = vunpack.c.l.b16 %v549
      %v637 = vunpack.c.l.b16 %v559
      %v638 = vunpack.c.l.b16 %v573
      %v639 = vunpack.c.l.b16 %v583
      %v640 = vunpack.c.l.b16 %v597
      %v641 = vunpack.c.l.b16 %v607
      %v642 = vpack.c.b16 %v611, %v610
      %v643 = vpack.c.b16 %v613, %v612
      %v644 = vpack.c.b16 %v615, %v614
      %v645 = vpack.c.b16 %v617, %v616
      %v646 = vpack.c.b16 %v619, %v618
      %v647 = vpack.c.b16 %v621, %v620
      %v648 = vpack.c.b16 %v623, %v622
      %v649 = vpack.c.b16 %v625, %v624
      %v650 = vpack.c.b16 %v627, %v626
      %v651 = vpack.c.b16 %v629, %v628
      %v652 = vpack.c.b16 %v631, %v630
      %v653 = vpack.c.b16 %v633, %v632
      %v654 = vpack.c.b16 %v635, %v634
      %v655 = vpack.c.b16 %v637, %v636
      %v656 = vpack.c.b16 %v639, %v638
      %v657 = vpack.c.b16 %v641, %v640
      %vm658 = vcmask 31744
      %v660 = vsel %vm658, %v642, 0
      %v663 = vsel %vm658, %v643, 0
      %v666 = vsel %vm658, %v644, 0
      %v669 = vsel %vm658, %v645, 0
      %v672 = vsel %vm658, %v646, 0
      %v675 = vsel %vm658, %v647, 0
      %v678 = vsel %vm658, %v648, 0
      %v681 = vsel %vm658, %v649, 0
      %v684 = vsel %vm658, %v650, 0
      %v687 = vsel %vm658, %v651, 0
      %v690 = vsel %vm658, %v652, 0
      %v693 = vsel %vm658, %v653, 0
      %v696 = vsel %vm658, %v654, 0
      %v699 = vsel %vm658, %v655, 0
      %v702 = vsel %vm658, %v656, 0
      %v705 = vsel %vm658, %v657, 0
      %vm707 = vcmask 1041408
      %v709 = vsel %vm707, %v609, 0
      %711 = vmatprep.subr.bf16.mxu0 0
      %712 = vmatpush1.bf16.msra.mxu0 %v709
      %713 = vmatprep.subr.bf16.mxu0 0
      %714 = vmatpush1.bf16.msra.mxu0 0
      %715 = vmatprep.subr.bf16.mxu0 0
      %716 = vmatpush1.bf16.msra.mxu0 0
      %717 = vmatprep.subr.bf16.mxu0 0
      %718 = vmatpush1.bf16.msra.mxu0 0
      %719 = vmatprep.subr.bf16.mxu0 0
      %720 = vmatpush1.bf16.msra.mxu0 0
      %721 = vmatprep.subr.bf16.mxu0 0
      %722 = vmatpush1.bf16.msra.mxu0 0
      %723 = vmatprep.subr.bf16.mxu0 0
      %724 = vmatpush1.bf16.msra.mxu0 0
      %725 = vmatprep.subr.bf16.mxu0 0
      %726 = vmatpush1.bf16.msra.mxu0 0
      %727 = vmatprep.subr.bf16.mxu0 0
      %728 = vmatpush1.bf16.msra.mxu0 0
      %729 = vmatprep.subr.bf16.mxu0 0
      %730 = vmatpush1.bf16.msra.mxu0 0
      %731 = vmatprep.subr.bf16.mxu0 0
      %732 = vmatpush1.bf16.msra.mxu0 0
      %733 = vmatprep.subr.bf16.mxu0 0
      %734 = vmatpush1.bf16.msra.mxu0 0
      %735 = vmatprep.subr.bf16.mxu0 0
      %736 = vmatpush1.bf16.msra.mxu0 0
      %737 = vmatprep.subr.bf16.mxu0 0
      %738 = vmatpush1.bf16.msra.mxu0 0
      %739 = vmatprep.subr.bf16.mxu0 0
      %740 = vmatpush1.bf16.msra.mxu0 0
      %741 = vmatprep.subr.bf16.mxu0 0
      %742 = vmatpush1.bf16.msra.mxu0 0
      %743 = vmatprep.mubr.bf16.mxu0 0
      %744 = vmatmul.mubr.bf16.gmra.mrb[0].mxu0 %v660
      %v745 = vpop.f32.mrb[0].mxu0
      %v746 = vadd.f32 0.0, %v745
      %v747 = vpop.f32.mrb[0].mxu0
      %v748 = vpop.f32.mrb[0].mxu0
      %v749 = vadd.f32 0.0, %v748
      %v750 = vpop.f32.mrb[0].mxu0
      %751 = vmatprep.mubr.bf16.mxu0 0
      %752 = vmatmul.mubr.bf16.gmra.mrb[0].mxu0 %v663
      %v753 = vpop.f32.mrb[0].mxu0
      %v754 = vadd.f32 0.0, %v753
      %v755 = vpop.f32.mrb[0].mxu0
      %v756 = vpop.f32.mrb[0].mxu0
      %v757 = vadd.f32 0.0, %v756
      %v758 = vpop.f32.mrb[0].mxu0
      %759 = vmatprep.mubr.bf16.mxu0 0
      %760 = vmatmul.mubr.bf16.gmra.mrb[0].mxu0 %v666
      %v761 = vpop.f32.mrb[0].mxu0
      %v762 = vadd.f32 0.0, %v761
      %v763 = vpop.f32.mrb[0].mxu0
      %v764 = vpop.f32.mrb[0].mxu0
      %v765 = vadd.f32 0.0, %v764
      %v766 = vpop.f32.mrb[0].mxu0
      %767 = vmatprep.mubr.bf16.mxu0 0
      %768 = vmatmul.mubr.bf16.gmra.mrb[0].mxu0 %v669
      %v769 = vpop.f32.mrb[0].mxu0
      %v770 = vadd.f32 0.0, %v769
      %v771 = vpop.f32.mrb[0].mxu0
      %v772 = vpop.f32.mrb[0].mxu0
      %v773 = vadd.f32 0.0, %v772
      %v774 = vpop.f32.mrb[0].mxu0
      %775 = vmatprep.mubr.bf16.mxu0 0
      %776 = vmatmul.mubr.bf16.gmra.mrb[0].mxu0 %v672
      %v777 = vpop.f32.mrb[0].mxu0
      %v778 = vadd.f32 0.0, %v777
      %v779 = vpop.f32.mrb[0].mxu0
      %v780 = vpop.f32.mrb[0].mxu0
      %v781 = vadd.f32 0.0, %v780
      %v782 = vpop.f32.mrb[0].mxu0
      %783 = vmatprep.mubr.bf16.mxu0 0
      %784 = vmatmul.mubr.bf16.gmra.mrb[0].mxu0 %v675
      %v785 = vpop.f32.mrb[0].mxu0
      %v786 = vadd.f32 0.0, %v785
      %v787 = vpop.f32.mrb[0].mxu0
      %v788 = vpop.f32.mrb[0].mxu0
      %v789 = vadd.f32 0.0, %v788
      %v790 = vpop.f32.mrb[0].mxu0
      %791 = vmatprep.mubr.bf16.mxu0 0
      %792 = vmatmul.mubr.bf16.gmra.mrb[0].mxu0 %v678
      %v793 = vpop.f32.mrb[0].mxu0
      %v794 = vadd.f32 0.0, %v793
      %v795 = vpop.f32.mrb[0].mxu0
      %v796 = vpop.f32.mrb[0].mxu0
      %v797 = vadd.f32 0.0, %v796
      %v798 = vpop.f32.mrb[0].mxu0
      %799 = vmatprep.mubr.bf16.mxu0 0
      %800 = vmatmul.mubr.bf16.gmra.mrb[0].mxu0 %v681
      %v801 = vpop.f32.mrb[0].mxu0
      %v802 = vadd.f32 0.0, %v801
      %v803 = vpop.f32.mrb[0].mxu0
      %v804 = vpop.f32.mrb[0].mxu0
      %v805 = vadd.f32 0.0, %v804
      %v806 = vpop.f32.mrb[0].mxu0
      %807 = vmatprep.mubr.bf16.mxu0 0
      %808 = vmatmul.mubr.bf16.gmra.mrb[0].mxu0 %v684
      %v809 = vpop.f32.mrb[0].mxu0
      %v810 = vadd.f32 0.0, %v809
      %v811 = vpop.f32.mrb[0].mxu0
      %v812 = vpop.f32.mrb[0].mxu0
      %v813 = vadd.f32 0.0, %v812
      %v814 = vpop.f32.mrb[0].mxu0
      %815 = vmatprep.mubr.bf16.mxu0 0
      %816 = vmatmul.mubr.bf16.gmra.mrb[0].mxu0 %v687
      %v817 = vpop.f32.mrb[0].mxu0
      %v818 = vadd.f32 0.0, %v817
      %v819 = vpop.f32.mrb[0].mxu0
      %v820 = vpop.f32.mrb[0].mxu0
      %v821 = vadd.f32 0.0, %v820
      %v822 = vpop.f32.mrb[0].mxu0
      %823 = vmatprep.mubr.bf16.mxu0 0
      %824 = vmatmul.mubr.bf16.gmra.mrb[0].mxu0 %v690
      %v825 = vpop.f32.mrb[0].mxu0
      %v826 = vadd.f32 0.0, %v825
      %v827 = vpop.f32.mrb[0].mxu0
      %v828 = vpop.f32.mrb[0].mxu0
      %v829 = vadd.f32 0.0, %v828
      %v830 = vpop.f32.mrb[0].mxu0
      %831 = vmatprep.mubr.bf16.mxu0 0
      %832 = vmatmul.mubr.bf16.gmra.mrb[0].mxu0 %v693
      %v833 = vpop.f32.mrb[0].mxu0
      %v834 = vadd.f32 0.0, %v833
      %v835 = vpop.f32.mrb[0].mxu0
      %v836 = vpop.f32.mrb[0].mxu0
      %v837 = vadd.f32 0.0, %v836
      %v838 = vpop.f32.mrb[0].mxu0
      %839 = vmatprep.mubr.bf16.mxu0 0
      %840 = vmatmul.mubr.bf16.gmra.mrb[0].mxu0 %v696
      %v841 = vpop.f32.mrb[0].mxu0
      %v842 = vadd.f32 0.0, %v841
      %v843 = vpop.f32.mrb[0].mxu0
      %v844 = vpop.f32.mrb[0].mxu0
      %v845 = vadd.f32 0.0, %v844
      %v846 = vpop.f32.mrb[0].mxu0
      %847 = vmatprep.mubr.bf16.mxu0 0
      %848 = vmatmul.mubr.bf16.gmra.mrb[0].mxu0 %v699
      %v849 = vpop.f32.mrb[0].mxu0
      %v850 = vadd.f32 0.0, %v849
      %v851 = vpop.f32.mrb[0].mxu0
      %v852 = vpop.f32.mrb[0].mxu0
      %v853 = vadd.f32 0.0, %v852
      %v854 = vpop.f32.mrb[0].mxu0
      %855 = vmatprep.mubr.bf16.mxu0 0
      %856 = vmatmul.mubr.bf16.gmra.mrb[0].mxu0 %v702
      %v857 = vpop.f32.mrb[0].mxu0
      %v858 = vadd.f32 0.0, %v857
      %v859 = vpop.f32.mrb[0].mxu0
      %v860 = vpop.f32.mrb[0].mxu0
      %v861 = vadd.f32 0.0, %v860
      %v862 = vpop.f32.mrb[0].mxu0
      %863 = vmatprep.mubr.bf16.mxu0 0
      %864 = vmatmul.mubr.bf16.gmra.mrb[0].mxu0 %v705
      %v865 = vpop.f32.mrb[0].mxu0
      %v866 = vadd.f32 0.0, %v865
      %v867 = vpop.f32.mrb[0].mxu0
      %v868 = vpop.f32.mrb[0].mxu0
      %v869 = vadd.f32 0.0, %v868
      %v870 = vpop.f32.mrb[0].mxu0
      %871 = vdwg.mxu0
      %v904 = vunpack.c.l.b16 %v172
      %v905 = vunpack.c.l.b16 %v173
      %v906 = vunpack.c.l.b16 %v175
      %v907 = vunpack.c.l.b16 %v176
      %v908 = vunpack.c.l.b16 %v178
      %v909 = vunpack.c.l.b16 %v179
      %v910 = vunpack.c.l.b16 %v181
      %v911 = vunpack.c.l.b16 %v182
      %v912 = vunpack.c.l.b16 %v184
      %v913 = vunpack.c.l.b16 %v185
      %v914 = vunpack.c.l.b16 %v187
      %v915 = vunpack.c.l.b16 %v188
      %v916 = vunpack.c.l.b16 %v190
      %v917 = vunpack.c.l.b16 %v191
      %v918 = vunpack.c.l.b16 %v193
      %v919 = vunpack.c.l.b16 %v194
      %v920 = vunpack.c.l.b16 %v196
      %v921 = vunpack.c.l.b16 %v197
      %v922 = vunpack.c.l.b16 %v199
      %v923 = vunpack.c.l.b16 %v200
      %v924 = vunpack.c.l.b16 %v202
      %v925 = vunpack.c.l.b16 %v203
      %v926 = vunpack.c.l.b16 %v205
      %v927 = vunpack.c.l.b16 %v206
      %v928 = vunpack.c.l.b16 %v208
      %v929 = vunpack.c.l.b16 %v209
      %v930 = vunpack.c.l.b16 %v211
      %v931 = vunpack.c.l.b16 %v212
      %v932 = vunpack.c.l.b16 %v214
      %v933 = vunpack.c.l.b16 %v215
      %v934 = vunpack.c.l.b16 %v217
      %v935 = vunpack.c.l.b16 %v218
      %v936 = vpack.c.b16 %v905, %v904
      %v937 = vpack.c.b16 %v907, %v906
      %v938 = vpack.c.b16 %v909, %v908
      %v939 = vpack.c.b16 %v911, %v910
      %v940 = vpack.c.b16 %v913, %v912
      %v941 = vpack.c.b16 %v915, %v914
      %v942 = vpack.c.b16 %v917, %v916
      %v943 = vpack.c.b16 %v919, %v918
      %v944 = vpack.c.b16 %v921, %v920
      %v945 = vpack.c.b16 %v923, %v922
      %v946 = vpack.c.b16 %v925, %v924
      %v947 = vpack.c.b16 %v927, %v926
      %v948 = vpack.c.b16 %v929, %v928
      %v949 = vpack.c.b16 %v931, %v930
      %v950 = vpack.c.b16 %v933, %v932
      %v951 = vpack.c.b16 %v935, %v934
      %v953 = vsel %vm658, %v936, 0
      %v956 = vsel %vm658, %v937, 0
      %v959 = vsel %vm658, %v938, 0
      %v962 = vsel %vm658, %v939, 0
      %v965 = vsel %vm658, %v940, 0
      %v968 = vsel %vm658, %v941, 0
      %v971 = vsel %vm658, %v942, 0
      %v974 = vsel %vm658, %v943, 0
      %v977 = vsel %vm658, %v944, 0
      %v980 = vsel %vm658, %v945, 0
      %v983 = vsel %vm658, %v946, 0
      %v986 = vsel %vm658, %v947, 0
      %v989 = vsel %vm658, %v948, 0
      %v992 = vsel %vm658, %v949, 0
      %v995 = vsel %vm658, %v950, 0
      %v998 = vsel %vm658, %v951, 0
      %v1001 = vsel %vm707, %v220, 0
      %1003 = vmatprep.subr.bf16.mxu0 0
      %1004 = vmatpush1.bf16.msra.mxu0 %v1001
      %1005 = vmatprep.subr.bf16.mxu0 0
      %1006 = vmatpush1.bf16.msra.mxu0 0
      %1007 = vmatprep.subr.bf16.mxu0 0
      %1008 = vmatpush1.bf16.msra.mxu0 0
      %1009 = vmatprep.subr.bf16.mxu0 0
      %1010 = vmatpush1.bf16.msra.mxu0 0
      %1011 = vmatprep.subr.bf16.mxu0 0
      %1012 = vmatpush1.bf16.msra.mxu0 0
      %1013 = vmatprep.subr.bf16.mxu0 0
      %1014 = vmatpush1.bf16.msra.mxu0 0
      %1015 = vmatprep.subr.bf16.mxu0 0
      %1016 = vmatpush1.bf16.msra.mxu0 0
      %1017 = vmatprep.subr.bf16.mxu0 0
      %1018 = vmatpush1.bf16.msra.mxu0 0
      %1019 = vmatprep.subr.bf16.mxu0 0
      %1020 = vmatpush1.bf16.msra.mxu0 0
      %1021 = vmatprep.subr.bf16.mxu0 0
      %1022 = vmatpush1.bf16.msra.mxu0 0
      %1023 = vmatprep.subr.bf16.mxu0 0
      %1024 = vmatpush1.bf16.msra.mxu0 0
      %1025 = vmatprep.subr.bf16.mxu0 0
      %1026 = vmatpush1.bf16.msra.mxu0 0
      %1027 = vmatprep.subr.bf16.mxu0 0
      %1028 = vmatpush1.bf16.msra.mxu0 0
      %1029 = vmatprep.subr.bf16.mxu0 0
      %1030 = vmatpush1.bf16.msra.mxu0 0
      %1031 = vmatprep.subr.bf16.mxu0 0
      %1032 = vmatpush1.bf16.msra.mxu0 0
      %1033 = vmatprep.subr.bf16.mxu0 0
      %1034 = vmatpush1.bf16.msra.mxu0 0
      %1035 = vmatprep.mubr.bf16.mxu0 0
      %1036 = vmatmul.mubr.bf16.gmra.mrb[0].mxu0 %v953
      %v1037 = vpop.f32.mrb[0].mxu0
      %v1038 = vadd.f32 %v746, %v1037
      %v1039 = vpop.f32.mrb[0].mxu0
      %v1040 = vpop.f32.mrb[0].mxu0
      %v1041 = vadd.f32 %v749, %v1040
      %v1042 = vpop.f32.mrb[0].mxu0
      %1043 = vmatprep.mubr.bf16.mxu0 0
      %1044 = vmatmul.mubr.bf16.gmra.mrb[0].mxu0 %v956
      %v1045 = vpop.f32.mrb[0].mxu0
      %v1046 = vadd.f32 %v754, %v1045
      %v1047 = vpop.f32.mrb[0].mxu0
      %v1048 = vpop.f32.mrb[0].mxu0
      %v1049 = vadd.f32 %v757, %v1048
      %v1050 = vpop.f32.mrb[0].mxu0
      %1051 = vmatprep.mubr.bf16.mxu0 0
      %1052 = vmatmul.mubr.bf16.gmra.mrb[0].mxu0 %v959
      %v1053 = vpop.f32.mrb[0].mxu0
      %v1054 = vadd.f32 %v762, %v1053
      %v1055 = vpop.f32.mrb[0].mxu0
      %v1056 = vpop.f32.mrb[0].mxu0
      %v1057 = vadd.f32 %v765, %v1056
      %v1058 = vpop.f32.mrb[0].mxu0
      %1059 = vmatprep.mubr.bf16.mxu0 0
      %1060 = vmatmul.mubr.bf16.gmra.mrb[0].mxu0 %v962
      %v1061 = vpop.f32.mrb[0].mxu0
      %v1062 = vadd.f32 %v770, %v1061
      %v1063 = vpop.f32.mrb[0].mxu0
      %v1064 = vpop.f32.mrb[0].mxu0
      %v1065 = vadd.f32 %v773, %v1064
      %v1066 = vpop.f32.mrb[0].mxu0
      %1067 = vmatprep.mubr.bf16.mxu0 0
      %1068 = vmatmul.mubr.bf16.gmra.mrb[0].mxu0 %v965
      %v1069 = vpop.f32.mrb[0].mxu0
      %v1070 = vadd.f32 %v778, %v1069
      %v1071 = vpop.f32.mrb[0].mxu0
      %v1072 = vpop.f32.mrb[0].mxu0
      %v1073 = vadd.f32 %v781, %v1072
      %v1074 = vpop.f32.mrb[0].mxu0
      %1075 = vmatprep.mubr.bf16.mxu0 0
      %1076 = vmatmul.mubr.bf16.gmra.mrb[0].mxu0 %v968
      %v1077 = vpop.f32.mrb[0].mxu0
      %v1078 = vadd.f32 %v786, %v1077
      %v1079 = vpop.f32.mrb[0].mxu0
      %v1080 = vpop.f32.mrb[0].mxu0
      %v1081 = vadd.f32 %v789, %v1080
      %v1082 = vpop.f32.mrb[0].mxu0
      %1083 = vmatprep.mubr.bf16.mxu0 0
      %1084 = vmatmul.mubr.bf16.gmra.mrb[0].mxu0 %v971
      %v1085 = vpop.f32.mrb[0].mxu0
      %v1086 = vadd.f32 %v794, %v1085
      %v1087 = vpop.f32.mrb[0].mxu0
      %v1088 = vpop.f32.mrb[0].mxu0
      %v1089 = vadd.f32 %v797, %v1088
      %v1090 = vpop.f32.mrb[0].mxu0
      %1091 = vmatprep.mubr.bf16.mxu0 0
      %1092 = vmatmul.mubr.bf16.gmra.mrb[0].mxu0 %v974
      %v1093 = vpop.f32.mrb[0].mxu0
      %v1094 = vadd.f32 %v802, %v1093
      %v1095 = vpop.f32.mrb[0].mxu0
      %v1096 = vpop.f32.mrb[0].mxu0
      %v1097 = vadd.f32 %v805, %v1096
      %v1098 = vpop.f32.mrb[0].mxu0
      %1099 = vmatprep.mubr.bf16.mxu0 0
      %1100 = vmatmul.mubr.bf16.gmra.mrb[0].mxu0 %v977
      %v1101 = vpop.f32.mrb[0].mxu0
      %v1102 = vadd.f32 %v810, %v1101
      %v1103 = vpop.f32.mrb[0].mxu0
      %v1104 = vpop.f32.mrb[0].mxu0
      %v1105 = vadd.f32 %v813, %v1104
      %v1106 = vpop.f32.mrb[0].mxu0
      %1107 = vmatprep.mubr.bf16.mxu0 0
      %1108 = vmatmul.mubr.bf16.gmra.mrb[0].mxu0 %v980
      %v1109 = vpop.f32.mrb[0].mxu0
      %v1110 = vadd.f32 %v818, %v1109
      %v1111 = vpop.f32.mrb[0].mxu0
      %v1112 = vpop.f32.mrb[0].mxu0
      %v1113 = vadd.f32 %v821, %v1112
      %v1114 = vpop.f32.mrb[0].mxu0
      %1115 = vmatprep.mubr.bf16.mxu0 0
      %1116 = vmatmul.mubr.bf16.gmra.mrb[0].mxu0 %v983
      %v1117 = vpop.f32.mrb[0].mxu0
      %v1118 = vadd.f32 %v826, %v1117
      %v1119 = vpop.f32.mrb[0].mxu0
      %v1120 = vpop.f32.mrb[0].mxu0
      %v1121 = vadd.f32 %v829, %v1120
      %v1122 = vpop.f32.mrb[0].mxu0
      %1123 = vmatprep.mubr.bf16.mxu0 0
      %1124 = vmatmul.mubr.bf16.gmra.mrb[0].mxu0 %v986
      %v1125 = vpop.f32.mrb[0].mxu0
      %v1126 = vadd.f32 %v834, %v1125
      %v1127 = vpop.f32.mrb[0].mxu0
      %v1128 = vpop.f32.mrb[0].mxu0
      %v1129 = vadd.f32 %v837, %v1128
      %v1130 = vpop.f32.mrb[0].mxu0
      %1131 = vmatprep.mubr.bf16.mxu0 0
      %1132 = vmatmul.mubr.bf16.gmra.mrb[0].mxu0 %v989
      %v1133 = vpop.f32.mrb[0].mxu0
      %v1134 = vadd.f32 %v842, %v1133
      %v1135 = vpop.f32.mrb[0].mxu0
      %v1136 = vpop.f32.mrb[0].mxu0
      %v1137 = vadd.f32 %v845, %v1136
      %v1138 = vpop.f32.mrb[0].mxu0
      %1139 = vmatprep.mubr.bf16.mxu0 0
      %1140 = vmatmul.mubr.bf16.gmra.mrb[0].mxu0 %v992
      %v1141 = vpop.f32.mrb[0].mxu0
      %v1142 = vadd.f32 %v850, %v1141
      %v1143 = vpop.f32.mrb[0].mxu0
      %v1144 = vpop.f32.mrb[0].mxu0
      %v1145 = vadd.f32 %v853, %v1144
      %v1146 = vpop.f32.mrb[0].mxu0
      %1147 = vmatprep.mubr.bf16.mxu0 0
      %1148 = vmatmul.mubr.bf16.gmra.mrb[0].mxu0 %v995
      %v1149 = vpop.f32.mrb[0].mxu0
      %v1150 = vadd.f32 %v858, %v1149
      %v1151 = vpop.f32.mrb[0].mxu0
      %v1152 = vpop.f32.mrb[0].mxu0
      %v1153 = vadd.f32 %v861, %v1152
      %v1154 = vpop.f32.mrb[0].mxu0
      %1155 = vmatprep.mubr.bf16.mxu0 0
      %1156 = vmatmul.mubr.bf16.gmra.mrb[0].mxu0 %v998
      %v1157 = vpop.f32.mrb[0].mxu0
      %v1158 = vadd.f32 %v866, %v1157
      %v1159 = vpop.f32.mrb[0].mxu0
      %v1160 = vpop.f32.mrb[0].mxu0
      %v1161 = vadd.f32 %v869, %v1160
      %v1162 = vpop.f32.mrb[0].mxu0
      %1163 = vdwg.mxu0
      %vm1180 = vcmask 1042432
      %vm1181 = vcmask 1046532
      %vm1182 = vmor %vm1180, %vm1181
      %v1183 = vrot.slane %v172, 5
      %v1184 = vrot.slane %v1183, 4
      %v1185 = vrot.slane %v173, 5
      %v1186 = vsel %vm1182, %v1184, %v1185
      %v1187 = vrot.slane %v1185, 4
      %v1188 = vrot.slane %v174, 5
      %v1189 = vsel %vm1182, %v1187, %v1188
      %v1190 = vrot.slane %v175, 5
      %v1191 = vrot.slane %v1190, 4
      %v1192 = vrot.slane %v176, 5
      %v1193 = vsel %vm1182, %v1191, %v1192
      %v1194 = vrot.slane %v1192, 4
      %v1195 = vrot.slane %v177, 5
      %v1196 = vsel %vm1182, %v1194, %v1195
      %v1197 = vrot.slane %v178, 5
      %v1198 = vrot.slane %v1197, 4
      %v1199 = vrot.slane %v179, 5
      %v1200 = vsel %vm1182, %v1198, %v1199
      %v1201 = vrot.slane %v1199, 4
      %v1202 = vrot.slane %v180, 5
      %v1203 = vsel %vm1182, %v1201, %v1202
      %v1204 = vrot.slane %v181, 5
      %v1205 = vrot.slane %v1204, 4
      %v1206 = vrot.slane %v182, 5
      %v1207 = vsel %vm1182, %v1205, %v1206
      %v1208 = vrot.slane %v1206, 4
      %v1209 = vrot.slane %v183, 5
      %v1210 = vsel %vm1182, %v1208, %v1209
      %v1211 = vrot.slane %v184, 5
      %v1212 = vrot.slane %v1211, 4
      %v1213 = vrot.slane %v185, 5
      %v1214 = vsel %vm1182, %v1212, %v1213
      %v1215 = vrot.slane %v1213, 4
      %v1216 = vrot.slane %v186, 5
      %v1217 = vsel %vm1182, %v1215, %v1216
      %v1218 = vrot.slane %v187, 5
      %v1219 = vrot.slane %v1218, 4
      %v1220 = vrot.slane %v188, 5
      %v1221 = vsel %vm1182, %v1219, %v1220
      %v1222 = vrot.slane %v1220, 4
      %v1223 = vrot.slane %v189, 5
      %v1224 = vsel %vm1182, %v1222, %v1223
      %v1225 = vrot.slane %v190, 5
      %v1226 = vrot.slane %v1225, 4
      %v1227 = vrot.slane %v191, 5
      %v1228 = vsel %vm1182, %v1226, %v1227
      %v1229 = vrot.slane %v1227, 4
      %v1230 = vrot.slane %v192, 5
      %v1231 = vsel %vm1182, %v1229, %v1230
      %v1232 = vrot.slane %v193, 5
      %v1233 = vrot.slane %v1232, 4
      %v1234 = vrot.slane %v194, 5
      %v1235 = vsel %vm1182, %v1233, %v1234
      %v1236 = vrot.slane %v1234, 4
      %v1237 = vrot.slane %v195, 5
      %v1238 = vsel %vm1182, %v1236, %v1237
      %v1239 = vrot.slane %v196, 5
      %v1240 = vrot.slane %v1239, 4
      %v1241 = vrot.slane %v197, 5
      %v1242 = vsel %vm1182, %v1240, %v1241
      %v1243 = vrot.slane %v1241, 4
      %v1244 = vrot.slane %v198, 5
      %v1245 = vsel %vm1182, %v1243, %v1244
      %v1246 = vrot.slane %v199, 5
      %v1247 = vrot.slane %v1246, 4
      %v1248 = vrot.slane %v200, 5
      %v1249 = vsel %vm1182, %v1247, %v1248
      %v1250 = vrot.slane %v1248, 4
      %v1251 = vrot.slane %v201, 5
      %v1252 = vsel %vm1182, %v1250, %v1251
      %v1253 = vrot.slane %v202, 5
      %v1254 = vrot.slane %v1253, 4
      %v1255 = vrot.slane %v203, 5
      %v1256 = vsel %vm1182, %v1254, %v1255
      %v1257 = vrot.slane %v1255, 4
      %v1258 = vrot.slane %v204, 5
      %v1259 = vsel %vm1182, %v1257, %v1258
      %v1260 = vrot.slane %v205, 5
      %v1261 = vrot.slane %v1260, 4
      %v1262 = vrot.slane %v206, 5
      %v1263 = vsel %vm1182, %v1261, %v1262
      %v1264 = vrot.slane %v1262, 4
      %v1265 = vrot.slane %v207, 5
      %v1266 = vsel %vm1182, %v1264, %v1265
      %v1267 = vrot.slane %v208, 5
      %v1268 = vrot.slane %v1267, 4
      %v1269 = vrot.slane %v209, 5
      %v1270 = vsel %vm1182, %v1268, %v1269
      %v1271 = vrot.slane %v1269, 4
      %v1272 = vrot.slane %v210, 5
      %v1273 = vsel %vm1182, %v1271, %v1272
      %v1274 = vrot.slane %v211, 5
      %v1275 = vrot.slane %v1274, 4
      %v1276 = vrot.slane %v212, 5
      %v1277 = vsel %vm1182, %v1275, %v1276
      %v1278 = vrot.slane %v1276, 4
      %v1279 = vrot.slane %v213, 5
      %v1280 = vsel %vm1182, %v1278, %v1279
      %v1281 = vrot.slane %v214, 5
      %v1282 = vrot.slane %v1281, 4
      %v1283 = vrot.slane %v215, 5
      %v1284 = vsel %vm1182, %v1282, %v1283
      %v1285 = vrot.slane %v1283, 4
      %v1286 = vrot.slane %v216, 5
      %v1287 = vsel %vm1182, %v1285, %v1286
      %v1288 = vrot.slane %v217, 5
      %v1289 = vrot.slane %v1288, 4
      %v1290 = vrot.slane %v218, 5
      %v1291 = vsel %vm1182, %v1289, %v1290
      %v1292 = vrot.slane %v1290, 4
      %v1293 = vrot.slane %v219, 5
      %v1294 = vsel %vm1182, %v1292, %v1293
      %s1295 = scalar_lea.vmem %s1, 4
      %v1296 = vld [vmem:[%s1295] sm:$0x3]
      %v1297 = vunpack.c.l.b16 %v1186
      %v1298 = vunpack.c.l.b16 %v1189
      %v1299 = vunpack.c.l.b16 %v1193
      %v1300 = vunpack.c.l.b16 %v1196
      %v1301 = vunpack.c.l.b16 %v1200
      %v1302 = vunpack.c.l.b16 %v1203
      %v1303 = vunpack.c.l.b16 %v1207
      %v1304 = vunpack.c.l.b16 %v1210
      %v1305 = vunpack.c.l.b16 %v1214
      %v1306 = vunpack.c.l.b16 %v1217
      %v1307 = vunpack.c.l.b16 %v1221
      %v1308 = vunpack.c.l.b16 %v1224
      %v1309 = vunpack.c.l.b16 %v1228
      %v1310 = vunpack.c.l.b16 %v1231
      %v1311 = vunpack.c.l.b16 %v1235
      %v1312 = vunpack.c.l.b16 %v1238
      %v1313 = vunpack.c.l.b16 %v1242
      %v1314 = vunpack.c.l.b16 %v1245
      %v1315 = vunpack.c.l.b16 %v1249
      %v1316 = vunpack.c.l.b16 %v1252
      %v1317 = vunpack.c.l.b16 %v1256
      %v1318 = vunpack.c.l.b16 %v1259
      %v1319 = vunpack.c.l.b16 %v1263
      %v1320 = vunpack.c.l.b16 %v1266
      %v1321 = vunpack.c.l.b16 %v1270
      %v1322 = vunpack.c.l.b16 %v1273
      %v1323 = vunpack.c.l.b16 %v1277
      %v1324 = vunpack.c.l.b16 %v1280
      %v1325 = vunpack.c.l.b16 %v1284
      %v1326 = vunpack.c.l.b16 %v1287
      %v1327 = vunpack.c.l.b16 %v1291
      %v1328 = vunpack.c.l.b16 %v1294
      %v1329 = vpack.c.b16 %v1298, %v1297
      %v1330 = vpack.c.b16 %v1300, %v1299
      %v1331 = vpack.c.b16 %v1302, %v1301
      %v1332 = vpack.c.b16 %v1304, %v1303
      %v1333 = vpack.c.b16 %v1306, %v1305
      %v1334 = vpack.c.b16 %v1308, %v1307
      %v1335 = vpack.c.b16 %v1310, %v1309
      %v1336 = vpack.c.b16 %v1312, %v1311
      %v1337 = vpack.c.b16 %v1314, %v1313
      %v1338 = vpack.c.b16 %v1316, %v1315
      %v1339 = vpack.c.b16 %v1318, %v1317
      %v1340 = vpack.c.b16 %v1320, %v1319
      %v1341 = vpack.c.b16 %v1322, %v1321
      %v1342 = vpack.c.b16 %v1324, %v1323
      %v1343 = vpack.c.b16 %v1326, %v1325
      %v1344 = vpack.c.b16 %v1328, %v1327
      %v1346 = vsel %vm658, %v1329, 0
      %v1349 = vsel %vm658, %v1330, 0
      %v1352 = vsel %vm658, %v1331, 0
      %v1355 = vsel %vm658, %v1332, 0
      %v1358 = vsel %vm658, %v1333, 0
      %v1361 = vsel %vm658, %v1334, 0
      %v1364 = vsel %vm658, %v1335, 0
      %v1367 = vsel %vm658, %v1336, 0
      %v1370 = vsel %vm658, %v1337, 0
      %v1373 = vsel %vm658, %v1338, 0
      %v1376 = vsel %vm658, %v1339, 0
      %v1379 = vsel %vm658, %v1340, 0
      %v1382 = vsel %vm658, %v1341, 0
      %v1385 = vsel %vm658, %v1342, 0
      %v1388 = vsel %vm658, %v1343, 0
      %v1391 = vsel %vm658, %v1344, 0
      %v1394 = vsel %vm707, %v1296, 0
      %1396 = vmatprep.subr.bf16.mxu0 0
      %1397 = vmatpush1.bf16.msra.mxu0 %v1394
      %1398 = vmatprep.subr.bf16.mxu0 0
      %1399 = vmatpush1.bf16.msra.mxu0 0
      %1400 = vmatprep.subr.bf16.mxu0 0
      %1401 = vmatpush1.bf16.msra.mxu0 0
      %1402 = vmatprep.subr.bf16.mxu0 0
      %1403 = vmatpush1.bf16.msra.mxu0 0
      %1404 = vmatprep.subr.bf16.mxu0 0
      %1405 = vmatpush1.bf16.msra.mxu0 0
      %1406 = vmatprep.subr.bf16.mxu0 0
      %1407 = vmatpush1.bf16.msra.mxu0 0
      %1408 = vmatprep.subr.bf16.mxu0 0
      %1409 = vmatpush1.bf16.msra.mxu0 0
      %1410 = vmatprep.subr.bf16.mxu0 0
      %1411 = vmatpush1.bf16.msra.mxu0 0
      %1412 = vmatprep.subr.bf16.mxu0 0
      %1413 = vmatpush1.bf16.msra.mxu0 0
      %1414 = vmatprep.subr.bf16.mxu0 0
      %1415 = vmatpush1.bf16.msra.mxu0 0
      %1416 = vmatprep.subr.bf16.mxu0 0
      %1417 = vmatpush1.bf16.msra.mxu0 0
      %1418 = vmatprep.subr.bf16.mxu0 0
      %1419 = vmatpush1.bf16.msra.mxu0 0
      %1420 = vmatprep.subr.bf16.mxu0 0
      %1421 = vmatpush1.bf16.msra.mxu0 0
      %1422 = vmatprep.subr.bf16.mxu0 0
      %1423 = vmatpush1.bf16.msra.mxu0 0
      %1424 = vmatprep.subr.bf16.mxu0 0
      %1425 = vmatpush1.bf16.msra.mxu0 0
      %1426 = vmatprep.subr.bf16.mxu0 0
      %1427 = vmatpush1.bf16.msra.mxu0 0
      %1428 = vmatprep.mubr.bf16.mxu0 0
      %1429 = vmatmul.mubr.bf16.gmra.mrb[0].mxu0 %v1346
      %v1430 = vpop.f32.mrb[0].mxu0
      %v1431 = vadd.f32 0.0, %v1430
      %v1432 = vpop.f32.mrb[0].mxu0
      %v1433 = vpop.f32.mrb[0].mxu0
      %v1434 = vadd.f32 0.0, %v1433
      %v1435 = vpop.f32.mrb[0].mxu0
      %1436 = vmatprep.mubr.bf16.mxu0 0
      %1437 = vmatmul.mubr.bf16.gmra.mrb[0].mxu0 %v1349
      %v1438 = vpop.f32.mrb[0].mxu0
      %v1439 = vadd.f32 0.0, %v1438
      %v1440 = vpop.f32.mrb[0].mxu0
      %v1441 = vpop.f32.mrb[0].mxu0
      %v1442 = vadd.f32 0.0, %v1441
      %v1443 = vpop.f32.mrb[0].mxu0
      %1444 = vmatprep.mubr.bf16.mxu0 0
      %1445 = vmatmul.mubr.bf16.gmra.mrb[0].mxu0 %v1352
      %v1446 = vpop.f32.mrb[0].mxu0
      %v1447 = vadd.f32 0.0, %v1446
      %v1448 = vpop.f32.mrb[0].mxu0
      %v1449 = vpop.f32.mrb[0].mxu0
      %v1450 = vadd.f32 0.0, %v1449
      %v1451 = vpop.f32.mrb[0].mxu0
      %1452 = vmatprep.mubr.bf16.mxu0 0
      %1453 = vmatmul.mubr.bf16.gmra.mrb[0].mxu0 %v1355
      %v1454 = vpop.f32.mrb[0].mxu0
      %v1455 = vadd.f32 0.0, %v1454
      %v1456 = vpop.f32.mrb[0].mxu0
      %v1457 = vpop.f32.mrb[0].mxu0
      %v1458 = vadd.f32 0.0, %v1457
      %v1459 = vpop.f32.mrb[0].mxu0
      %1460 = vmatprep.mubr.bf16.mxu0 0
      %1461 = vmatmul.mubr.bf16.gmra.mrb[0].mxu0 %v1358
      %v1462 = vpop.f32.mrb[0].mxu0
      %v1463 = vadd.f32 0.0, %v1462
      %v1464 = vpop.f32.mrb[0].mxu0
      %v1465 = vpop.f32.mrb[0].mxu0
      %v1466 = vadd.f32 0.0, %v1465
      %v1467 = vpop.f32.mrb[0].mxu0
      %1468 = vmatprep.mubr.bf16.mxu0 0
      %1469 = vmatmul.mubr.bf16.gmra.mrb[0].mxu0 %v1361
      %v1470 = vpop.f32.mrb[0].mxu0
      %v1471 = vadd.f32 0.0, %v1470
      %v1472 = vpop.f32.mrb[0].mxu0
      %v1473 = vpop.f32.mrb[0].mxu0
      %v1474 = vadd.f32 0.0, %v1473
      %v1475 = vpop.f32.mrb[0].mxu0
      %1476 = vmatprep.mubr.bf16.mxu0 0
      %1477 = vmatmul.mubr.bf16.gmra.mrb[0].mxu0 %v1364
      %v1478 = vpop.f32.mrb[0].mxu0
      %v1479 = vadd.f32 0.0, %v1478
      %v1480 = vpop.f32.mrb[0].mxu0
      %v1481 = vpop.f32.mrb[0].mxu0
      %v1482 = vadd.f32 0.0, %v1481
      %v1483 = vpop.f32.mrb[0].mxu0
      %1484 = vmatprep.mubr.bf16.mxu0 0
      %1485 = vmatmul.mubr.bf16.gmra.mrb[0].mxu0 %v1367
      %v1486 = vpop.f32.mrb[0].mxu0
      %v1487 = vadd.f32 0.0, %v1486
      %v1488 = vpop.f32.mrb[0].mxu0
      %v1489 = vpop.f32.mrb[0].mxu0
      %v1490 = vadd.f32 0.0, %v1489
      %v1491 = vpop.f32.mrb[0].mxu0
      %1492 = vmatprep.mubr.bf16.mxu0 0
      %1493 = vmatmul.mubr.bf16.gmra.mrb[0].mxu0 %v1370
      %v1494 = vpop.f32.mrb[0].mxu0
      %v1495 = vadd.f32 0.0, %v1494
      %v1496 = vpop.f32.mrb[0].mxu0
      %v1497 = vpop.f32.mrb[0].mxu0
      %v1498 = vadd.f32 0.0, %v1497
      %v1499 = vpop.f32.mrb[0].mxu0
      %1500 = vmatprep.mubr.bf16.mxu0 0
      %1501 = vmatmul.mubr.bf16.gmra.mrb[0].mxu0 %v1373
      %v1502 = vpop.f32.mrb[0].mxu0
      %v1503 = vadd.f32 0.0, %v1502
      %v1504 = vpop.f32.mrb[0].mxu0
      %v1505 = vpop.f32.mrb[0].mxu0
      %v1506 = vadd.f32 0.0, %v1505
      %v1507 = vpop.f32.mrb[0].mxu0
      %1508 = vmatprep.mubr.bf16.mxu0 0
      %1509 = vmatmul.mubr.bf16.gmra.mrb[0].mxu0 %v1376
      %v1510 = vpop.f32.mrb[0].mxu0
      %v1511 = vadd.f32 0.0, %v1510
      %v1512 = vpop.f32.mrb[0].mxu0
      %v1513 = vpop.f32.mrb[0].mxu0
      %v1514 = vadd.f32 0.0, %v1513
      %v1515 = vpop.f32.mrb[0].mxu0
      %1516 = vmatprep.mubr.bf16.mxu0 0
      %1517 = vmatmul.mubr.bf16.gmra.mrb[0].mxu0 %v1379
      %v1518 = vpop.f32.mrb[0].mxu0
      %v1519 = vadd.f32 0.0, %v1518
      %v1520 = vpop.f32.mrb[0].mxu0
      %v1521 = vpop.f32.mrb[0].mxu0
      %v1522 = vadd.f32 0.0, %v1521
      %v1523 = vpop.f32.mrb[0].mxu0
      %1524 = vmatprep.mubr.bf16.mxu0 0
      %1525 = vmatmul.mubr.bf16.gmra.mrb[0].mxu0 %v1382
      %v1526 = vpop.f32.mrb[0].mxu0
      %v1527 = vadd.f32 0.0, %v1526
      %v1528 = vpop.f32.mrb[0].mxu0
      %v1529 = vpop.f32.mrb[0].mxu0
      %v1530 = vadd.f32 0.0, %v1529
      %v1531 = vpop.f32.mrb[0].mxu0
      %1532 = vmatprep.mubr.bf16.mxu0 0
      %1533 = vmatmul.mubr.bf16.gmra.mrb[0].mxu0 %v1385
      %v1534 = vpop.f32.mrb[0].mxu0
      %v1535 = vadd.f32 0.0, %v1534
      %v1536 = vpop.f32.mrb[0].mxu0
      %v1537 = vpop.f32.mrb[0].mxu0
      %v1538 = vadd.f32 0.0, %v1537
      %v1539 = vpop.f32.mrb[0].mxu0
      %1540 = vmatprep.mubr.bf16.mxu0 0
      %1541 = vmatmul.mubr.bf16.gmra.mrb[0].mxu0 %v1388
      %v1542 = vpop.f32.mrb[0].mxu0
      %v1543 = vadd.f32 0.0, %v1542
      %v1544 = vpop.f32.mrb[0].mxu0
      %v1545 = vpop.f32.mrb[0].mxu0
      %v1546 = vadd.f32 0.0, %v1545
      %v1547 = vpop.f32.mrb[0].mxu0
      %1548 = vmatprep.mubr.bf16.mxu0 0
      %1549 = vmatmul.mubr.bf16.gmra.mrb[0].mxu0 %v1391
      %v1550 = vpop.f32.mrb[0].mxu0
      %v1551 = vadd.f32 0.0, %v1550
      %v1552 = vpop.f32.mrb[0].mxu0
      %v1553 = vpop.f32.mrb[0].mxu0
      %v1554 = vadd.f32 0.0, %v1553
      %v1555 = vpop.f32.mrb[0].mxu0
      %1556 = vdwg.mxu0
      %v1557 = vadd.f32 %v1038, %v1431
      %v1558 = vadd.f32 %v1041, %v1434
      %v1559 = vadd.f32 %v1046, %v1439
      %v1560 = vadd.f32 %v1049, %v1442
      %v1561 = vadd.f32 %v1054, %v1447
      %v1562 = vadd.f32 %v1057, %v1450
      %v1563 = vadd.f32 %v1062, %v1455
      %v1564 = vadd.f32 %v1065, %v1458
      %v1565 = vadd.f32 %v1070, %v1463
      %v1566 = vadd.f32 %v1073, %v1466
      %v1567 = vadd.f32 %v1078, %v1471
      %v1568 = vadd.f32 %v1081, %v1474
      %v1569 = vadd.f32 %v1086, %v1479
      %v1570 = vadd.f32 %v1089, %v1482
      %v1571 = vadd.f32 %v1094, %v1487
      %v1572 = vadd.f32 %v1097, %v1490
      %v1573 = vadd.f32 %v1102, %v1495
      %v1574 = vadd.f32 %v1105, %v1498
      %v1575 = vadd.f32 %v1110, %v1503
      %v1576 = vadd.f32 %v1113, %v1506
      %v1577 = vadd.f32 %v1118, %v1511
      %v1578 = vadd.f32 %v1121, %v1514
      %v1579 = vadd.f32 %v1126, %v1519
      %v1580 = vadd.f32 %v1129, %v1522
      %v1581 = vadd.f32 %v1134, %v1527
      %v1582 = vadd.f32 %v1137, %v1530
      %v1583 = vadd.f32 %v1142, %v1535
      %v1584 = vadd.f32 %v1145, %v1538
      %v1585 = vadd.f32 %v1150, %v1543
      %v1586 = vadd.f32 %v1153, %v1546
      %v1587 = vadd.f32 %v1158, %v1551
      %v1588 = vadd.f32 %v1161, %v1554
      %s1589 = sadd.s32 %s168, 1
      %s1590 = smul.u32 %s1589, 3
      %s1591 = smul.addr %s1590, 4
      %s1592 = scalar_lea.vmem %s156, %s1591
      %v1593 = vld [vmem:[%s1592] sm:$0xf]
      %v1594 = vld [vmem:[%s1592 + $0x4] sm:$0xf]
      %v1595 = vld [vmem:[%s1592 + $0x8] sm:$0x1]
      %v1596 = vld [vmem:[%s1592 + $0xc] sm:$0xf]
      %v1597 = vld [vmem:[%s1592 + $0x10] sm:$0xf]
      %v1598 = vld [vmem:[%s1592 + $0x14] sm:$0x1]
      %v1599 = vld [vmem:[%s1592 + $0x18] sm:$0xf]
      %v1600 = vld [vmem:[%s1592 + $0x1c] sm:$0xf]
      %v1601 = vld [vmem:[%s1592 + $0x20] sm:$0x1]
      %v1602 = vld [vmem:[%s1592 + $0x24] sm:$0xf]
      %v1603 = vld [vmem:[%s1592 + $0x28] sm:$0xf]
      %v1604 = vld [vmem:[%s1592 + $0x2c] sm:$0x1]
      %v1605 = vld [vmem:[%s1592 + $0x30] sm:$0xf]
      %v1606 = vld [vmem:[%s1592 + $0x34] sm:$0xf]
      %v1607 = vld [vmem:[%s1592 + $0x38] sm:$0x1]
      %v1608 = vld [vmem:[%s1592 + $0x3c] sm:$0xf]
      %v1609 = vld [vmem:[%s1592 + $0x40] sm:$0xf]
      %v1610 = vld [vmem:[%s1592 + $0x44] sm:$0x1]
      %v1611 = vld [vmem:[%s1592 + $0x48] sm:$0xf]
      %v1612 = vld [vmem:[%s1592 + $0x4c] sm:$0xf]
      %v1613 = vld [vmem:[%s1592 + $0x50] sm:$0x1]
      %v1614 = vld [vmem:[%s1592 + $0x54] sm:$0xf]
      %v1615 = vld [vmem:[%s1592 + $0x58] sm:$0xf]
      %v1616 = vld [vmem:[%s1592 + $0x5c] sm:$0x1]
      %v1617 = vld [vmem:[%s1592 + $0x60] sm:$0xf]
      %v1618 = vld [vmem:[%s1592 + $0x64] sm:$0xf]
      %v1619 = vld [vmem:[%s1592 + $0x68] sm:$0x1]
      %v1620 = vld [vmem:[%s1592 + $0x6c] sm:$0xf]
      %v1621 = vld [vmem:[%s1592 + $0x70] sm:$0xf]
      %v1622 = vld [vmem:[%s1592 + $0x74] sm:$0x1]
      %v1623 = vld [vmem:[%s1592 + $0x78] sm:$0xf]
      %v1624 = vld [vmem:[%s1592 + $0x7c] sm:$0xf]
      %v1625 = vld [vmem:[%s1592 + $0x80] sm:$0x1]
      %v1626 = vld [vmem:[%s1592 + $0x84] sm:$0xf]
      %v1627 = vld [vmem:[%s1592 + $0x88] sm:$0xf]
      %v1628 = vld [vmem:[%s1592 + $0x8c] sm:$0x1]
      %v1629 = vld [vmem:[%s1592 + $0x90] sm:$0xf]
      %v1630 = vld [vmem:[%s1592 + $0x94] sm:$0xf]
      %v1631 = vld [vmem:[%s1592 + $0x98] sm:$0x1]
      %v1632 = vld [vmem:[%s1592 + $0x9c] sm:$0xf]
      %v1633 = vld [vmem:[%s1592 + $0xa0] sm:$0xf]
      %v1634 = vld [vmem:[%s1592 + $0xa4] sm:$0x1]
      %v1635 = vld [vmem:[%s1592 + $0xa8] sm:$0xf]
      %v1636 = vld [vmem:[%s1592 + $0xac] sm:$0xf]
      %v1637 = vld [vmem:[%s1592 + $0xb0] sm:$0x1]
      %v1638 = vld [vmem:[%s1592 + $0xb4] sm:$0xf]
      %v1639 = vld [vmem:[%s1592 + $0xb8] sm:$0xf]
      %v1640 = vld [vmem:[%s1592 + $0xbc] sm:$0x1]
      %s1641 = scalar_lea.vmem %s1, 6
      %v1642 = vld [vmem:[%s1641] sm:$0x3]
      %v1675 = vunpack.c.l.b16 %v1593
      %v1676 = vunpack.c.l.b16 %v1594
      %v1677 = vunpack.c.l.b16 %v1596
      %v1678 = vunpack.c.l.b16 %v1597
      %v1679 = vunpack.c.l.b16 %v1599
      %v1680 = vunpack.c.l.b16 %v1600
      %v1681 = vunpack.c.l.b16 %v1602
      %v1682 = vunpack.c.l.b16 %v1603
      %v1683 = vunpack.c.l.b16 %v1605
      %v1684 = vunpack.c.l.b16 %v1606
      %v1685 = vunpack.c.l.b16 %v1608
      %v1686 = vunpack.c.l.b16 %v1609
      %v1687 = vunpack.c.l.b16 %v1611
      %v1688 = vunpack.c.l.b16 %v1612
      %v1689 = vunpack.c.l.b16 %v1614
      %v1690 = vunpack.c.l.b16 %v1615
      %v1691 = vunpack.c.l.b16 %v1617
      %v1692 = vunpack.c.l.b16 %v1618
      %v1693 = vunpack.c.l.b16 %v1620
      %v1694 = vunpack.c.l.b16 %v1621
      %v1695 = vunpack.c.l.b16 %v1623
      %v1696 = vunpack.c.l.b16 %v1624
      %v1697 = vunpack.c.l.b16 %v1626
      %v1698 = vunpack.c.l.b16 %v1627
      %v1699 = vunpack.c.l.b16 %v1629
      %v1700 = vunpack.c.l.b16 %v1630
      %v1701 = vunpack.c.l.b16 %v1632
      %v1702 = vunpack.c.l.b16 %v1633
      %v1703 = vunpack.c.l.b16 %v1635
      %v1704 = vunpack.c.l.b16 %v1636
      %v1705 = vunpack.c.l.b16 %v1638
      %v1706 = vunpack.c.l.b16 %v1639
      %v1707 = vpack.c.b16 %v1676, %v1675
      %v1708 = vpack.c.b16 %v1678, %v1677
      %v1709 = vpack.c.b16 %v1680, %v1679
      %v1710 = vpack.c.b16 %v1682, %v1681
      %v1711 = vpack.c.b16 %v1684, %v1683
      %v1712 = vpack.c.b16 %v1686, %v1685
      %v1713 = vpack.c.b16 %v1688, %v1687
      %v1714 = vpack.c.b16 %v1690, %v1689
      %v1715 = vpack.c.b16 %v1692, %v1691
      %v1716 = vpack.c.b16 %v1694, %v1693
      %v1717 = vpack.c.b16 %v1696, %v1695
      %v1718 = vpack.c.b16 %v1698, %v1697
      %v1719 = vpack.c.b16 %v1700, %v1699
      %v1720 = vpack.c.b16 %v1702, %v1701
      %v1721 = vpack.c.b16 %v1704, %v1703
      %v1722 = vpack.c.b16 %v1706, %v1705
      %v1724 = vsel %vm658, %v1707, 0
      %v1727 = vsel %vm658, %v1708, 0
      %v1730 = vsel %vm658, %v1709, 0
      %v1733 = vsel %vm658, %v1710, 0
      %v1736 = vsel %vm658, %v1711, 0
      %v1739 = vsel %vm658, %v1712, 0
      %v1742 = vsel %vm658, %v1713, 0
      %v1745 = vsel %vm658, %v1714, 0
      %v1748 = vsel %vm658, %v1715, 0
      %v1751 = vsel %vm658, %v1716, 0
      %v1754 = vsel %vm658, %v1717, 0
      %v1757 = vsel %vm658, %v1718, 0
      %v1760 = vsel %vm658, %v1719, 0
      %v1763 = vsel %vm658, %v1720, 0
      %v1766 = vsel %vm658, %v1721, 0
      %v1769 = vsel %vm658, %v1722, 0
      %v1772 = vsel %vm707, %v1642, 0
      %1774 = vmatprep.subr.bf16.mxu0 0
      %1775 = vmatpush1.bf16.msra.mxu0 %v1772
      %1776 = vmatprep.subr.bf16.mxu0 0
      %1777 = vmatpush1.bf16.msra.mxu0 0
      %1778 = vmatprep.subr.bf16.mxu0 0
      %1779 = vmatpush1.bf16.msra.mxu0 0
      %1780 = vmatprep.subr.bf16.mxu0 0
      %1781 = vmatpush1.bf16.msra.mxu0 0
      %1782 = vmatprep.subr.bf16.mxu0 0
      %1783 = vmatpush1.bf16.msra.mxu0 0
      %1784 = vmatprep.subr.bf16.mxu0 0
      %1785 = vmatpush1.bf16.msra.mxu0 0
      %1786 = vmatprep.subr.bf16.mxu0 0
      %1787 = vmatpush1.bf16.msra.mxu0 0
      %1788 = vmatprep.subr.bf16.mxu0 0
      %1789 = vmatpush1.bf16.msra.mxu0 0
      %1790 = vmatprep.subr.bf16.mxu0 0
      %1791 = vmatpush1.bf16.msra.mxu0 0
      %1792 = vmatprep.subr.bf16.mxu0 0
      %1793 = vmatpush1.bf16.msra.mxu0 0
      %1794 = vmatprep.subr.bf16.mxu0 0
      %1795 = vmatpush1.bf16.msra.mxu0 0
      %1796 = vmatprep.subr.bf16.mxu0 0
      %1797 = vmatpush1.bf16.msra.mxu0 0
      %1798 = vmatprep.subr.bf16.mxu0 0
      %1799 = vmatpush1.bf16.msra.mxu0 0
      %1800 = vmatprep.subr.bf16.mxu0 0
      %1801 = vmatpush1.bf16.msra.mxu0 0
      %1802 = vmatprep.subr.bf16.mxu0 0
      %1803 = vmatpush1.bf16.msra.mxu0 0
      %1804 = vmatprep.subr.bf16.mxu0 0
      %1805 = vmatpush1.bf16.msra.mxu0 0
      %1806 = vmatprep.mubr.bf16.mxu0 0
      %1807 = vmatmul.mubr.bf16.gmra.mrb[0].mxu0 %v1724
      %v1808 = vpop.f32.mrb[0].mxu0
      %v1809 = vadd.f32 0.0, %v1808
      %v1810 = vpop.f32.mrb[0].mxu0
      %v1811 = vpop.f32.mrb[0].mxu0
      %v1812 = vadd.f32 0.0, %v1811
      %v1813 = vpop.f32.mrb[0].mxu0
      %1814 = vmatprep.mubr.bf16.mxu0 0
      %1815 = vmatmul.mubr.bf16.gmra.mrb[0].mxu0 %v1727
      %v1816 = vpop.f32.mrb[0].mxu0
      %v1817 = vadd.f32 0.0, %v1816
      %v1818 = vpop.f32.mrb[0].mxu0
      %v1819 = vpop.f32.mrb[0].mxu0
      %v1820 = vadd.f32 0.0, %v1819
      %v1821 = vpop.f32.mrb[0].mxu0
      %1822 = vmatprep.mubr.bf16.mxu0 0
      %1823 = vmatmul.mubr.bf16.gmra.mrb[0].mxu0 %v1730
      %v1824 = vpop.f32.mrb[0].mxu0
      %v1825 = vadd.f32 0.0, %v1824
      %v1826 = vpop.f32.mrb[0].mxu0
      %v1827 = vpop.f32.mrb[0].mxu0
      %v1828 = vadd.f32 0.0, %v1827
      %v1829 = vpop.f32.mrb[0].mxu0
      %1830 = vmatprep.mubr.bf16.mxu0 0
      %1831 = vmatmul.mubr.bf16.gmra.mrb[0].mxu0 %v1733
      %v1832 = vpop.f32.mrb[0].mxu0
      %v1833 = vadd.f32 0.0, %v1832
      %v1834 = vpop.f32.mrb[0].mxu0
      %v1835 = vpop.f32.mrb[0].mxu0
      %v1836 = vadd.f32 0.0, %v1835
      %v1837 = vpop.f32.mrb[0].mxu0
      %1838 = vmatprep.mubr.bf16.mxu0 0
      %1839 = vmatmul.mubr.bf16.gmra.mrb[0].mxu0 %v1736
      %v1840 = vpop.f32.mrb[0].mxu0
      %v1841 = vadd.f32 0.0, %v1840
      %v1842 = vpop.f32.mrb[0].mxu0
      %v1843 = vpop.f32.mrb[0].mxu0
      %v1844 = vadd.f32 0.0, %v1843
      %v1845 = vpop.f32.mrb[0].mxu0
      %1846 = vmatprep.mubr.bf16.mxu0 0
      %1847 = vmatmul.mubr.bf16.gmra.mrb[0].mxu0 %v1739
      %v1848 = vpop.f32.mrb[0].mxu0
      %v1849 = vadd.f32 0.0, %v1848
      %v1850 = vpop.f32.mrb[0].mxu0
      %v1851 = vpop.f32.mrb[0].mxu0
      %v1852 = vadd.f32 0.0, %v1851
      %v1853 = vpop.f32.mrb[0].mxu0
      %1854 = vmatprep.mubr.bf16.mxu0 0
      %1855 = vmatmul.mubr.bf16.gmra.mrb[0].mxu0 %v1742
      %v1856 = vpop.f32.mrb[0].mxu0
      %v1857 = vadd.f32 0.0, %v1856
      %v1858 = vpop.f32.mrb[0].mxu0
      %v1859 = vpop.f32.mrb[0].mxu0
      %v1860 = vadd.f32 0.0, %v1859
      %v1861 = vpop.f32.mrb[0].mxu0
      %1862 = vmatprep.mubr.bf16.mxu0 0
      %1863 = vmatmul.mubr.bf16.gmra.mrb[0].mxu0 %v1745
      %v1864 = vpop.f32.mrb[0].mxu0
      %v1865 = vadd.f32 0.0, %v1864
      %v1866 = vpop.f32.mrb[0].mxu0
      %v1867 = vpop.f32.mrb[0].mxu0
      %v1868 = vadd.f32 0.0, %v1867
      %v1869 = vpop.f32.mrb[0].mxu0
      %1870 = vmatprep.mubr.bf16.mxu0 0
      %1871 = vmatmul.mubr.bf16.gmra.mrb[0].mxu0 %v1748
      %v1872 = vpop.f32.mrb[0].mxu0
      %v1873 = vadd.f32 0.0, %v1872
      %v1874 = vpop.f32.mrb[0].mxu0
      %v1875 = vpop.f32.mrb[0].mxu0
      %v1876 = vadd.f32 0.0, %v1875
      %v1877 = vpop.f32.mrb[0].mxu0
      %1878 = vmatprep.mubr.bf16.mxu0 0
      %1879 = vmatmul.mubr.bf16.gmra.mrb[0].mxu0 %v1751
      %v1880 = vpop.f32.mrb[0].mxu0
      %v1881 = vadd.f32 0.0, %v1880
      %v1882 = vpop.f32.mrb[0].mxu0
      %v1883 = vpop.f32.mrb[0].mxu0
      %v1884 = vadd.f32 0.0, %v1883
      %v1885 = vpop.f32.mrb[0].mxu0
      %1886 = vmatprep.mubr.bf16.mxu0 0
      %1887 = vmatmul.mubr.bf16.gmra.mrb[0].mxu0 %v1754
      %v1888 = vpop.f32.mrb[0].mxu0
      %v1889 = vadd.f32 0.0, %v1888
      %v1890 = vpop.f32.mrb[0].mxu0
      %v1891 = vpop.f32.mrb[0].mxu0
      %v1892 = vadd.f32 0.0, %v1891
      %v1893 = vpop.f32.mrb[0].mxu0
      %1894 = vmatprep.mubr.bf16.mxu0 0
      %1895 = vmatmul.mubr.bf16.gmra.mrb[0].mxu0 %v1757
      %v1896 = vpop.f32.mrb[0].mxu0
      %v1897 = vadd.f32 0.0, %v1896
      %v1898 = vpop.f32.mrb[0].mxu0
      %v1899 = vpop.f32.mrb[0].mxu0
      %v1900 = vadd.f32 0.0, %v1899
      %v1901 = vpop.f32.mrb[0].mxu0
      %1902 = vmatprep.mubr.bf16.mxu0 0
      %1903 = vmatmul.mubr.bf16.gmra.mrb[0].mxu0 %v1760
      %v1904 = vpop.f32.mrb[0].mxu0
      %v1905 = vadd.f32 0.0, %v1904
      %v1906 = vpop.f32.mrb[0].mxu0
      %v1907 = vpop.f32.mrb[0].mxu0
      %v1908 = vadd.f32 0.0, %v1907
      %v1909 = vpop.f32.mrb[0].mxu0
      %1910 = vmatprep.mubr.bf16.mxu0 0
      %1911 = vmatmul.mubr.bf16.gmra.mrb[0].mxu0 %v1763
      %v1912 = vpop.f32.mrb[0].mxu0
      %v1913 = vadd.f32 0.0, %v1912
      %v1914 = vpop.f32.mrb[0].mxu0
      %v1915 = vpop.f32.mrb[0].mxu0
      %v1916 = vadd.f32 0.0, %v1915
      %v1917 = vpop.f32.mrb[0].mxu0
      %1918 = vmatprep.mubr.bf16.mxu0 0
      %1919 = vmatmul.mubr.bf16.gmra.mrb[0].mxu0 %v1766
      %v1920 = vpop.f32.mrb[0].mxu0
      %v1921 = vadd.f32 0.0, %v1920
      %v1922 = vpop.f32.mrb[0].mxu0
      %v1923 = vpop.f32.mrb[0].mxu0
      %v1924 = vadd.f32 0.0, %v1923
      %v1925 = vpop.f32.mrb[0].mxu0
      %1926 = vmatprep.mubr.bf16.mxu0 0
      %1927 = vmatmul.mubr.bf16.gmra.mrb[0].mxu0 %v1769
      %v1928 = vpop.f32.mrb[0].mxu0
      %v1929 = vadd.f32 0.0, %v1928
      %v1930 = vpop.f32.mrb[0].mxu0
      %v1931 = vpop.f32.mrb[0].mxu0
      %v1932 = vadd.f32 0.0, %v1931
      %v1933 = vpop.f32.mrb[0].mxu0
      %1934 = vdwg.mxu0
      %v1935 = vadd.f32 %v1557, %v1809
      %v1936 = vadd.f32 %v1558, %v1812
      %v1937 = vadd.f32 %v1559, %v1817
      %v1938 = vadd.f32 %v1560, %v1820
      %v1939 = vadd.f32 %v1561, %v1825
      %v1940 = vadd.f32 %v1562, %v1828
      %v1941 = vadd.f32 %v1563, %v1833
      %v1942 = vadd.f32 %v1564, %v1836
      %v1943 = vadd.f32 %v1565, %v1841
      %v1944 = vadd.f32 %v1566, %v1844
      %v1945 = vadd.f32 %v1567, %v1849
      %v1946 = vadd.f32 %v1568, %v1852
      %v1947 = vadd.f32 %v1569, %v1857
      %v1948 = vadd.f32 %v1570, %v1860
      %v1949 = vadd.f32 %v1571, %v1865
      %v1950 = vadd.f32 %v1572, %v1868
      %v1951 = vadd.f32 %v1573, %v1873
      %v1952 = vadd.f32 %v1574, %v1876
      %v1953 = vadd.f32 %v1575, %v1881
      %v1954 = vadd.f32 %v1576, %v1884
      %v1955 = vadd.f32 %v1577, %v1889
      %v1956 = vadd.f32 %v1578, %v1892
      %v1957 = vadd.f32 %v1579, %v1897
      %v1958 = vadd.f32 %v1580, %v1900
      %v1959 = vadd.f32 %v1581, %v1905
      %v1960 = vadd.f32 %v1582, %v1908
      %v1961 = vadd.f32 %v1583, %v1913
      %v1962 = vadd.f32 %v1584, %v1916
      %v1963 = vadd.f32 %v1585, %v1921
      %v1964 = vadd.f32 %v1586, %v1924
      %v1965 = vadd.f32 %v1587, %v1929
      %v1966 = vadd.f32 %v1588, %v1932
      %v1968 = vshrl.u32 %v1593, 16
      %v1970 = vrot.slane %v1968, 4
      %v1971 = vshll.u32 %v1593, 16
      %v1973 = vrot.slane %v1971, 5
      %v1974 = vor.u32 %v1970, %v1973
      %v1975 = vrot.slane %v1974, 4
      %v1977 = vshll.u32 %v1594, 16
      %v1979 = vrot.slane %v1977, 5
      %v1980 = vsel %vm223, %v1975, %v1979
      %v1981 = vshrl.u32 %v1594, 16
      %v1983 = vrot.slane %v1981, 4
      %v1984 = vor.u32 %v1983, %v1979
      %v1985 = vrot.slane %v1984, 4
      %v1987 = vshll.u32 %v1595, 16
      %v1989 = vrot.slane %v1987, 5
      %v1990 = vsel %vm223, %v1985, %v1989
      %v1992 = vshrl.u32 %v1596, 16
      %v1994 = vrot.slane %v1992, 4
      %v1995 = vshll.u32 %v1596, 16
      %v1997 = vrot.slane %v1995, 5
      %v1998 = vor.u32 %v1994, %v1997
      %v1999 = vrot.slane %v1998, 4
      %v2001 = vshll.u32 %v1597, 16
      %v2003 = vrot.slane %v2001, 5
      %v2004 = vsel %vm223, %v1999, %v2003
      %v2005 = vshrl.u32 %v1597, 16
      %v2007 = vrot.slane %v2005, 4
      %v2008 = vor.u32 %v2007, %v2003
      %v2009 = vrot.slane %v2008, 4
      %v2011 = vshll.u32 %v1598, 16
      %v2013 = vrot.slane %v2011, 5
      %v2014 = vsel %vm223, %v2009, %v2013
      %v2016 = vshrl.u32 %v1599, 16
      %v2018 = vrot.slane %v2016, 4
      %v2019 = vshll.u32 %v1599, 16
      %v2021 = vrot.slane %v2019, 5
      %v2022 = vor.u32 %v2018, %v2021
      %v2023 = vrot.slane %v2022, 4
      %v2025 = vshll.u32 %v1600, 16
      %v2027 = vrot.slane %v2025, 5
      %v2028 = vsel %vm223, %v2023, %v2027
      %v2029 = vshrl.u32 %v1600, 16
      %v2031 = vrot.slane %v2029, 4
      %v2032 = vor.u32 %v2031, %v2027
      %v2033 = vrot.slane %v2032, 4
      %v2035 = vshll.u32 %v1601, 16
      %v2037 = vrot.slane %v2035, 5
      %v2038 = vsel %vm223, %v2033, %v2037
      %v2040 = vshrl.u32 %v1602, 16
      %v2042 = vrot.slane %v2040, 4
      %v2043 = vshll.u32 %v1602, 16
      %v2045 = vrot.slane %v2043, 5
      %v2046 = vor.u32 %v2042, %v2045
      %v2047 = vrot.slane %v2046, 4
      %v2049 = vshll.u32 %v1603, 16
      %v2051 = vrot.slane %v2049, 5
      %v2052 = vsel %vm223, %v2047, %v2051
      %v2053 = vshrl.u32 %v1603, 16
      %v2055 = vrot.slane %v2053, 4
      %v2056 = vor.u32 %v2055, %v2051
      %v2057 = vrot.slane %v2056, 4
      %v2059 = vshll.u32 %v1604, 16
      %v2061 = vrot.slane %v2059, 5
      %v2062 = vsel %vm223, %v2057, %v2061
      %v2064 = vshrl.u32 %v1605, 16
      %v2066 = vrot.slane %v2064, 4
      %v2067 = vshll.u32 %v1605, 16
      %v2069 = vrot.slane %v2067, 5
      %v2070 = vor.u32 %v2066, %v2069
      %v2071 = vrot.slane %v2070, 4
      %v2073 = vshll.u32 %v1606, 16
      %v2075 = vrot.slane %v2073, 5
      %v2076 = vsel %vm223, %v2071, %v2075
      %v2077 = vshrl.u32 %v1606, 16
      %v2079 = vrot.slane %v2077, 4
      %v2080 = vor.u32 %v2079, %v2075
      %v2081 = vrot.slane %v2080, 4
      %v2083 = vshll.u32 %v1607, 16
      %v2085 = vrot.slane %v2083, 5
      %v2086 = vsel %vm223, %v2081, %v2085
      %v2088 = vshrl.u32 %v1608, 16
      %v2090 = vrot.slane %v2088, 4
      %v2091 = vshll.u32 %v1608, 16
      %v2093 = vrot.slane %v2091, 5
      %v2094 = vor.u32 %v2090, %v2093
      %v2095 = vrot.slane %v2094, 4
      %v2097 = vshll.u32 %v1609, 16
      %v2099 = vrot.slane %v2097, 5
      %v2100 = vsel %vm223, %v2095, %v2099
      %v2101 = vshrl.u32 %v1609, 16
      %v2103 = vrot.slane %v2101, 4
      %v2104 = vor.u32 %v2103, %v2099
      %v2105 = vrot.slane %v2104, 4
      %v2107 = vshll.u32 %v1610, 16
      %v2109 = vrot.slane %v2107, 5
      %v2110 = vsel %vm223, %v2105, %v2109
      %v2112 = vshrl.u32 %v1611, 16
      %v2114 = vrot.slane %v2112, 4
      %v2115 = vshll.u32 %v1611, 16
      %v2117 = vrot.slane %v2115, 5
      %v2118 = vor.u32 %v2114, %v2117
      %v2119 = vrot.slane %v2118, 4
      %v2121 = vshll.u32 %v1612, 16
      %v2123 = vrot.slane %v2121, 5
      %v2124 = vsel %vm223, %v2119, %v2123
      %v2125 = vshrl.u32 %v1612, 16
      %v2127 = vrot.slane %v2125, 4
      %v2128 = vor.u32 %v2127, %v2123
      %v2129 = vrot.slane %v2128, 4
      %v2131 = vshll.u32 %v1613, 16
      %v2133 = vrot.slane %v2131, 5
      %v2134 = vsel %vm223, %v2129, %v2133
      %v2136 = vshrl.u32 %v1614, 16
      %v2138 = vrot.slane %v2136, 4
      %v2139 = vshll.u32 %v1614, 16
      %v2141 = vrot.slane %v2139, 5
      %v2142 = vor.u32 %v2138, %v2141
      %v2143 = vrot.slane %v2142, 4
      %v2145 = vshll.u32 %v1615, 16
      %v2147 = vrot.slane %v2145, 5
      %v2148 = vsel %vm223, %v2143, %v2147
      %v2149 = vshrl.u32 %v1615, 16
      %v2151 = vrot.slane %v2149, 4
      %v2152 = vor.u32 %v2151, %v2147
      %v2153 = vrot.slane %v2152, 4
      %v2155 = vshll.u32 %v1616, 16
      %v2157 = vrot.slane %v2155, 5
      %v2158 = vsel %vm223, %v2153, %v2157
      %v2160 = vshrl.u32 %v1617, 16
      %v2162 = vrot.slane %v2160, 4
      %v2163 = vshll.u32 %v1617, 16
      %v2165 = vrot.slane %v2163, 5
      %v2166 = vor.u32 %v2162, %v2165
      %v2167 = vrot.slane %v2166, 4
      %v2169 = vshll.u32 %v1618, 16
      %v2171 = vrot.slane %v2169, 5
      %v2172 = vsel %vm223, %v2167, %v2171
      %v2173 = vshrl.u32 %v1618, 16
      %v2175 = vrot.slane %v2173, 4
      %v2176 = vor.u32 %v2175, %v2171
      %v2177 = vrot.slane %v2176, 4
      %v2179 = vshll.u32 %v1619, 16
      %v2181 = vrot.slane %v2179, 5
      %v2182 = vsel %vm223, %v2177, %v2181
      %v2184 = vshrl.u32 %v1620, 16
      %v2186 = vrot.slane %v2184, 4
      %v2187 = vshll.u32 %v1620, 16
      %v2189 = vrot.slane %v2187, 5
      %v2190 = vor.u32 %v2186, %v2189
      %v2191 = vrot.slane %v2190, 4
      %v2193 = vshll.u32 %v1621, 16
      %v2195 = vrot.slane %v2193, 5
      %v2196 = vsel %vm223, %v2191, %v2195
      %v2197 = vshrl.u32 %v1621, 16
      %v2199 = vrot.slane %v2197, 4
      %v2200 = vor.u32 %v2199, %v2195
      %v2201 = vrot.slane %v2200, 4
      %v2203 = vshll.u32 %v1622, 16
      %v2205 = vrot.slane %v2203, 5
      %v2206 = vsel %vm223, %v2201, %v2205
      %v2208 = vshrl.u32 %v1623, 16
      %v2210 = vrot.slane %v2208, 4
      %v2211 = vshll.u32 %v1623, 16
      %v2213 = vrot.slane %v2211, 5
      %v2214 = vor.u32 %v2210, %v2213
      %v2215 = vrot.slane %v2214, 4
      %v2217 = vshll.u32 %v1624, 16
      %v2219 = vrot.slane %v2217, 5
      %v2220 = vsel %vm223, %v2215, %v2219
      %v2221 = vshrl.u32 %v1624, 16
      %v2223 = vrot.slane %v2221, 4
      %v2224 = vor.u32 %v2223, %v2219
      %v2225 = vrot.slane %v2224, 4
      %v2227 = vshll.u32 %v1625, 16
      %v2229 = vrot.slane %v2227, 5
      %v2230 = vsel %vm223, %v2225, %v2229
      %v2232 = vshrl.u32 %v1626, 16
      %v2234 = vrot.slane %v2232, 4
      %v2235 = vshll.u32 %v1626, 16
      %v2237 = vrot.slane %v2235, 5
      %v2238 = vor.u32 %v2234, %v2237
      %v2239 = vrot.slane %v2238, 4
      %v2241 = vshll.u32 %v1627, 16
      %v2243 = vrot.slane %v2241, 5
      %v2244 = vsel %vm223, %v2239, %v2243
      %v2245 = vshrl.u32 %v1627, 16
      %v2247 = vrot.slane %v2245, 4
      %v2248 = vor.u32 %v2247, %v2243
      %v2249 = vrot.slane %v2248, 4
      %v2251 = vshll.u32 %v1628, 16
      %v2253 = vrot.slane %v2251, 5
      %v2254 = vsel %vm223, %v2249, %v2253
      %v2256 = vshrl.u32 %v1629, 16
      %v2258 = vrot.slane %v2256, 4
      %v2259 = vshll.u32 %v1629, 16
      %v2261 = vrot.slane %v2259, 5
      %v2262 = vor.u32 %v2258, %v2261
      %v2263 = vrot.slane %v2262, 4
      %v2265 = vshll.u32 %v1630, 16
      %v2267 = vrot.slane %v2265, 5
      %v2268 = vsel %vm223, %v2263, %v2267
      %v2269 = vshrl.u32 %v1630, 16
      %v2271 = vrot.slane %v2269, 4
      %v2272 = vor.u32 %v2271, %v2267
      %v2273 = vrot.slane %v2272, 4
      %v2275 = vshll.u32 %v1631, 16
      %v2277 = vrot.slane %v2275, 5
      %v2278 = vsel %vm223, %v2273, %v2277
      %v2280 = vshrl.u32 %v1632, 16
      %v2282 = vrot.slane %v2280, 4
      %v2283 = vshll.u32 %v1632, 16
      %v2285 = vrot.slane %v2283, 5
      %v2286 = vor.u32 %v2282, %v2285
      %v2287 = vrot.slane %v2286, 4
      %v2289 = vshll.u32 %v1633, 16
      %v2291 = vrot.slane %v2289, 5
      %v2292 = vsel %vm223, %v2287, %v2291
      %v2293 = vshrl.u32 %v1633, 16
      %v2295 = vrot.slane %v2293, 4
      %v2296 = vor.u32 %v2295, %v2291
      %v2297 = vrot.slane %v2296, 4
      %v2299 = vshll.u32 %v1634, 16
      %v2301 = vrot.slane %v2299, 5
      %v2302 = vsel %vm223, %v2297, %v2301
      %v2304 = vshrl.u32 %v1635, 16
      %v2306 = vrot.slane %v2304, 4
      %v2307 = vshll.u32 %v1635, 16
      %v2309 = vrot.slane %v2307, 5
      %v2310 = vor.u32 %v2306, %v2309
      %v2311 = vrot.slane %v2310, 4
      %v2313 = vshll.u32 %v1636, 16
      %v2315 = vrot.slane %v2313, 5
      %v2316 = vsel %vm223, %v2311, %v2315
      %v2317 = vshrl.u32 %v1636, 16
      %v2319 = vrot.slane %v2317, 4
      %v2320 = vor.u32 %v2319, %v2315
      %v2321 = vrot.slane %v2320, 4
      %v2323 = vshll.u32 %v1637, 16
      %v2325 = vrot.slane %v2323, 5
      %v2326 = vsel %vm223, %v2321, %v2325
      %v2328 = vshrl.u32 %v1638, 16
      %v2330 = vrot.slane %v2328, 4
      %v2331 = vshll.u32 %v1638, 16
      %v2333 = vrot.slane %v2331, 5
      %v2334 = vor.u32 %v2330, %v2333
      %v2335 = vrot.slane %v2334, 4
      %v2337 = vshll.u32 %v1639, 16
      %v2339 = vrot.slane %v2337, 5
      %v2340 = vsel %vm223, %v2335, %v2339
      %v2341 = vshrl.u32 %v1639, 16
      %v2343 = vrot.slane %v2341, 4
      %v2344 = vor.u32 %v2343, %v2339
      %v2345 = vrot.slane %v2344, 4
      %v2347 = vshll.u32 %v1640, 16
      %v2349 = vrot.slane %v2347, 5
      %v2350 = vsel %vm223, %v2345, %v2349
      %s2351 = scalar_lea.vmem %s1, 8
      %v2352 = vld [vmem:[%s2351] sm:$0x3]
      %v2353 = vunpack.c.l.b16 %v1980
      %v2354 = vunpack.c.l.b16 %v1990
      %v2355 = vunpack.c.l.b16 %v2004
      %v2356 = vunpack.c.l.b16 %v2014
      %v2357 = vunpack.c.l.b16 %v2028
      %v2358 = vunpack.c.l.b16 %v2038
      %v2359 = vunpack.c.l.b16 %v2052
      %v2360 = vunpack.c.l.b16 %v2062
      %v2361 = vunpack.c.l.b16 %v2076
      %v2362 = vunpack.c.l.b16 %v2086
      %v2363 = vunpack.c.l.b16 %v2100
      %v2364 = vunpack.c.l.b16 %v2110
      %v2365 = vunpack.c.l.b16 %v2124
      %v2366 = vunpack.c.l.b16 %v2134
      %v2367 = vunpack.c.l.b16 %v2148
      %v2368 = vunpack.c.l.b16 %v2158
      %v2369 = vunpack.c.l.b16 %v2172
      %v2370 = vunpack.c.l.b16 %v2182
      %v2371 = vunpack.c.l.b16 %v2196
      %v2372 = vunpack.c.l.b16 %v2206
      %v2373 = vunpack.c.l.b16 %v2220
      %v2374 = vunpack.c.l.b16 %v2230
      %v2375 = vunpack.c.l.b16 %v2244
      %v2376 = vunpack.c.l.b16 %v2254
      %v2377 = vunpack.c.l.b16 %v2268
      %v2378 = vunpack.c.l.b16 %v2278
      %v2379 = vunpack.c.l.b16 %v2292
      %v2380 = vunpack.c.l.b16 %v2302
      %v2381 = vunpack.c.l.b16 %v2316
      %v2382 = vunpack.c.l.b16 %v2326
      %v2383 = vunpack.c.l.b16 %v2340
      %v2384 = vunpack.c.l.b16 %v2350
      %v2385 = vpack.c.b16 %v2354, %v2353
      %v2386 = vpack.c.b16 %v2356, %v2355
      %v2387 = vpack.c.b16 %v2358, %v2357
      %v2388 = vpack.c.b16 %v2360, %v2359
      %v2389 = vpack.c.b16 %v2362, %v2361
      %v2390 = vpack.c.b16 %v2364, %v2363
      %v2391 = vpack.c.b16 %v2366, %v2365
      %v2392 = vpack.c.b16 %v2368, %v2367
      %v2393 = vpack.c.b16 %v2370, %v2369
      %v2394 = vpack.c.b16 %v2372, %v2371
      %v2395 = vpack.c.b16 %v2374, %v2373
      %v2396 = vpack.c.b16 %v2376, %v2375
      %v2397 = vpack.c.b16 %v2378, %v2377
      %v2398 = vpack.c.b16 %v2380, %v2379
      %v2399 = vpack.c.b16 %v2382, %v2381
      %v2400 = vpack.c.b16 %v2384, %v2383
      %v2402 = vsel %vm658, %v2385, 0
      %v2405 = vsel %vm658, %v2386, 0
      %v2408 = vsel %vm658, %v2387, 0
      %v2411 = vsel %vm658, %v2388, 0
      %v2414 = vsel %vm658, %v2389, 0
      %v2417 = vsel %vm658, %v2390, 0
      %v2420 = vsel %vm658, %v2391, 0
      %v2423 = vsel %vm658, %v2392, 0
      %v2426 = vsel %vm658, %v2393, 0
      %v2429 = vsel %vm658, %v2394, 0
      %v2432 = vsel %vm658, %v2395, 0
      %v2435 = vsel %vm658, %v2396, 0
      %v2438 = vsel %vm658, %v2397, 0
      %v2441 = vsel %vm658, %v2398, 0
      %v2444 = vsel %vm658, %v2399, 0
      %v2447 = vsel %vm658, %v2400, 0
      %v2450 = vsel %vm707, %v2352, 0
      %2452 = vmatprep.subr.bf16.mxu0 0
      %2453 = vmatpush1.bf16.msra.mxu0 %v2450
      %2454 = vmatprep.subr.bf16.mxu0 0
      %2455 = vmatpush1.bf16.msra.mxu0 0
      %2456 = vmatprep.subr.bf16.mxu0 0
      %2457 = vmatpush1.bf16.msra.mxu0 0
      %2458 = vmatprep.subr.bf16.mxu0 0
      %2459 = vmatpush1.bf16.msra.mxu0 0
      %2460 = vmatprep.subr.bf16.mxu0 0
      %2461 = vmatpush1.bf16.msra.mxu0 0
      %2462 = vmatprep.subr.bf16.mxu0 0
      %2463 = vmatpush1.bf16.msra.mxu0 0
      %2464 = vmatprep.subr.bf16.mxu0 0
      %2465 = vmatpush1.bf16.msra.mxu0 0
      %2466 = vmatprep.subr.bf16.mxu0 0
      %2467 = vmatpush1.bf16.msra.mxu0 0
      %2468 = vmatprep.subr.bf16.mxu0 0
      %2469 = vmatpush1.bf16.msra.mxu0 0
      %2470 = vmatprep.subr.bf16.mxu0 0
      %2471 = vmatpush1.bf16.msra.mxu0 0
      %2472 = vmatprep.subr.bf16.mxu0 0
      %2473 = vmatpush1.bf16.msra.mxu0 0
      %2474 = vmatprep.subr.bf16.mxu0 0
      %2475 = vmatpush1.bf16.msra.mxu0 0
      %2476 = vmatprep.subr.bf16.mxu0 0
      %2477 = vmatpush1.bf16.msra.mxu0 0
      %2478 = vmatprep.subr.bf16.mxu0 0
      %2479 = vmatpush1.bf16.msra.mxu0 0
      %2480 = vmatprep.subr.bf16.mxu0 0
      %2481 = vmatpush1.bf16.msra.mxu0 0
      %2482 = vmatprep.subr.bf16.mxu0 0
      %2483 = vmatpush1.bf16.msra.mxu0 0
      %2484 = vmatprep.mubr.bf16.mxu0 0
      %2485 = vmatmul.mubr.bf16.gmra.mrb[0].mxu0 %v2402
      %v2486 = vpop.f32.mrb[0].mxu0
      %v2487 = vadd.f32 0.0, %v2486
      %v2488 = vpop.f32.mrb[0].mxu0
      %v2489 = vpop.f32.mrb[0].mxu0
      %v2490 = vadd.f32 0.0, %v2489
      %v2491 = vpop.f32.mrb[0].mxu0
      %2492 = vmatprep.mubr.bf16.mxu0 0
      %2493 = vmatmul.mubr.bf16.gmra.mrb[0].mxu0 %v2405
      %v2494 = vpop.f32.mrb[0].mxu0
      %v2495 = vadd.f32 0.0, %v2494
      %v2496 = vpop.f32.mrb[0].mxu0
      %v2497 = vpop.f32.mrb[0].mxu0
      %v2498 = vadd.f32 0.0, %v2497
      %v2499 = vpop.f32.mrb[0].mxu0
      %2500 = vmatprep.mubr.bf16.mxu0 0
      %2501 = vmatmul.mubr.bf16.gmra.mrb[0].mxu0 %v2408
      %v2502 = vpop.f32.mrb[0].mxu0
      %v2503 = vadd.f32 0.0, %v2502
      %v2504 = vpop.f32.mrb[0].mxu0
      %v2505 = vpop.f32.mrb[0].mxu0
      %v2506 = vadd.f32 0.0, %v2505
      %v2507 = vpop.f32.mrb[0].mxu0
      %2508 = vmatprep.mubr.bf16.mxu0 0
      %2509 = vmatmul.mubr.bf16.gmra.mrb[0].mxu0 %v2411
      %v2510 = vpop.f32.mrb[0].mxu0
      %v2511 = vadd.f32 0.0, %v2510
      %v2512 = vpop.f32.mrb[0].mxu0
      %v2513 = vpop.f32.mrb[0].mxu0
      %v2514 = vadd.f32 0.0, %v2513
      %v2515 = vpop.f32.mrb[0].mxu0
      %2516 = vmatprep.mubr.bf16.mxu0 0
      %2517 = vmatmul.mubr.bf16.gmra.mrb[0].mxu0 %v2414
      %v2518 = vpop.f32.mrb[0].mxu0
      %v2519 = vadd.f32 0.0, %v2518
      %v2520 = vpop.f32.mrb[0].mxu0
      %v2521 = vpop.f32.mrb[0].mxu0
      %v2522 = vadd.f32 0.0, %v2521
      %v2523 = vpop.f32.mrb[0].mxu0
      %2524 = vmatprep.mubr.bf16.mxu0 0
      %2525 = vmatmul.mubr.bf16.gmra.mrb[0].mxu0 %v2417
      %v2526 = vpop.f32.mrb[0].mxu0
      %v2527 = vadd.f32 0.0, %v2526
      %v2528 = vpop.f32.mrb[0].mxu0
      %v2529 = vpop.f32.mrb[0].mxu0
      %v2530 = vadd.f32 0.0, %v2529
      %v2531 = vpop.f32.mrb[0].mxu0
      %2532 = vmatprep.mubr.bf16.mxu0 0
      %2533 = vmatmul.mubr.bf16.gmra.mrb[0].mxu0 %v2420
      %v2534 = vpop.f32.mrb[0].mxu0
      %v2535 = vadd.f32 0.0, %v2534
      %v2536 = vpop.f32.mrb[0].mxu0
      %v2537 = vpop.f32.mrb[0].mxu0
      %v2538 = vadd.f32 0.0, %v2537
      %v2539 = vpop.f32.mrb[0].mxu0
      %2540 = vmatprep.mubr.bf16.mxu0 0
      %2541 = vmatmul.mubr.bf16.gmra.mrb[0].mxu0 %v2423
      %v2542 = vpop.f32.mrb[0].mxu0
      %v2543 = vadd.f32 0.0, %v2542
      %v2544 = vpop.f32.mrb[0].mxu0
      %v2545 = vpop.f32.mrb[0].mxu0
      %v2546 = vadd.f32 0.0, %v2545
      %v2547 = vpop.f32.mrb[0].mxu0
      %2548 = vmatprep.mubr.bf16.mxu0 0
      %2549 = vmatmul.mubr.bf16.gmra.mrb[0].mxu0 %v2426
      %v2550 = vpop.f32.mrb[0].mxu0
      %v2551 = vadd.f32 0.0, %v2550
      %v2552 = vpop.f32.mrb[0].mxu0
      %v2553 = vpop.f32.mrb[0].mxu0
      %v2554 = vadd.f32 0.0, %v2553
      %v2555 = vpop.f32.mrb[0].mxu0
      %2556 = vmatprep.mubr.bf16.mxu0 0
      %2557 = vmatmul.mubr.bf16.gmra.mrb[0].mxu0 %v2429
      %v2558 = vpop.f32.mrb[0].mxu0
      %v2559 = vadd.f32 0.0, %v2558
      %v2560 = vpop.f32.mrb[0].mxu0
      %v2561 = vpop.f32.mrb[0].mxu0
      %v2562 = vadd.f32 0.0, %v2561
      %v2563 = vpop.f32.mrb[0].mxu0
      %2564 = vmatprep.mubr.bf16.mxu0 0
      %2565 = vmatmul.mubr.bf16.gmra.mrb[0].mxu0 %v2432
      %v2566 = vpop.f32.mrb[0].mxu0
      %v2567 = vadd.f32 0.0, %v2566
      %v2568 = vpop.f32.mrb[0].mxu0
      %v2569 = vpop.f32.mrb[0].mxu0
      %v2570 = vadd.f32 0.0, %v2569
      %v2571 = vpop.f32.mrb[0].mxu0
      %2572 = vmatprep.mubr.bf16.mxu0 0
      %2573 = vmatmul.mubr.bf16.gmra.mrb[0].mxu0 %v2435
      %v2574 = vpop.f32.mrb[0].mxu0
      %v2575 = vadd.f32 0.0, %v2574
      %v2576 = vpop.f32.mrb[0].mxu0
      %v2577 = vpop.f32.mrb[0].mxu0
      %v2578 = vadd.f32 0.0, %v2577
      %v2579 = vpop.f32.mrb[0].mxu0
      %2580 = vmatprep.mubr.bf16.mxu0 0
      %2581 = vmatmul.mubr.bf16.gmra.mrb[0].mxu0 %v2438
      %v2582 = vpop.f32.mrb[0].mxu0
      %v2583 = vadd.f32 0.0, %v2582
      %v2584 = vpop.f32.mrb[0].mxu0
      %v2585 = vpop.f32.mrb[0].mxu0
      %v2586 = vadd.f32 0.0, %v2585
      %v2587 = vpop.f32.mrb[0].mxu0
      %2588 = vmatprep.mubr.bf16.mxu0 0
      %2589 = vmatmul.mubr.bf16.gmra.mrb[0].mxu0 %v2441
      %v2590 = vpop.f32.mrb[0].mxu0
      %v2591 = vadd.f32 0.0, %v2590
      %v2592 = vpop.f32.mrb[0].mxu0
      %v2593 = vpop.f32.mrb[0].mxu0
      %v2594 = vadd.f32 0.0, %v2593
      %v2595 = vpop.f32.mrb[0].mxu0
      %2596 = vmatprep.mubr.bf16.mxu0 0
      %2597 = vmatmul.mubr.bf16.gmra.mrb[0].mxu0 %v2444
      %v2598 = vpop.f32.mrb[0].mxu0
      %v2599 = vadd.f32 0.0, %v2598
      %v2600 = vpop.f32.mrb[0].mxu0
      %v2601 = vpop.f32.mrb[0].mxu0
      %v2602 = vadd.f32 0.0, %v2601
      %v2603 = vpop.f32.mrb[0].mxu0
      %2604 = vmatprep.mubr.bf16.mxu0 0
      %2605 = vmatmul.mubr.bf16.gmra.mrb[0].mxu0 %v2447
      %v2606 = vpop.f32.mrb[0].mxu0
      %v2607 = vadd.f32 0.0, %v2606
      %v2608 = vpop.f32.mrb[0].mxu0
      %v2609 = vpop.f32.mrb[0].mxu0
      %v2610 = vadd.f32 0.0, %v2609
      %v2611 = vpop.f32.mrb[0].mxu0
      %2612 = vdwg.mxu0
      %v2613 = vadd.f32 %v1935, %v2487
      %v2614 = vadd.f32 %v1936, %v2490
      %v2615 = vadd.f32 %v1937, %v2495
      %v2616 = vadd.f32 %v1938, %v2498
      %v2617 = vadd.f32 %v1939, %v2503
      %v2618 = vadd.f32 %v1940, %v2506
      %v2619 = vadd.f32 %v1941, %v2511
      %v2620 = vadd.f32 %v1942, %v2514
      %v2621 = vadd.f32 %v1943, %v2519
      %v2622 = vadd.f32 %v1944, %v2522
      %v2623 = vadd.f32 %v1945, %v2527
      %v2624 = vadd.f32 %v1946, %v2530
      %v2625 = vadd.f32 %v1947, %v2535
      %v2626 = vadd.f32 %v1948, %v2538
      %v2627 = vadd.f32 %v1949, %v2543
      %v2628 = vadd.f32 %v1950, %v2546
      %v2629 = vadd.f32 %v1951, %v2551
      %v2630 = vadd.f32 %v1952, %v2554
      %v2631 = vadd.f32 %v1953, %v2559
      %v2632 = vadd.f32 %v1954, %v2562
      %v2633 = vadd.f32 %v1955, %v2567
      %v2634 = vadd.f32 %v1956, %v2570
      %v2635 = vadd.f32 %v1957, %v2575
      %v2636 = vadd.f32 %v1958, %v2578
      %v2637 = vadd.f32 %v1959, %v2583
      %v2638 = vadd.f32 %v1960, %v2586
      %v2639 = vadd.f32 %v1961, %v2591
      %v2640 = vadd.f32 %v1962, %v2594
      %v2641 = vadd.f32 %v1963, %v2599
      %v2642 = vadd.f32 %v1964, %v2602
      %v2643 = vadd.f32 %v1965, %v2607
      %v2644 = vadd.f32 %v1966, %v2610
      %v2661 = vrot.slane %v1593, 5
      %v2662 = vrot.slane %v2661, 4
      %v2663 = vrot.slane %v1594, 5
      %v2664 = vsel %vm1182, %v2662, %v2663
      %v2665 = vrot.slane %v2663, 4
      %v2666 = vrot.slane %v1595, 5
      %v2667 = vsel %vm1182, %v2665, %v2666
      %v2668 = vrot.slane %v1596, 5
      %v2669 = vrot.slane %v2668, 4
      %v2670 = vrot.slane %v1597, 5
      %v2671 = vsel %vm1182, %v2669, %v2670
      %v2672 = vrot.slane %v2670, 4
      %v2673 = vrot.slane %v1598, 5
      %v2674 = vsel %vm1182, %v2672, %v2673
      %v2675 = vrot.slane %v1599, 5
      %v2676 = vrot.slane %v2675, 4
      %v2677 = vrot.slane %v1600, 5
      %v2678 = vsel %vm1182, %v2676, %v2677
      %v2679 = vrot.slane %v2677, 4
      %v2680 = vrot.slane %v1601, 5
      %v2681 = vsel %vm1182, %v2679, %v2680
      %v2682 = vrot.slane %v1602, 5
      %v2683 = vrot.slane %v2682, 4
      %v2684 = vrot.slane %v1603, 5
      %v2685 = vsel %vm1182, %v2683, %v2684
      %v2686 = vrot.slane %v2684, 4
      %v2687 = vrot.slane %v1604, 5
      %v2688 = vsel %vm1182, %v2686, %v2687
      %v2689 = vrot.slane %v1605, 5
      %v2690 = vrot.slane %v2689, 4
      %v2691 = vrot.slane %v1606, 5
      %v2692 = vsel %vm1182, %v2690, %v2691
      %v2693 = vrot.slane %v2691, 4
      %v2694 = vrot.slane %v1607, 5
      %v2695 = vsel %vm1182, %v2693, %v2694
      %v2696 = vrot.slane %v1608, 5
      %v2697 = vrot.slane %v2696, 4
      %v2698 = vrot.slane %v1609, 5
      %v2699 = vsel %vm1182, %v2697, %v2698
      %v2700 = vrot.slane %v2698, 4
      %v2701 = vrot.slane %v1610, 5
      %v2702 = vsel %vm1182, %v2700, %v2701
      %v2703 = vrot.slane %v1611, 5
      %v2704 = vrot.slane %v2703, 4
      %v2705 = vrot.slane %v1612, 5
      %v2706 = vsel %vm1182, %v2704, %v2705
      %v2707 = vrot.slane %v2705, 4
      %v2708 = vrot.slane %v1613, 5
      %v2709 = vsel %vm1182, %v2707, %v2708
      %v2710 = vrot.slane %v1614, 5
      %v2711 = vrot.slane %v2710, 4
      %v2712 = vrot.slane %v1615, 5
      %v2713 = vsel %vm1182, %v2711, %v2712
      %v2714 = vrot.slane %v2712, 4
      %v2715 = vrot.slane %v1616, 5
      %v2716 = vsel %vm1182, %v2714, %v2715
      %v2717 = vrot.slane %v1617, 5
      %v2718 = vrot.slane %v2717, 4
      %v2719 = vrot.slane %v1618, 5
      %v2720 = vsel %vm1182, %v2718, %v2719
      %v2721 = vrot.slane %v2719, 4
      %v2722 = vrot.slane %v1619, 5
      %v2723 = vsel %vm1182, %v2721, %v2722
      %v2724 = vrot.slane %v1620, 5
      %v2725 = vrot.slane %v2724, 4
      %v2726 = vrot.slane %v1621, 5
      %v2727 = vsel %vm1182, %v2725, %v2726
      %v2728 = vrot.slane %v2726, 4
      %v2729 = vrot.slane %v1622, 5
      %v2730 = vsel %vm1182, %v2728, %v2729
      %v2731 = vrot.slane %v1623, 5
      %v2732 = vrot.slane %v2731, 4
      %v2733 = vrot.slane %v1624, 5
      %v2734 = vsel %vm1182, %v2732, %v2733
      %v2735 = vrot.slane %v2733, 4
      %v2736 = vrot.slane %v1625, 5
      %v2737 = vsel %vm1182, %v2735, %v2736
      %v2738 = vrot.slane %v1626, 5
      %v2739 = vrot.slane %v2738, 4
      %v2740 = vrot.slane %v1627, 5
      %v2741 = vsel %vm1182, %v2739, %v2740
      %v2742 = vrot.slane %v2740, 4
      %v2743 = vrot.slane %v1628, 5
      %v2744 = vsel %vm1182, %v2742, %v2743
      %v2745 = vrot.slane %v1629, 5
      %v2746 = vrot.slane %v2745, 4
      %v2747 = vrot.slane %v1630, 5
      %v2748 = vsel %vm1182, %v2746, %v2747
      %v2749 = vrot.slane %v2747, 4
      %v2750 = vrot.slane %v1631, 5
      %v2751 = vsel %vm1182, %v2749, %v2750
      %v2752 = vrot.slane %v1632, 5
      %v2753 = vrot.slane %v2752, 4
      %v2754 = vrot.slane %v1633, 5
      %v2755 = vsel %vm1182, %v2753, %v2754
      %v2756 = vrot.slane %v2754, 4
      %v2757 = vrot.slane %v1634, 5
      %v2758 = vsel %vm1182, %v2756, %v2757
      %v2759 = vrot.slane %v1635, 5
      %v2760 = vrot.slane %v2759, 4
      %v2761 = vrot.slane %v1636, 5
      %v2762 = vsel %vm1182, %v2760, %v2761
      %v2763 = vrot.slane %v2761, 4
      %v2764 = vrot.slane %v1637, 5
      %v2765 = vsel %vm1182, %v2763, %v2764
      %v2766 = vrot.slane %v1638, 5
      %v2767 = vrot.slane %v2766, 4
      %v2768 = vrot.slane %v1639, 5
      %v2769 = vsel %vm1182, %v2767, %v2768
      %v2770 = vrot.slane %v2768, 4
      %v2771 = vrot.slane %v1640, 5
      %v2772 = vsel %vm1182, %v2770, %v2771
      %s2773 = scalar_lea.vmem %s1, 10
      %v2774 = vld [vmem:[%s2773] sm:$0x3]
      %v2775 = vunpack.c.l.b16 %v2664
      %v2776 = vunpack.c.l.b16 %v2667
      %v2777 = vunpack.c.l.b16 %v2671
      %v2778 = vunpack.c.l.b16 %v2674
      %v2779 = vunpack.c.l.b16 %v2678
      %v2780 = vunpack.c.l.b16 %v2681
      %v2781 = vunpack.c.l.b16 %v2685
      %v2782 = vunpack.c.l.b16 %v2688
      %v2783 = vunpack.c.l.b16 %v2692
      %v2784 = vunpack.c.l.b16 %v2695
      %v2785 = vunpack.c.l.b16 %v2699
      %v2786 = vunpack.c.l.b16 %v2702
      %v2787 = vunpack.c.l.b16 %v2706
      %v2788 = vunpack.c.l.b16 %v2709
      %v2789 = vunpack.c.l.b16 %v2713
      %v2790 = vunpack.c.l.b16 %v2716
      %v2791 = vunpack.c.l.b16 %v2720
      %v2792 = vunpack.c.l.b16 %v2723
      %v2793 = vunpack.c.l.b16 %v2727
      %v2794 = vunpack.c.l.b16 %v2730
      %v2795 = vunpack.c.l.b16 %v2734
      %v2796 = vunpack.c.l.b16 %v2737
      %v2797 = vunpack.c.l.b16 %v2741
      %v2798 = vunpack.c.l.b16 %v2744
      %v2799 = vunpack.c.l.b16 %v2748
      %v2800 = vunpack.c.l.b16 %v2751
      %v2801 = vunpack.c.l.b16 %v2755
      %v2802 = vunpack.c.l.b16 %v2758
      %v2803 = vunpack.c.l.b16 %v2762
      %v2804 = vunpack.c.l.b16 %v2765
      %v2805 = vunpack.c.l.b16 %v2769
      %v2806 = vunpack.c.l.b16 %v2772
      %v2807 = vpack.c.b16 %v2776, %v2775
      %v2808 = vpack.c.b16 %v2778, %v2777
      %v2809 = vpack.c.b16 %v2780, %v2779
      %v2810 = vpack.c.b16 %v2782, %v2781
      %v2811 = vpack.c.b16 %v2784, %v2783
      %v2812 = vpack.c.b16 %v2786, %v2785
      %v2813 = vpack.c.b16 %v2788, %v2787
      %v2814 = vpack.c.b16 %v2790, %v2789
      %v2815 = vpack.c.b16 %v2792, %v2791
      %v2816 = vpack.c.b16 %v2794, %v2793
      %v2817 = vpack.c.b16 %v2796, %v2795
      %v2818 = vpack.c.b16 %v2798, %v2797
      %v2819 = vpack.c.b16 %v2800, %v2799
      %v2820 = vpack.c.b16 %v2802, %v2801
      %v2821 = vpack.c.b16 %v2804, %v2803
      %v2822 = vpack.c.b16 %v2806, %v2805
      %v2824 = vsel %vm658, %v2807, 0
      %v2827 = vsel %vm658, %v2808, 0
      %v2830 = vsel %vm658, %v2809, 0
      %v2833 = vsel %vm658, %v2810, 0
      %v2836 = vsel %vm658, %v2811, 0
      %v2839 = vsel %vm658, %v2812, 0
      %v2842 = vsel %vm658, %v2813, 0
      %v2845 = vsel %vm658, %v2814, 0
      %v2848 = vsel %vm658, %v2815, 0
      %v2851 = vsel %vm658, %v2816, 0
      %v2854 = vsel %vm658, %v2817, 0
      %v2857 = vsel %vm658, %v2818, 0
      %v2860 = vsel %vm658, %v2819, 0
      %v2863 = vsel %vm658, %v2820, 0
      %v2866 = vsel %vm658, %v2821, 0
      %v2869 = vsel %vm658, %v2822, 0
      %v2872 = vsel %vm707, %v2774, 0
      %2874 = vmatprep.subr.bf16.mxu0 0
      %2875 = vmatpush1.bf16.msra.mxu0 %v2872
      %2876 = vmatprep.subr.bf16.mxu0 0
      %2877 = vmatpush1.bf16.msra.mxu0 0
      %2878 = vmatprep.subr.bf16.mxu0 0
      %2879 = vmatpush1.bf16.msra.mxu0 0
      %2880 = vmatprep.subr.bf16.mxu0 0
      %2881 = vmatpush1.bf16.msra.mxu0 0
      %2882 = vmatprep.subr.bf16.mxu0 0
      %2883 = vmatpush1.bf16.msra.mxu0 0
      %2884 = vmatprep.subr.bf16.mxu0 0
      %2885 = vmatpush1.bf16.msra.mxu0 0
      %2886 = vmatprep.subr.bf16.mxu0 0
      %2887 = vmatpush1.bf16.msra.mxu0 0
      %2888 = vmatprep.subr.bf16.mxu0 0
      %2889 = vmatpush1.bf16.msra.mxu0 0
      %2890 = vmatprep.subr.bf16.mxu0 0
      %2891 = vmatpush1.bf16.msra.mxu0 0
      %2892 = vmatprep.subr.bf16.mxu0 0
      %2893 = vmatpush1.bf16.msra.mxu0 0
      %2894 = vmatprep.subr.bf16.mxu0 0
      %2895 = vmatpush1.bf16.msra.mxu0 0
      %2896 = vmatprep.subr.bf16.mxu0 0
      %2897 = vmatpush1.bf16.msra.mxu0 0
      %2898 = vmatprep.subr.bf16.mxu0 0
      %2899 = vmatpush1.bf16.msra.mxu0 0
      %2900 = vmatprep.subr.bf16.mxu0 0
      %2901 = vmatpush1.bf16.msra.mxu0 0
      %2902 = vmatprep.subr.bf16.mxu0 0
      %2903 = vmatpush1.bf16.msra.mxu0 0
      %2904 = vmatprep.subr.bf16.mxu0 0
      %2905 = vmatpush1.bf16.msra.mxu0 0
      %2906 = vmatprep.mubr.bf16.mxu0 0
      %2907 = vmatmul.mubr.bf16.gmra.mrb[0].mxu0 %v2824
      %v2908 = vpop.f32.mrb[0].mxu0
      %v2909 = vadd.f32 0.0, %v2908
      %v2910 = vpop.f32.mrb[0].mxu0
      %v2911 = vpop.f32.mrb[0].mxu0
      %v2912 = vadd.f32 0.0, %v2911
      %v2913 = vpop.f32.mrb[0].mxu0
      %2914 = vmatprep.mubr.bf16.mxu0 0
      %2915 = vmatmul.mubr.bf16.gmra.mrb[0].mxu0 %v2827
      %v2916 = vpop.f32.mrb[0].mxu0
      %v2917 = vadd.f32 0.0, %v2916
      %v2918 = vpop.f32.mrb[0].mxu0
      %v2919 = vpop.f32.mrb[0].mxu0
      %v2920 = vadd.f32 0.0, %v2919
      %v2921 = vpop.f32.mrb[0].mxu0
      %2922 = vmatprep.mubr.bf16.mxu0 0
      %2923 = vmatmul.mubr.bf16.gmra.mrb[0].mxu0 %v2830
      %v2924 = vpop.f32.mrb[0].mxu0
      %v2925 = vadd.f32 0.0, %v2924
      %v2926 = vpop.f32.mrb[0].mxu0
      %v2927 = vpop.f32.mrb[0].mxu0
      %v2928 = vadd.f32 0.0, %v2927
      %v2929 = vpop.f32.mrb[0].mxu0
      %2930 = vmatprep.mubr.bf16.mxu0 0
      %2931 = vmatmul.mubr.bf16.gmra.mrb[0].mxu0 %v2833
      %v2932 = vpop.f32.mrb[0].mxu0
      %v2933 = vadd.f32 0.0, %v2932
      %v2934 = vpop.f32.mrb[0].mxu0
      %v2935 = vpop.f32.mrb[0].mxu0
      %v2936 = vadd.f32 0.0, %v2935
      %v2937 = vpop.f32.mrb[0].mxu0
      %2938 = vmatprep.mubr.bf16.mxu0 0
      %2939 = vmatmul.mubr.bf16.gmra.mrb[0].mxu0 %v2836
      %v2940 = vpop.f32.mrb[0].mxu0
      %v2941 = vadd.f32 0.0, %v2940
      %v2942 = vpop.f32.mrb[0].mxu0
      %v2943 = vpop.f32.mrb[0].mxu0
      %v2944 = vadd.f32 0.0, %v2943
      %v2945 = vpop.f32.mrb[0].mxu0
      %2946 = vmatprep.mubr.bf16.mxu0 0
      %2947 = vmatmul.mubr.bf16.gmra.mrb[0].mxu0 %v2839
      %v2948 = vpop.f32.mrb[0].mxu0
      %v2949 = vadd.f32 0.0, %v2948
      %v2950 = vpop.f32.mrb[0].mxu0
      %v2951 = vpop.f32.mrb[0].mxu0
      %v2952 = vadd.f32 0.0, %v2951
      %v2953 = vpop.f32.mrb[0].mxu0
      %2954 = vmatprep.mubr.bf16.mxu0 0
      %2955 = vmatmul.mubr.bf16.gmra.mrb[0].mxu0 %v2842
      %v2956 = vpop.f32.mrb[0].mxu0
      %v2957 = vadd.f32 0.0, %v2956
      %v2958 = vpop.f32.mrb[0].mxu0
      %v2959 = vpop.f32.mrb[0].mxu0
      %v2960 = vadd.f32 0.0, %v2959
      %v2961 = vpop.f32.mrb[0].mxu0
      %2962 = vmatprep.mubr.bf16.mxu0 0
      %2963 = vmatmul.mubr.bf16.gmra.mrb[0].mxu0 %v2845
      %v2964 = vpop.f32.mrb[0].mxu0
      %v2965 = vadd.f32 0.0, %v2964
      %v2966 = vpop.f32.mrb[0].mxu0
      %v2967 = vpop.f32.mrb[0].mxu0
      %v2968 = vadd.f32 0.0, %v2967
      %v2969 = vpop.f32.mrb[0].mxu0
      %2970 = vmatprep.mubr.bf16.mxu0 0
      %2971 = vmatmul.mubr.bf16.gmra.mrb[0].mxu0 %v2848
      %v2972 = vpop.f32.mrb[0].mxu0
      %v2973 = vadd.f32 0.0, %v2972
      %v2974 = vpop.f32.mrb[0].mxu0
      %v2975 = vpop.f32.mrb[0].mxu0
      %v2976 = vadd.f32 0.0, %v2975
      %v2977 = vpop.f32.mrb[0].mxu0
      %2978 = vmatprep.mubr.bf16.mxu0 0
      %2979 = vmatmul.mubr.bf16.gmra.mrb[0].mxu0 %v2851
      %v2980 = vpop.f32.mrb[0].mxu0
      %v2981 = vadd.f32 0.0, %v2980
      %v2982 = vpop.f32.mrb[0].mxu0
      %v2983 = vpop.f32.mrb[0].mxu0
      %v2984 = vadd.f32 0.0, %v2983
      %v2985 = vpop.f32.mrb[0].mxu0
      %2986 = vmatprep.mubr.bf16.mxu0 0
      %2987 = vmatmul.mubr.bf16.gmra.mrb[0].mxu0 %v2854
      %v2988 = vpop.f32.mrb[0].mxu0
      %v2989 = vadd.f32 0.0, %v2988
      %v2990 = vpop.f32.mrb[0].mxu0
      %v2991 = vpop.f32.mrb[0].mxu0
      %v2992 = vadd.f32 0.0, %v2991
      %v2993 = vpop.f32.mrb[0].mxu0
      %2994 = vmatprep.mubr.bf16.mxu0 0
      %2995 = vmatmul.mubr.bf16.gmra.mrb[0].mxu0 %v2857
      %v2996 = vpop.f32.mrb[0].mxu0
      %v2997 = vadd.f32 0.0, %v2996
      %v2998 = vpop.f32.mrb[0].mxu0
      %v2999 = vpop.f32.mrb[0].mxu0
      %v3000 = vadd.f32 0.0, %v2999
      %v3001 = vpop.f32.mrb[0].mxu0
      %3002 = vmatprep.mubr.bf16.mxu0 0
      %3003 = vmatmul.mubr.bf16.gmra.mrb[0].mxu0 %v2860
      %v3004 = vpop.f32.mrb[0].mxu0
      %v3005 = vadd.f32 0.0, %v3004
      %v3006 = vpop.f32.mrb[0].mxu0
      %v3007 = vpop.f32.mrb[0].mxu0
      %v3008 = vadd.f32 0.0, %v3007
      %v3009 = vpop.f32.mrb[0].mxu0
      %3010 = vmatprep.mubr.bf16.mxu0 0
      %3011 = vmatmul.mubr.bf16.gmra.mrb[0].mxu0 %v2863
      %v3012 = vpop.f32.mrb[0].mxu0
      %v3013 = vadd.f32 0.0, %v3012
      %v3014 = vpop.f32.mrb[0].mxu0
      %v3015 = vpop.f32.mrb[0].mxu0
      %v3016 = vadd.f32 0.0, %v3015
      %v3017 = vpop.f32.mrb[0].mxu0
      %3018 = vmatprep.mubr.bf16.mxu0 0
      %3019 = vmatmul.mubr.bf16.gmra.mrb[0].mxu0 %v2866
      %v3020 = vpop.f32.mrb[0].mxu0
      %v3021 = vadd.f32 0.0, %v3020
      %v3022 = vpop.f32.mrb[0].mxu0
      %v3023 = vpop.f32.mrb[0].mxu0
      %v3024 = vadd.f32 0.0, %v3023
      %v3025 = vpop.f32.mrb[0].mxu0
      %3026 = vmatprep.mubr.bf16.mxu0 0
      %3027 = vmatmul.mubr.bf16.gmra.mrb[0].mxu0 %v2869
      %v3028 = vpop.f32.mrb[0].mxu0
      %v3029 = vadd.f32 0.0, %v3028
      %v3030 = vpop.f32.mrb[0].mxu0
      %v3031 = vpop.f32.mrb[0].mxu0
      %v3032 = vadd.f32 0.0, %v3031
      %v3033 = vpop.f32.mrb[0].mxu0
      %3034 = vdwg.mxu0
      %v3035 = vadd.f32 %v2613, %v2909
      %v3036 = vadd.f32 %v2614, %v2912
      %v3037 = vadd.f32 %v2615, %v2917
      %v3038 = vadd.f32 %v2616, %v2920
      %v3039 = vadd.f32 %v2617, %v2925
      %v3040 = vadd.f32 %v2618, %v2928
      %v3041 = vadd.f32 %v2619, %v2933
      %v3042 = vadd.f32 %v2620, %v2936
      %v3043 = vadd.f32 %v2621, %v2941
      %v3044 = vadd.f32 %v2622, %v2944
      %v3045 = vadd.f32 %v2623, %v2949
      %v3046 = vadd.f32 %v2624, %v2952
      %v3047 = vadd.f32 %v2625, %v2957
      %v3048 = vadd.f32 %v2626, %v2960
      %v3049 = vadd.f32 %v2627, %v2965
      %v3050 = vadd.f32 %v2628, %v2968
      %v3051 = vadd.f32 %v2629, %v2973
      %v3052 = vadd.f32 %v2630, %v2976
      %v3053 = vadd.f32 %v2631, %v2981
      %v3054 = vadd.f32 %v2632, %v2984
      %v3055 = vadd.f32 %v2633, %v2989
      %v3056 = vadd.f32 %v2634, %v2992
      %v3057 = vadd.f32 %v2635, %v2997
      %v3058 = vadd.f32 %v2636, %v3000
      %v3059 = vadd.f32 %v2637, %v3005
      %v3060 = vadd.f32 %v2638, %v3008
      %v3061 = vadd.f32 %v2639, %v3013
      %v3062 = vadd.f32 %v2640, %v3016
      %v3063 = vadd.f32 %v2641, %v3021
      %v3064 = vadd.f32 %v2642, %v3024
      %v3065 = vadd.f32 %v2643, %v3029
      %v3066 = vadd.f32 %v2644, %v3032
      %s3067 = sadd.s32 %s168, 2
      %s3068 = smul.u32 %s3067, 3
      %s3069 = smul.addr %s3068, 4
      %s3070 = scalar_lea.vmem %s156, %s3069
      %v3071 = vld [vmem:[%s3070] sm:$0xf]
      %v3072 = vld [vmem:[%s3070 + $0x4] sm:$0xf]
      %v3073 = vld [vmem:[%s3070 + $0x8] sm:$0x1]
      %v3074 = vld [vmem:[%s3070 + $0xc] sm:$0xf]
      %v3075 = vld [vmem:[%s3070 + $0x10] sm:$0xf]
      %v3076 = vld [vmem:[%s3070 + $0x14] sm:$0x1]
      %v3077 = vld [vmem:[%s3070 + $0x18] sm:$0xf]
      %v3078 = vld [vmem:[%s3070 + $0x1c] sm:$0xf]
      %v3079 = vld [vmem:[%s3070 + $0x20] sm:$0x1]
      %v3080 = vld [vmem:[%s3070 + $0x24] sm:$0xf]
      %v3081 = vld [vmem:[%s3070 + $0x28] sm:$0xf]
      %v3082 = vld [vmem:[%s3070 + $0x2c] sm:$0x1]
      %v3083 = vld [vmem:[%s3070 + $0x30] sm:$0xf]
      %v3084 = vld [vmem:[%s3070 + $0x34] sm:$0xf]
      %v3085 = vld [vmem:[%s3070 + $0x38] sm:$0x1]
      %v3086 = vld [vmem:[%s3070 + $0x3c] sm:$0xf]
      %v3087 = vld [vmem:[%s3070 + $0x40] sm:$0xf]
      %v3088 = vld [vmem:[%s3070 + $0x44] sm:$0x1]
      %v3089 = vld [vmem:[%s3070 + $0x48] sm:$0xf]
      %v3090 = vld [vmem:[%s3070 + $0x4c] sm:$0xf]
      %v3091 = vld [vmem:[%s3070 + $0x50] sm:$0x1]
      %v3092 = vld [vmem:[%s3070 + $0x54] sm:$0xf]
      %v3093 = vld [vmem:[%s3070 + $0x58] sm:$0xf]
      %v3094 = vld [vmem:[%s3070 + $0x5c] sm:$0x1]
      %v3095 = vld [vmem:[%s3070 + $0x60] sm:$0xf]
      %v3096 = vld [vmem:[%s3070 + $0x64] sm:$0xf]
      %v3097 = vld [vmem:[%s3070 + $0x68] sm:$0x1]
      %v3098 = vld [vmem:[%s3070 + $0x6c] sm:$0xf]
      %v3099 = vld [vmem:[%s3070 + $0x70] sm:$0xf]
      %v3100 = vld [vmem:[%s3070 + $0x74] sm:$0x1]
      %v3101 = vld [vmem:[%s3070 + $0x78] sm:$0xf]
      %v3102 = vld [vmem:[%s3070 + $0x7c] sm:$0xf]
      %v3103 = vld [vmem:[%s3070 + $0x80] sm:$0x1]
      %v3104 = vld [vmem:[%s3070 + $0x84] sm:$0xf]
      %v3105 = vld [vmem:[%s3070 + $0x88] sm:$0xf]
      %v3106 = vld [vmem:[%s3070 + $0x8c] sm:$0x1]
      %v3107 = vld [vmem:[%s3070 + $0x90] sm:$0xf]
      %v3108 = vld [vmem:[%s3070 + $0x94] sm:$0xf]
      %v3109 = vld [vmem:[%s3070 + $0x98] sm:$0x1]
      %v3110 = vld [vmem:[%s3070 + $0x9c] sm:$0xf]
      %v3111 = vld [vmem:[%s3070 + $0xa0] sm:$0xf]
      %v3112 = vld [vmem:[%s3070 + $0xa4] sm:$0x1]
      %v3113 = vld [vmem:[%s3070 + $0xa8] sm:$0xf]
      %v3114 = vld [vmem:[%s3070 + $0xac] sm:$0xf]
      %v3115 = vld [vmem:[%s3070 + $0xb0] sm:$0x1]
      %v3116 = vld [vmem:[%s3070 + $0xb4] sm:$0xf]
      %v3117 = vld [vmem:[%s3070 + $0xb8] sm:$0xf]
      %v3118 = vld [vmem:[%s3070 + $0xbc] sm:$0x1]
      %s3119 = scalar_lea.vmem %s1, 12
      %v3120 = vld [vmem:[%s3119] sm:$0x3]
      %v3153 = vunpack.c.l.b16 %v3071
      %v3154 = vunpack.c.l.b16 %v3072
      %v3155 = vunpack.c.l.b16 %v3074
      %v3156 = vunpack.c.l.b16 %v3075
      %v3157 = vunpack.c.l.b16 %v3077
      %v3158 = vunpack.c.l.b16 %v3078
      %v3159 = vunpack.c.l.b16 %v3080
      %v3160 = vunpack.c.l.b16 %v3081
      %v3161 = vunpack.c.l.b16 %v3083
      %v3162 = vunpack.c.l.b16 %v3084
      %v3163 = vunpack.c.l.b16 %v3086
      %v3164 = vunpack.c.l.b16 %v3087
      %v3165 = vunpack.c.l.b16 %v3089
      %v3166 = vunpack.c.l.b16 %v3090
      %v3167 = vunpack.c.l.b16 %v3092
      %v3168 = vunpack.c.l.b16 %v3093
      %v3169 = vunpack.c.l.b16 %v3095
      %v3170 = vunpack.c.l.b16 %v3096
      %v3171 = vunpack.c.l.b16 %v3098
      %v3172 = vunpack.c.l.b16 %v3099
      %v3173 = vunpack.c.l.b16 %v3101
      %v3174 = vunpack.c.l.b16 %v3102
      %v3175 = vunpack.c.l.b16 %v3104
      %v3176 = vunpack.c.l.b16 %v3105
      %v3177 = vunpack.c.l.b16 %v3107
      %v3178 = vunpack.c.l.b16 %v3108
      %v3179 = vunpack.c.l.b16 %v3110
      %v3180 = vunpack.c.l.b16 %v3111
      %v3181 = vunpack.c.l.b16 %v3113
      %v3182 = vunpack.c.l.b16 %v3114
      %v3183 = vunpack.c.l.b16 %v3116
      %v3184 = vunpack.c.l.b16 %v3117
      %v3185 = vpack.c.b16 %v3154, %v3153
      %v3186 = vpack.c.b16 %v3156, %v3155
      %v3187 = vpack.c.b16 %v3158, %v3157
      %v3188 = vpack.c.b16 %v3160, %v3159
      %v3189 = vpack.c.b16 %v3162, %v3161
      %v3190 = vpack.c.b16 %v3164, %v3163
      %v3191 = vpack.c.b16 %v3166, %v3165
      %v3192 = vpack.c.b16 %v3168, %v3167
      %v3193 = vpack.c.b16 %v3170, %v3169
      %v3194 = vpack.c.b16 %v3172, %v3171
      %v3195 = vpack.c.b16 %v3174, %v3173
      %v3196 = vpack.c.b16 %v3176, %v3175
      %v3197 = vpack.c.b16 %v3178, %v3177
      %v3198 = vpack.c.b16 %v3180, %v3179
      %v3199 = vpack.c.b16 %v3182, %v3181
      %v3200 = vpack.c.b16 %v3184, %v3183
      %v3202 = vsel %vm658, %v3185, 0
      %v3205 = vsel %vm658, %v3186, 0
      %v3208 = vsel %vm658, %v3187, 0
      %v3211 = vsel %vm658, %v3188, 0
      %v3214 = vsel %vm658, %v3189, 0
      %v3217 = vsel %vm658, %v3190, 0
      %v3220 = vsel %vm658, %v3191, 0
      %v3223 = vsel %vm658, %v3192, 0
      %v3226 = vsel %vm658, %v3193, 0
      %v3229 = vsel %vm658, %v3194, 0
      %v3232 = vsel %vm658, %v3195, 0
      %v3235 = vsel %vm658, %v3196, 0
      %v3238 = vsel %vm658, %v3197, 0
      %v3241 = vsel %vm658, %v3198, 0
      %v3244 = vsel %vm658, %v3199, 0
      %v3247 = vsel %vm658, %v3200, 0
      %v3250 = vsel %vm707, %v3120, 0
      %3252 = vmatprep.subr.bf16.mxu0 0
      %3253 = vmatpush1.bf16.msra.mxu0 %v3250
      %3254 = vmatprep.subr.bf16.mxu0 0
      %3255 = vmatpush1.bf16.msra.mxu0 0
      %3256 = vmatprep.subr.bf16.mxu0 0
      %3257 = vmatpush1.bf16.msra.mxu0 0
      %3258 = vmatprep.subr.bf16.mxu0 0
      %3259 = vmatpush1.bf16.msra.mxu0 0
      %3260 = vmatprep.subr.bf16.mxu0 0
      %3261 = vmatpush1.bf16.msra.mxu0 0
      %3262 = vmatprep.subr.bf16.mxu0 0
      %3263 = vmatpush1.bf16.msra.mxu0 0
      %3264 = vmatprep.subr.bf16.mxu0 0
      %3265 = vmatpush1.bf16.msra.mxu0 0
      %3266 = vmatprep.subr.bf16.mxu0 0
      %3267 = vmatpush1.bf16.msra.mxu0 0
      %3268 = vmatprep.subr.bf16.mxu0 0
      %3269 = vmatpush1.bf16.msra.mxu0 0
      %3270 = vmatprep.subr.bf16.mxu0 0
      %3271 = vmatpush1.bf16.msra.mxu0 0
      %3272 = vmatprep.subr.bf16.mxu0 0
      %3273 = vmatpush1.bf16.msra.mxu0 0
      %3274 = vmatprep.subr.bf16.mxu0 0
      %3275 = vmatpush1.bf16.msra.mxu0 0
      %3276 = vmatprep.subr.bf16.mxu0 0
      %3277 = vmatpush1.bf16.msra.mxu0 0
      %3278 = vmatprep.subr.bf16.mxu0 0
      %3279 = vmatpush1.bf16.msra.mxu0 0
      %3280 = vmatprep.subr.bf16.mxu0 0
      %3281 = vmatpush1.bf16.msra.mxu0 0
      %3282 = vmatprep.subr.bf16.mxu0 0
      %3283 = vmatpush1.bf16.msra.mxu0 0
      %3284 = vmatprep.mubr.bf16.mxu0 0
      %3285 = vmatmul.mubr.bf16.gmra.mrb[0].mxu0 %v3202
      %v3286 = vpop.f32.mrb[0].mxu0
      %v3287 = vadd.f32 0.0, %v3286
      %v3288 = vpop.f32.mrb[0].mxu0
      %v3289 = vpop.f32.mrb[0].mxu0
      %v3290 = vadd.f32 0.0, %v3289
      %v3291 = vpop.f32.mrb[0].mxu0
      %3292 = vmatprep.mubr.bf16.mxu0 0
      %3293 = vmatmul.mubr.bf16.gmra.mrb[0].mxu0 %v3205
      %v3294 = vpop.f32.mrb[0].mxu0
      %v3295 = vadd.f32 0.0, %v3294
      %v3296 = vpop.f32.mrb[0].mxu0
      %v3297 = vpop.f32.mrb[0].mxu0
      %v3298 = vadd.f32 0.0, %v3297
      %v3299 = vpop.f32.mrb[0].mxu0
      %3300 = vmatprep.mubr.bf16.mxu0 0
      %3301 = vmatmul.mubr.bf16.gmra.mrb[0].mxu0 %v3208
      %v3302 = vpop.f32.mrb[0].mxu0
      %v3303 = vadd.f32 0.0, %v3302
      %v3304 = vpop.f32.mrb[0].mxu0
      %v3305 = vpop.f32.mrb[0].mxu0
      %v3306 = vadd.f32 0.0, %v3305
      %v3307 = vpop.f32.mrb[0].mxu0
      %3308 = vmatprep.mubr.bf16.mxu0 0
      %3309 = vmatmul.mubr.bf16.gmra.mrb[0].mxu0 %v3211
      %v3310 = vpop.f32.mrb[0].mxu0
      %v3311 = vadd.f32 0.0, %v3310
      %v3312 = vpop.f32.mrb[0].mxu0
      %v3313 = vpop.f32.mrb[0].mxu0
      %v3314 = vadd.f32 0.0, %v3313
      %v3315 = vpop.f32.mrb[0].mxu0
      %3316 = vmatprep.mubr.bf16.mxu0 0
      %3317 = vmatmul.mubr.bf16.gmra.mrb[0].mxu0 %v3214
      %v3318 = vpop.f32.mrb[0].mxu0
      %v3319 = vadd.f32 0.0, %v3318
      %v3320 = vpop.f32.mrb[0].mxu0
      %v3321 = vpop.f32.mrb[0].mxu0
      %v3322 = vadd.f32 0.0, %v3321
      %v3323 = vpop.f32.mrb[0].mxu0
      %3324 = vmatprep.mubr.bf16.mxu0 0
      %3325 = vmatmul.mubr.bf16.gmra.mrb[0].mxu0 %v3217
      %v3326 = vpop.f32.mrb[0].mxu0
      %v3327 = vadd.f32 0.0, %v3326
      %v3328 = vpop.f32.mrb[0].mxu0
      %v3329 = vpop.f32.mrb[0].mxu0
      %v3330 = vadd.f32 0.0, %v3329
      %v3331 = vpop.f32.mrb[0].mxu0
      %3332 = vmatprep.mubr.bf16.mxu0 0
      %3333 = vmatmul.mubr.bf16.gmra.mrb[0].mxu0 %v3220
      %v3334 = vpop.f32.mrb[0].mxu0
      %v3335 = vadd.f32 0.0, %v3334
      %v3336 = vpop.f32.mrb[0].mxu0
      %v3337 = vpop.f32.mrb[0].mxu0
      %v3338 = vadd.f32 0.0, %v3337
      %v3339 = vpop.f32.mrb[0].mxu0
      %3340 = vmatprep.mubr.bf16.mxu0 0
      %3341 = vmatmul.mubr.bf16.gmra.mrb[0].mxu0 %v3223
      %v3342 = vpop.f32.mrb[0].mxu0
      %v3343 = vadd.f32 0.0, %v3342
      %v3344 = vpop.f32.mrb[0].mxu0
      %v3345 = vpop.f32.mrb[0].mxu0
      %v3346 = vadd.f32 0.0, %v3345
      %v3347 = vpop.f32.mrb[0].mxu0
      %3348 = vmatprep.mubr.bf16.mxu0 0
      %3349 = vmatmul.mubr.bf16.gmra.mrb[0].mxu0 %v3226
      %v3350 = vpop.f32.mrb[0].mxu0
      %v3351 = vadd.f32 0.0, %v3350
      %v3352 = vpop.f32.mrb[0].mxu0
      %v3353 = vpop.f32.mrb[0].mxu0
      %v3354 = vadd.f32 0.0, %v3353
      %v3355 = vpop.f32.mrb[0].mxu0
      %3356 = vmatprep.mubr.bf16.mxu0 0
      %3357 = vmatmul.mubr.bf16.gmra.mrb[0].mxu0 %v3229
      %v3358 = vpop.f32.mrb[0].mxu0
      %v3359 = vadd.f32 0.0, %v3358
      %v3360 = vpop.f32.mrb[0].mxu0
      %v3361 = vpop.f32.mrb[0].mxu0
      %v3362 = vadd.f32 0.0, %v3361
      %v3363 = vpop.f32.mrb[0].mxu0
      %3364 = vmatprep.mubr.bf16.mxu0 0
      %3365 = vmatmul.mubr.bf16.gmra.mrb[0].mxu0 %v3232
      %v3366 = vpop.f32.mrb[0].mxu0
      %v3367 = vadd.f32 0.0, %v3366
      %v3368 = vpop.f32.mrb[0].mxu0
      %v3369 = vpop.f32.mrb[0].mxu0
      %v3370 = vadd.f32 0.0, %v3369
      %v3371 = vpop.f32.mrb[0].mxu0
      %3372 = vmatprep.mubr.bf16.mxu0 0
      %3373 = vmatmul.mubr.bf16.gmra.mrb[0].mxu0 %v3235
      %v3374 = vpop.f32.mrb[0].mxu0
      %v3375 = vadd.f32 0.0, %v3374
      %v3376 = vpop.f32.mrb[0].mxu0
      %v3377 = vpop.f32.mrb[0].mxu0
      %v3378 = vadd.f32 0.0, %v3377
      %v3379 = vpop.f32.mrb[0].mxu0
      %3380 = vmatprep.mubr.bf16.mxu0 0
      %3381 = vmatmul.mubr.bf16.gmra.mrb[0].mxu0 %v3238
      %v3382 = vpop.f32.mrb[0].mxu0
      %v3383 = vadd.f32 0.0, %v3382
      %v3384 = vpop.f32.mrb[0].mxu0
      %v3385 = vpop.f32.mrb[0].mxu0
      %v3386 = vadd.f32 0.0, %v3385
      %v3387 = vpop.f32.mrb[0].mxu0
      %3388 = vmatprep.mubr.bf16.mxu0 0
      %3389 = vmatmul.mubr.bf16.gmra.mrb[0].mxu0 %v3241
      %v3390 = vpop.f32.mrb[0].mxu0
      %v3391 = vadd.f32 0.0, %v3390
      %v3392 = vpop.f32.mrb[0].mxu0
      %v3393 = vpop.f32.mrb[0].mxu0
      %v3394 = vadd.f32 0.0, %v3393
      %v3395 = vpop.f32.mrb[0].mxu0
      %3396 = vmatprep.mubr.bf16.mxu0 0
      %3397 = vmatmul.mubr.bf16.gmra.mrb[0].mxu0 %v3244
      %v3398 = vpop.f32.mrb[0].mxu0
      %v3399 = vadd.f32 0.0, %v3398
      %v3400 = vpop.f32.mrb[0].mxu0
      %v3401 = vpop.f32.mrb[0].mxu0
      %v3402 = vadd.f32 0.0, %v3401
      %v3403 = vpop.f32.mrb[0].mxu0
      %3404 = vmatprep.mubr.bf16.mxu0 0
      %3405 = vmatmul.mubr.bf16.gmra.mrb[0].mxu0 %v3247
      %v3406 = vpop.f32.mrb[0].mxu0
      %v3407 = vadd.f32 0.0, %v3406
      %v3408 = vpop.f32.mrb[0].mxu0
      %v3409 = vpop.f32.mrb[0].mxu0
      %v3410 = vadd.f32 0.0, %v3409
      %v3411 = vpop.f32.mrb[0].mxu0
      %3412 = vdwg.mxu0
      %v3413 = vadd.f32 %v3035, %v3287
      %v3414 = vadd.f32 %v3036, %v3290
      %v3415 = vadd.f32 %v3037, %v3295
      %v3416 = vadd.f32 %v3038, %v3298
      %v3417 = vadd.f32 %v3039, %v3303
      %v3418 = vadd.f32 %v3040, %v3306
      %v3419 = vadd.f32 %v3041, %v3311
      %v3420 = vadd.f32 %v3042, %v3314
      %v3421 = vadd.f32 %v3043, %v3319
      %v3422 = vadd.f32 %v3044, %v3322
      %v3423 = vadd.f32 %v3045, %v3327
      %v3424 = vadd.f32 %v3046, %v3330
      %v3425 = vadd.f32 %v3047, %v3335
      %v3426 = vadd.f32 %v3048, %v3338
      %v3427 = vadd.f32 %v3049, %v3343
      %v3428 = vadd.f32 %v3050, %v3346
      %v3429 = vadd.f32 %v3051, %v3351
      %v3430 = vadd.f32 %v3052, %v3354
      %v3431 = vadd.f32 %v3053, %v3359
      %v3432 = vadd.f32 %v3054, %v3362
      %v3433 = vadd.f32 %v3055, %v3367
      %v3434 = vadd.f32 %v3056, %v3370
      %v3435 = vadd.f32 %v3057, %v3375
      %v3436 = vadd.f32 %v3058, %v3378
      %v3437 = vadd.f32 %v3059, %v3383
      %v3438 = vadd.f32 %v3060, %v3386
      %v3439 = vadd.f32 %v3061, %v3391
      %v3440 = vadd.f32 %v3062, %v3394
      %v3441 = vadd.f32 %v3063, %v3399
      %v3442 = vadd.f32 %v3064, %v3402
      %v3443 = vadd.f32 %v3065, %v3407
      %v3444 = vadd.f32 %v3066, %v3410
      %v3446 = vshrl.u32 %v3071, 16
      %v3448 = vrot.slane %v3446, 4
      %v3449 = vshll.u32 %v3071, 16
      %v3451 = vrot.slane %v3449, 5
      %v3452 = vor.u32 %v3448, %v3451
      %v3453 = vrot.slane %v3452, 4
      %v3455 = vshll.u32 %v3072, 16
      %v3457 = vrot.slane %v3455, 5
      %v3458 = vsel %vm223, %v3453, %v3457
      %v3459 = vshrl.u32 %v3072, 16
      %v3461 = vrot.slane %v3459, 4
      %v3462 = vor.u32 %v3461, %v3457
      %v3463 = vrot.slane %v3462, 4
      %v3465 = vshll.u32 %v3073, 16
      %v3467 = vrot.slane %v3465, 5
      %v3468 = vsel %vm223, %v3463, %v3467
      %v3470 = vshrl.u32 %v3074, 16
      %v3472 = vrot.slane %v3470, 4
      %v3473 = vshll.u32 %v3074, 16
      %v3475 = vrot.slane %v3473, 5
      %v3476 = vor.u32 %v3472, %v3475
      %v3477 = vrot.slane %v3476, 4
      %v3479 = vshll.u32 %v3075, 16
      %v3481 = vrot.slane %v3479, 5
      %v3482 = vsel %vm223, %v3477, %v3481
      %v3483 = vshrl.u32 %v3075, 16
      %v3485 = vrot.slane %v3483, 4
      %v3486 = vor.u32 %v3485, %v3481
      %v3487 = vrot.slane %v3486, 4
      %v3489 = vshll.u32 %v3076, 16
      %v3491 = vrot.slane %v3489, 5
      %v3492 = vsel %vm223, %v3487, %v3491
      %v3494 = vshrl.u32 %v3077, 16
      %v3496 = vrot.slane %v3494, 4
      %v3497 = vshll.u32 %v3077, 16
      %v3499 = vrot.slane %v3497, 5
      %v3500 = vor.u32 %v3496, %v3499
      %v3501 = vrot.slane %v3500, 4
      %v3503 = vshll.u32 %v3078, 16
      %v3505 = vrot.slane %v3503, 5
      %v3506 = vsel %vm223, %v3501, %v3505
      %v3507 = vshrl.u32 %v3078, 16
      %v3509 = vrot.slane %v3507, 4
      %v3510 = vor.u32 %v3509, %v3505
      %v3511 = vrot.slane %v3510, 4
      %v3513 = vshll.u32 %v3079, 16
      %v3515 = vrot.slane %v3513, 5
      %v3516 = vsel %vm223, %v3511, %v3515
      %v3518 = vshrl.u32 %v3080, 16
      %v3520 = vrot.slane %v3518, 4
      %v3521 = vshll.u32 %v3080, 16
      %v3523 = vrot.slane %v3521, 5
      %v3524 = vor.u32 %v3520, %v3523
      %v3525 = vrot.slane %v3524, 4
      %v3527 = vshll.u32 %v3081, 16
      %v3529 = vrot.slane %v3527, 5
      %v3530 = vsel %vm223, %v3525, %v3529
      %v3531 = vshrl.u32 %v3081, 16
      %v3533 = vrot.slane %v3531, 4
      %v3534 = vor.u32 %v3533, %v3529
      %v3535 = vrot.slane %v3534, 4
      %v3537 = vshll.u32 %v3082, 16
      %v3539 = vrot.slane %v3537, 5
      %v3540 = vsel %vm223, %v3535, %v3539
      %v3542 = vshrl.u32 %v3083, 16
      %v3544 = vrot.slane %v3542, 4
      %v3545 = vshll.u32 %v3083, 16
      %v3547 = vrot.slane %v3545, 5
      %v3548 = vor.u32 %v3544, %v3547
      %v3549 = vrot.slane %v3548, 4
      %v3551 = vshll.u32 %v3084, 16
      %v3553 = vrot.slane %v3551, 5
      %v3554 = vsel %vm223, %v3549, %v3553
      %v3555 = vshrl.u32 %v3084, 16
      %v3557 = vrot.slane %v3555, 4
      %v3558 = vor.u32 %v3557, %v3553
      %v3559 = vrot.slane %v3558, 4
      %v3561 = vshll.u32 %v3085, 16
      %v3563 = vrot.slane %v3561, 5
      %v3564 = vsel %vm223, %v3559, %v3563
      %v3566 = vshrl.u32 %v3086, 16
      %v3568 = vrot.slane %v3566, 4
      %v3569 = vshll.u32 %v3086, 16
      %v3571 = vrot.slane %v3569, 5
      %v3572 = vor.u32 %v3568, %v3571
      %v3573 = vrot.slane %v3572, 4
      %v3575 = vshll.u32 %v3087, 16
      %v3577 = vrot.slane %v3575, 5
      %v3578 = vsel %vm223, %v3573, %v3577
      %v3579 = vshrl.u32 %v3087, 16
      %v3581 = vrot.slane %v3579, 4
      %v3582 = vor.u32 %v3581, %v3577
      %v3583 = vrot.slane %v3582, 4
      %v3585 = vshll.u32 %v3088, 16
      %v3587 = vrot.slane %v3585, 5
      %v3588 = vsel %vm223, %v3583, %v3587
      %v3590 = vshrl.u32 %v3089, 16
      %v3592 = vrot.slane %v3590, 4
      %v3593 = vshll.u32 %v3089, 16
      %v3595 = vrot.slane %v3593, 5
      %v3596 = vor.u32 %v3592, %v3595
      %v3597 = vrot.slane %v3596, 4
      %v3599 = vshll.u32 %v3090, 16
      %v3601 = vrot.slane %v3599, 5
      %v3602 = vsel %vm223, %v3597, %v3601
      %v3603 = vshrl.u32 %v3090, 16
      %v3605 = vrot.slane %v3603, 4
      %v3606 = vor.u32 %v3605, %v3601
      %v3607 = vrot.slane %v3606, 4
      %v3609 = vshll.u32 %v3091, 16
      %v3611 = vrot.slane %v3609, 5
      %v3612 = vsel %vm223, %v3607, %v3611
      %v3614 = vshrl.u32 %v3092, 16
      %v3616 = vrot.slane %v3614, 4
      %v3617 = vshll.u32 %v3092, 16
      %v3619 = vrot.slane %v3617, 5
      %v3620 = vor.u32 %v3616, %v3619
      %v3621 = vrot.slane %v3620, 4
      %v3623 = vshll.u32 %v3093, 16
      %v3625 = vrot.slane %v3623, 5
      %v3626 = vsel %vm223, %v3621, %v3625
      %v3627 = vshrl.u32 %v3093, 16
      %v3629 = vrot.slane %v3627, 4
      %v3630 = vor.u32 %v3629, %v3625
      %v3631 = vrot.slane %v3630, 4
      %v3633 = vshll.u32 %v3094, 16
      %v3635 = vrot.slane %v3633, 5
      %v3636 = vsel %vm223, %v3631, %v3635
      %v3638 = vshrl.u32 %v3095, 16
      %v3640 = vrot.slane %v3638, 4
      %v3641 = vshll.u32 %v3095, 16
      %v3643 = vrot.slane %v3641, 5
      %v3644 = vor.u32 %v3640, %v3643
      %v3645 = vrot.slane %v3644, 4
      %v3647 = vshll.u32 %v3096, 16
      %v3649 = vrot.slane %v3647, 5
      %v3650 = vsel %vm223, %v3645, %v3649
      %v3651 = vshrl.u32 %v3096, 16
      %v3653 = vrot.slane %v3651, 4
      %v3654 = vor.u32 %v3653, %v3649
      %v3655 = vrot.slane %v3654, 4
      %v3657 = vshll.u32 %v3097, 16
      %v3659 = vrot.slane %v3657, 5
      %v3660 = vsel %vm223, %v3655, %v3659
      %v3662 = vshrl.u32 %v3098, 16
      %v3664 = vrot.slane %v3662, 4
      %v3665 = vshll.u32 %v3098, 16
      %v3667 = vrot.slane %v3665, 5
      %v3668 = vor.u32 %v3664, %v3667
      %v3669 = vrot.slane %v3668, 4
      %v3671 = vshll.u32 %v3099, 16
      %v3673 = vrot.slane %v3671, 5
      %v3674 = vsel %vm223, %v3669, %v3673
      %v3675 = vshrl.u32 %v3099, 16
      %v3677 = vrot.slane %v3675, 4
      %v3678 = vor.u32 %v3677, %v3673
      %v3679 = vrot.slane %v3678, 4
      %v3681 = vshll.u32 %v3100, 16
      %v3683 = vrot.slane %v3681, 5
      %v3684 = vsel %vm223, %v3679, %v3683
      %v3686 = vshrl.u32 %v3101, 16
      %v3688 = vrot.slane %v3686, 4
      %v3689 = vshll.u32 %v3101, 16
      %v3691 = vrot.slane %v3689, 5
      %v3692 = vor.u32 %v3688, %v3691
      %v3693 = vrot.slane %v3692, 4
      %v3695 = vshll.u32 %v3102, 16
      %v3697 = vrot.slane %v3695, 5
      %v3698 = vsel %vm223, %v3693, %v3697
      %v3699 = vshrl.u32 %v3102, 16
      %v3701 = vrot.slane %v3699, 4
      %v3702 = vor.u32 %v3701, %v3697
      %v3703 = vrot.slane %v3702, 4
      %v3705 = vshll.u32 %v3103, 16
      %v3707 = vrot.slane %v3705, 5
      %v3708 = vsel %vm223, %v3703, %v3707
      %v3710 = vshrl.u32 %v3104, 16
      %v3712 = vrot.slane %v3710, 4
      %v3713 = vshll.u32 %v3104, 16
      %v3715 = vrot.slane %v3713, 5
      %v3716 = vor.u32 %v3712, %v3715
      %v3717 = vrot.slane %v3716, 4
      %v3719 = vshll.u32 %v3105, 16
      %v3721 = vrot.slane %v3719, 5
      %v3722 = vsel %vm223, %v3717, %v3721
      %v3723 = vshrl.u32 %v3105, 16
      %v3725 = vrot.slane %v3723, 4
      %v3726 = vor.u32 %v3725, %v3721
      %v3727 = vrot.slane %v3726, 4
      %v3729 = vshll.u32 %v3106, 16
      %v3731 = vrot.slane %v3729, 5
      %v3732 = vsel %vm223, %v3727, %v3731
      %v3734 = vshrl.u32 %v3107, 16
      %v3736 = vrot.slane %v3734, 4
      %v3737 = vshll.u32 %v3107, 16
      %v3739 = vrot.slane %v3737, 5
      %v3740 = vor.u32 %v3736, %v3739
      %v3741 = vrot.slane %v3740, 4
      %v3743 = vshll.u32 %v3108, 16
      %v3745 = vrot.slane %v3743, 5
      %v3746 = vsel %vm223, %v3741, %v3745
      %v3747 = vshrl.u32 %v3108, 16
      %v3749 = vrot.slane %v3747, 4
      %v3750 = vor.u32 %v3749, %v3745
      %v3751 = vrot.slane %v3750, 4
      %v3753 = vshll.u32 %v3109, 16
      %v3755 = vrot.slane %v3753, 5
      %v3756 = vsel %vm223, %v3751, %v3755
      %v3758 = vshrl.u32 %v3110, 16
      %v3760 = vrot.slane %v3758, 4
      %v3761 = vshll.u32 %v3110, 16
      %v3763 = vrot.slane %v3761, 5
      %v3764 = vor.u32 %v3760, %v3763
      %v3765 = vrot.slane %v3764, 4
      %v3767 = vshll.u32 %v3111, 16
      %v3769 = vrot.slane %v3767, 5
      %v3770 = vsel %vm223, %v3765, %v3769
      %v3771 = vshrl.u32 %v3111, 16
      %v3773 = vrot.slane %v3771, 4
      %v3774 = vor.u32 %v3773, %v3769
      %v3775 = vrot.slane %v3774, 4
      %v3777 = vshll.u32 %v3112, 16
      %v3779 = vrot.slane %v3777, 5
      %v3780 = vsel %vm223, %v3775, %v3779
      %v3782 = vshrl.u32 %v3113, 16
      %v3784 = vrot.slane %v3782, 4
      %v3785 = vshll.u32 %v3113, 16
      %v3787 = vrot.slane %v3785, 5
      %v3788 = vor.u32 %v3784, %v3787
      %v3789 = vrot.slane %v3788, 4
      %v3791 = vshll.u32 %v3114, 16
      %v3793 = vrot.slane %v3791, 5
      %v3794 = vsel %vm223, %v3789, %v3793
      %v3795 = vshrl.u32 %v3114, 16
      %v3797 = vrot.slane %v3795, 4
      %v3798 = vor.u32 %v3797, %v3793
      %v3799 = vrot.slane %v3798, 4
      %v3801 = vshll.u32 %v3115, 16
      %v3803 = vrot.slane %v3801, 5
      %v3804 = vsel %vm223, %v3799, %v3803
      %v3806 = vshrl.u32 %v3116, 16
      %v3808 = vrot.slane %v3806, 4
      %v3809 = vshll.u32 %v3116, 16
      %v3811 = vrot.slane %v3809, 5
      %v3812 = vor.u32 %v3808, %v3811
      %v3813 = vrot.slane %v3812, 4
      %v3815 = vshll.u32 %v3117, 16
      %v3817 = vrot.slane %v3815, 5
      %v3818 = vsel %vm223, %v3813, %v3817
      %v3819 = vshrl.u32 %v3117, 16
      %v3821 = vrot.slane %v3819, 4
      %v3822 = vor.u32 %v3821, %v3817
      %v3823 = vrot.slane %v3822, 4
      %v3825 = vshll.u32 %v3118, 16
      %v3827 = vrot.slane %v3825, 5
      %v3828 = vsel %vm223, %v3823, %v3827
      %s3829 = scalar_lea.vmem %s1, 14
      %v3830 = vld [vmem:[%s3829] sm:$0x3]
      %v3831 = vunpack.c.l.b16 %v3458
      %v3832 = vunpack.c.l.b16 %v3468
      %v3833 = vunpack.c.l.b16 %v3482
      %v3834 = vunpack.c.l.b16 %v3492
      %v3835 = vunpack.c.l.b16 %v3506
      %v3836 = vunpack.c.l.b16 %v3516
      %v3837 = vunpack.c.l.b16 %v3530
      %v3838 = vunpack.c.l.b16 %v3540
      %v3839 = vunpack.c.l.b16 %v3554
      %v3840 = vunpack.c.l.b16 %v3564
      %v3841 = vunpack.c.l.b16 %v3578
      %v3842 = vunpack.c.l.b16 %v3588
      %v3843 = vunpack.c.l.b16 %v3602
      %v3844 = vunpack.c.l.b16 %v3612
      %v3845 = vunpack.c.l.b16 %v3626
      %v3846 = vunpack.c.l.b16 %v3636
      %v3847 = vunpack.c.l.b16 %v3650
      %v3848 = vunpack.c.l.b16 %v3660
      %v3849 = vunpack.c.l.b16 %v3674
      %v3850 = vunpack.c.l.b16 %v3684
      %v3851 = vunpack.c.l.b16 %v3698
      %v3852 = vunpack.c.l.b16 %v3708
      %v3853 = vunpack.c.l.b16 %v3722
      %v3854 = vunpack.c.l.b16 %v3732
      %v3855 = vunpack.c.l.b16 %v3746
      %v3856 = vunpack.c.l.b16 %v3756
      %v3857 = vunpack.c.l.b16 %v3770
      %v3858 = vunpack.c.l.b16 %v3780
      %v3859 = vunpack.c.l.b16 %v3794
      %v3860 = vunpack.c.l.b16 %v3804
      %v3861 = vunpack.c.l.b16 %v3818
      %v3862 = vunpack.c.l.b16 %v3828
      %v3863 = vpack.c.b16 %v3832, %v3831
      %v3864 = vpack.c.b16 %v3834, %v3833
      %v3865 = vpack.c.b16 %v3836, %v3835
      %v3866 = vpack.c.b16 %v3838, %v3837
      %v3867 = vpack.c.b16 %v3840, %v3839
      %v3868 = vpack.c.b16 %v3842, %v3841
      %v3869 = vpack.c.b16 %v3844, %v3843
      %v3870 = vpack.c.b16 %v3846, %v3845
      %v3871 = vpack.c.b16 %v3848, %v3847
      %v3872 = vpack.c.b16 %v3850, %v3849
      %v3873 = vpack.c.b16 %v3852, %v3851
      %v3874 = vpack.c.b16 %v3854, %v3853
      %v3875 = vpack.c.b16 %v3856, %v3855
      %v3876 = vpack.c.b16 %v3858, %v3857
      %v3877 = vpack.c.b16 %v3860, %v3859
      %v3878 = vpack.c.b16 %v3862, %v3861
      %v3880 = vsel %vm658, %v3863, 0
      %v3883 = vsel %vm658, %v3864, 0
      %v3886 = vsel %vm658, %v3865, 0
      %v3889 = vsel %vm658, %v3866, 0
      %v3892 = vsel %vm658, %v3867, 0
      %v3895 = vsel %vm658, %v3868, 0
      %v3898 = vsel %vm658, %v3869, 0
      %v3901 = vsel %vm658, %v3870, 0
      %v3904 = vsel %vm658, %v3871, 0
      %v3907 = vsel %vm658, %v3872, 0
      %v3910 = vsel %vm658, %v3873, 0
      %v3913 = vsel %vm658, %v3874, 0
      %v3916 = vsel %vm658, %v3875, 0
      %v3919 = vsel %vm658, %v3876, 0
      %v3922 = vsel %vm658, %v3877, 0
      %v3925 = vsel %vm658, %v3878, 0
      %v3928 = vsel %vm707, %v3830, 0
      %3930 = vmatprep.subr.bf16.mxu0 0
      %3931 = vmatpush1.bf16.msra.mxu0 %v3928
      %3932 = vmatprep.subr.bf16.mxu0 0
      %3933 = vmatpush1.bf16.msra.mxu0 0
      %3934 = vmatprep.subr.bf16.mxu0 0
      %3935 = vmatpush1.bf16.msra.mxu0 0
      %3936 = vmatprep.subr.bf16.mxu0 0
      %3937 = vmatpush1.bf16.msra.mxu0 0
      %3938 = vmatprep.subr.bf16.mxu0 0
      %3939 = vmatpush1.bf16.msra.mxu0 0
      %3940 = vmatprep.subr.bf16.mxu0 0
      %3941 = vmatpush1.bf16.msra.mxu0 0
      %3942 = vmatprep.subr.bf16.mxu0 0
      %3943 = vmatpush1.bf16.msra.mxu0 0
      %3944 = vmatprep.subr.bf16.mxu0 0
      %3945 = vmatpush1.bf16.msra.mxu0 0
      %3946 = vmatprep.subr.bf16.mxu0 0
      %3947 = vmatpush1.bf16.msra.mxu0 0
      %3948 = vmatprep.subr.bf16.mxu0 0
      %3949 = vmatpush1.bf16.msra.mxu0 0
      %3950 = vmatprep.subr.bf16.mxu0 0
      %3951 = vmatpush1.bf16.msra.mxu0 0
      %3952 = vmatprep.subr.bf16.mxu0 0
      %3953 = vmatpush1.bf16.msra.mxu0 0
      %3954 = vmatprep.subr.bf16.mxu0 0
      %3955 = vmatpush1.bf16.msra.mxu0 0
      %3956 = vmatprep.subr.bf16.mxu0 0
      %3957 = vmatpush1.bf16.msra.mxu0 0
      %3958 = vmatprep.subr.bf16.mxu0 0
      %3959 = vmatpush1.bf16.msra.mxu0 0
      %3960 = vmatprep.subr.bf16.mxu0 0
      %3961 = vmatpush1.bf16.msra.mxu0 0
      %3962 = vmatprep.mubr.bf16.mxu0 0
      %3963 = vmatmul.mubr.bf16.gmra.mrb[0].mxu0 %v3880
      %v3964 = vpop.f32.mrb[0].mxu0
      %v3965 = vadd.f32 0.0, %v3964
      %v3966 = vpop.f32.mrb[0].mxu0
      %v3967 = vpop.f32.mrb[0].mxu0
      %v3968 = vadd.f32 0.0, %v3967
      %v3969 = vpop.f32.mrb[0].mxu0
      %3970 = vmatprep.mubr.bf16.mxu0 0
      %3971 = vmatmul.mubr.bf16.gmra.mrb[0].mxu0 %v3883
      %v3972 = vpop.f32.mrb[0].mxu0
      %v3973 = vadd.f32 0.0, %v3972
      %v3974 = vpop.f32.mrb[0].mxu0
      %v3975 = vpop.f32.mrb[0].mxu0
      %v3976 = vadd.f32 0.0, %v3975
      %v3977 = vpop.f32.mrb[0].mxu0
      %3978 = vmatprep.mubr.bf16.mxu0 0
      %3979 = vmatmul.mubr.bf16.gmra.mrb[0].mxu0 %v3886
      %v3980 = vpop.f32.mrb[0].mxu0
      %v3981 = vadd.f32 0.0, %v3980
      %v3982 = vpop.f32.mrb[0].mxu0
      %v3983 = vpop.f32.mrb[0].mxu0
      %v3984 = vadd.f32 0.0, %v3983
      %v3985 = vpop.f32.mrb[0].mxu0
      %3986 = vmatprep.mubr.bf16.mxu0 0
      %3987 = vmatmul.mubr.bf16.gmra.mrb[0].mxu0 %v3889
      %v3988 = vpop.f32.mrb[0].mxu0
      %v3989 = vadd.f32 0.0, %v3988
      %v3990 = vpop.f32.mrb[0].mxu0
      %v3991 = vpop.f32.mrb[0].mxu0
      %v3992 = vadd.f32 0.0, %v3991
      %v3993 = vpop.f32.mrb[0].mxu0
      %3994 = vmatprep.mubr.bf16.mxu0 0
      %3995 = vmatmul.mubr.bf16.gmra.mrb[0].mxu0 %v3892
      %v3996 = vpop.f32.mrb[0].mxu0
      %v3997 = vadd.f32 0.0, %v3996
      %v3998 = vpop.f32.mrb[0].mxu0
      %v3999 = vpop.f32.mrb[0].mxu0
      %v4000 = vadd.f32 0.0, %v3999
      %v4001 = vpop.f32.mrb[0].mxu0
      %4002 = vmatprep.mubr.bf16.mxu0 0
      %4003 = vmatmul.mubr.bf16.gmra.mrb[0].mxu0 %v3895
      %v4004 = vpop.f32.mrb[0].mxu0
      %v4005 = vadd.f32 0.0, %v4004
      %v4006 = vpop.f32.mrb[0].mxu0
      %v4007 = vpop.f32.mrb[0].mxu0
      %v4008 = vadd.f32 0.0, %v4007
      %v4009 = vpop.f32.mrb[0].mxu0
      %4010 = vmatprep.mubr.bf16.mxu0 0
      %4011 = vmatmul.mubr.bf16.gmra.mrb[0].mxu0 %v3898
      %v4012 = vpop.f32.mrb[0].mxu0
      %v4013 = vadd.f32 0.0, %v4012
      %v4014 = vpop.f32.mrb[0].mxu0
      %v4015 = vpop.f32.mrb[0].mxu0
      %v4016 = vadd.f32 0.0, %v4015
      %v4017 = vpop.f32.mrb[0].mxu0
      %4018 = vmatprep.mubr.bf16.mxu0 0
      %4019 = vmatmul.mubr.bf16.gmra.mrb[0].mxu0 %v3901
      %v4020 = vpop.f32.mrb[0].mxu0
      %v4021 = vadd.f32 0.0, %v4020
      %v4022 = vpop.f32.mrb[0].mxu0
      %v4023 = vpop.f32.mrb[0].mxu0
      %v4024 = vadd.f32 0.0, %v4023
      %v4025 = vpop.f32.mrb[0].mxu0
      %4026 = vmatprep.mubr.bf16.mxu0 0
      %4027 = vmatmul.mubr.bf16.gmra.mrb[0].mxu0 %v3904
      %v4028 = vpop.f32.mrb[0].mxu0
      %v4029 = vadd.f32 0.0, %v4028
      %v4030 = vpop.f32.mrb[0].mxu0
      %v4031 = vpop.f32.mrb[0].mxu0
      %v4032 = vadd.f32 0.0, %v4031
      %v4033 = vpop.f32.mrb[0].mxu0
      %4034 = vmatprep.mubr.bf16.mxu0 0
      %4035 = vmatmul.mubr.bf16.gmra.mrb[0].mxu0 %v3907
      %v4036 = vpop.f32.mrb[0].mxu0
      %v4037 = vadd.f32 0.0, %v4036
      %v4038 = vpop.f32.mrb[0].mxu0
      %v4039 = vpop.f32.mrb[0].mxu0
      %v4040 = vadd.f32 0.0, %v4039
      %v4041 = vpop.f32.mrb[0].mxu0
      %4042 = vmatprep.mubr.bf16.mxu0 0
      %4043 = vmatmul.mubr.bf16.gmra.mrb[0].mxu0 %v3910
      %v4044 = vpop.f32.mrb[0].mxu0
      %v4045 = vadd.f32 0.0, %v4044
      %v4046 = vpop.f32.mrb[0].mxu0
      %v4047 = vpop.f32.mrb[0].mxu0
      %v4048 = vadd.f32 0.0, %v4047
      %v4049 = vpop.f32.mrb[0].mxu0
      %4050 = vmatprep.mubr.bf16.mxu0 0
      %4051 = vmatmul.mubr.bf16.gmra.mrb[0].mxu0 %v3913
      %v4052 = vpop.f32.mrb[0].mxu0
      %v4053 = vadd.f32 0.0, %v4052
      %v4054 = vpop.f32.mrb[0].mxu0
      %v4055 = vpop.f32.mrb[0].mxu0
      %v4056 = vadd.f32 0.0, %v4055
      %v4057 = vpop.f32.mrb[0].mxu0
      %4058 = vmatprep.mubr.bf16.mxu0 0
      %4059 = vmatmul.mubr.bf16.gmra.mrb[0].mxu0 %v3916
      %v4060 = vpop.f32.mrb[0].mxu0
      %v4061 = vadd.f32 0.0, %v4060
      %v4062 = vpop.f32.mrb[0].mxu0
      %v4063 = vpop.f32.mrb[0].mxu0
      %v4064 = vadd.f32 0.0, %v4063
      %v4065 = vpop.f32.mrb[0].mxu0
      %4066 = vmatprep.mubr.bf16.mxu0 0
      %4067 = vmatmul.mubr.bf16.gmra.mrb[0].mxu0 %v3919
      %v4068 = vpop.f32.mrb[0].mxu0
      %v4069 = vadd.f32 0.0, %v4068
      %v4070 = vpop.f32.mrb[0].mxu0
      %v4071 = vpop.f32.mrb[0].mxu0
      %v4072 = vadd.f32 0.0, %v4071
      %v4073 = vpop.f32.mrb[0].mxu0
      %4074 = vmatprep.mubr.bf16.mxu0 0
      %4075 = vmatmul.mubr.bf16.gmra.mrb[0].mxu0 %v3922
      %v4076 = vpop.f32.mrb[0].mxu0
      %v4077 = vadd.f32 0.0, %v4076
      %v4078 = vpop.f32.mrb[0].mxu0
      %v4079 = vpop.f32.mrb[0].mxu0
      %v4080 = vadd.f32 0.0, %v4079
      %v4081 = vpop.f32.mrb[0].mxu0
      %4082 = vmatprep.mubr.bf16.mxu0 0
      %4083 = vmatmul.mubr.bf16.gmra.mrb[0].mxu0 %v3925
      %v4084 = vpop.f32.mrb[0].mxu0
      %v4085 = vadd.f32 0.0, %v4084
      %v4086 = vpop.f32.mrb[0].mxu0
      %v4087 = vpop.f32.mrb[0].mxu0
      %v4088 = vadd.f32 0.0, %v4087
      %v4089 = vpop.f32.mrb[0].mxu0
      %4090 = vdwg.mxu0
      %v4091 = vadd.f32 %v3413, %v3965
      %v4092 = vadd.f32 %v3414, %v3968
      %v4093 = vadd.f32 %v3415, %v3973
      %v4094 = vadd.f32 %v3416, %v3976
      %v4095 = vadd.f32 %v3417, %v3981
      %v4096 = vadd.f32 %v3418, %v3984
      %v4097 = vadd.f32 %v3419, %v3989
      %v4098 = vadd.f32 %v3420, %v3992
      %v4099 = vadd.f32 %v3421, %v3997
      %v4100 = vadd.f32 %v3422, %v4000
      %v4101 = vadd.f32 %v3423, %v4005
      %v4102 = vadd.f32 %v3424, %v4008
      %v4103 = vadd.f32 %v3425, %v4013
      %v4104 = vadd.f32 %v3426, %v4016
      %v4105 = vadd.f32 %v3427, %v4021
      %v4106 = vadd.f32 %v3428, %v4024
      %v4107 = vadd.f32 %v3429, %v4029
      %v4108 = vadd.f32 %v3430, %v4032
      %v4109 = vadd.f32 %v3431, %v4037
      %v4110 = vadd.f32 %v3432, %v4040
      %v4111 = vadd.f32 %v3433, %v4045
      %v4112 = vadd.f32 %v3434, %v4048
      %v4113 = vadd.f32 %v3435, %v4053
      %v4114 = vadd.f32 %v3436, %v4056
      %v4115 = vadd.f32 %v3437, %v4061
      %v4116 = vadd.f32 %v3438, %v4064
      %v4117 = vadd.f32 %v3439, %v4069
      %v4118 = vadd.f32 %v3440, %v4072
      %v4119 = vadd.f32 %v3441, %v4077
      %v4120 = vadd.f32 %v3442, %v4080
      %v4121 = vadd.f32 %v3443, %v4085
      %v4122 = vadd.f32 %v3444, %v4088
      %v4139 = vrot.slane %v3071, 5
      %v4140 = vrot.slane %v4139, 4
      %v4141 = vrot.slane %v3072, 5
      %v4142 = vsel %vm1182, %v4140, %v4141
      %v4143 = vrot.slane %v4141, 4
      %v4144 = vrot.slane %v3073, 5
      %v4145 = vsel %vm1182, %v4143, %v4144
      %v4146 = vrot.slane %v3074, 5
      %v4147 = vrot.slane %v4146, 4
      %v4148 = vrot.slane %v3075, 5
      %v4149 = vsel %vm1182, %v4147, %v4148
      %v4150 = vrot.slane %v4148, 4
      %v4151 = vrot.slane %v3076, 5
      %v4152 = vsel %vm1182, %v4150, %v4151
      %v4153 = vrot.slane %v3077, 5
      %v4154 = vrot.slane %v4153, 4
      %v4155 = vrot.slane %v3078, 5
      %v4156 = vsel %vm1182, %v4154, %v4155
      %v4157 = vrot.slane %v4155, 4
      %v4158 = vrot.slane %v3079, 5
      %v4159 = vsel %vm1182, %v4157, %v4158
      %v4160 = vrot.slane %v3080, 5
      %v4161 = vrot.slane %v4160, 4
      %v4162 = vrot.slane %v3081, 5
      %v4163 = vsel %vm1182, %v4161, %v4162
      %v4164 = vrot.slane %v4162, 4
      %v4165 = vrot.slane %v3082, 5
      %v4166 = vsel %vm1182, %v4164, %v4165
      %v4167 = vrot.slane %v3083, 5
      %v4168 = vrot.slane %v4167, 4
      %v4169 = vrot.slane %v3084, 5
      %v4170 = vsel %vm1182, %v4168, %v4169
      %v4171 = vrot.slane %v4169, 4
      %v4172 = vrot.slane %v3085, 5
      %v4173 = vsel %vm1182, %v4171, %v4172
      %v4174 = vrot.slane %v3086, 5
      %v4175 = vrot.slane %v4174, 4
      %v4176 = vrot.slane %v3087, 5
      %v4177 = vsel %vm1182, %v4175, %v4176
      %v4178 = vrot.slane %v4176, 4
      %v4179 = vrot.slane %v3088, 5
      %v4180 = vsel %vm1182, %v4178, %v4179
      %v4181 = vrot.slane %v3089, 5
      %v4182 = vrot.slane %v4181, 4
      %v4183 = vrot.slane %v3090, 5
      %v4184 = vsel %vm1182, %v4182, %v4183
      %v4185 = vrot.slane %v4183, 4
      %v4186 = vrot.slane %v3091, 5
      %v4187 = vsel %vm1182, %v4185, %v4186
      %v4188 = vrot.slane %v3092, 5
      %v4189 = vrot.slane %v4188, 4
      %v4190 = vrot.slane %v3093, 5
      %v4191 = vsel %vm1182, %v4189, %v4190
      %v4192 = vrot.slane %v4190, 4
      %v4193 = vrot.slane %v3094, 5
      %v4194 = vsel %vm1182, %v4192, %v4193
      %v4195 = vrot.slane %v3095, 5
      %v4196 = vrot.slane %v4195, 4
      %v4197 = vrot.slane %v3096, 5
      %v4198 = vsel %vm1182, %v4196, %v4197
      %v4199 = vrot.slane %v4197, 4
      %v4200 = vrot.slane %v3097, 5
      %v4201 = vsel %vm1182, %v4199, %v4200
      %v4202 = vrot.slane %v3098, 5
      %v4203 = vrot.slane %v4202, 4
      %v4204 = vrot.slane %v3099, 5
      %v4205 = vsel %vm1182, %v4203, %v4204
      %v4206 = vrot.slane %v4204, 4
      %v4207 = vrot.slane %v3100, 5
      %v4208 = vsel %vm1182, %v4206, %v4207
      %v4209 = vrot.slane %v3101, 5
      %v4210 = vrot.slane %v4209, 4
      %v4211 = vrot.slane %v3102, 5
      %v4212 = vsel %vm1182, %v4210, %v4211
      %v4213 = vrot.slane %v4211, 4
      %v4214 = vrot.slane %v3103, 5
      %v4215 = vsel %vm1182, %v4213, %v4214
      %v4216 = vrot.slane %v3104, 5
      %v4217 = vrot.slane %v4216, 4
      %v4218 = vrot.slane %v3105, 5
      %v4219 = vsel %vm1182, %v4217, %v4218
      %v4220 = vrot.slane %v4218, 4
      %v4221 = vrot.slane %v3106, 5
      %v4222 = vsel %vm1182, %v4220, %v4221
      %v4223 = vrot.slane %v3107, 5
      %v4224 = vrot.slane %v4223, 4
      %v4225 = vrot.slane %v3108, 5
      %v4226 = vsel %vm1182, %v4224, %v4225
      %v4227 = vrot.slane %v4225, 4
      %v4228 = vrot.slane %v3109, 5
      %v4229 = vsel %vm1182, %v4227, %v4228
      %v4230 = vrot.slane %v3110, 5
      %v4231 = vrot.slane %v4230, 4
      %v4232 = vrot.slane %v3111, 5
      %v4233 = vsel %vm1182, %v4231, %v4232
      %v4234 = vrot.slane %v4232, 4
      %v4235 = vrot.slane %v3112, 5
      %v4236 = vsel %vm1182, %v4234, %v4235
      %v4237 = vrot.slane %v3113, 5
      %v4238 = vrot.slane %v4237, 4
      %v4239 = vrot.slane %v3114, 5
      %v4240 = vsel %vm1182, %v4238, %v4239
      %v4241 = vrot.slane %v4239, 4
      %v4242 = vrot.slane %v3115, 5
      %v4243 = vsel %vm1182, %v4241, %v4242
      %v4244 = vrot.slane %v3116, 5
      %v4245 = vrot.slane %v4244, 4
      %v4246 = vrot.slane %v3117, 5
      %v4247 = vsel %vm1182, %v4245, %v4246
      %v4248 = vrot.slane %v4246, 4
      %v4249 = vrot.slane %v3118, 5
      %v4250 = vsel %vm1182, %v4248, %v4249
      %s4251 = scalar_lea.vmem %s1, 16
      %v4252 = vld [vmem:[%s4251] sm:$0x3]
      %v4253 = vunpack.c.l.b16 %v4142
      %v4254 = vunpack.c.l.b16 %v4145
      %v4255 = vunpack.c.l.b16 %v4149
      %v4256 = vunpack.c.l.b16 %v4152
      %v4257 = vunpack.c.l.b16 %v4156
      %v4258 = vunpack.c.l.b16 %v4159
      %v4259 = vunpack.c.l.b16 %v4163
      %v4260 = vunpack.c.l.b16 %v4166
      %v4261 = vunpack.c.l.b16 %v4170
      %v4262 = vunpack.c.l.b16 %v4173
      %v4263 = vunpack.c.l.b16 %v4177
      %v4264 = vunpack.c.l.b16 %v4180
      %v4265 = vunpack.c.l.b16 %v4184
      %v4266 = vunpack.c.l.b16 %v4187
      %v4267 = vunpack.c.l.b16 %v4191
      %v4268 = vunpack.c.l.b16 %v4194
      %v4269 = vunpack.c.l.b16 %v4198
      %v4270 = vunpack.c.l.b16 %v4201
      %v4271 = vunpack.c.l.b16 %v4205
      %v4272 = vunpack.c.l.b16 %v4208
      %v4273 = vunpack.c.l.b16 %v4212
      %v4274 = vunpack.c.l.b16 %v4215
      %v4275 = vunpack.c.l.b16 %v4219
      %v4276 = vunpack.c.l.b16 %v4222
      %v4277 = vunpack.c.l.b16 %v4226
      %v4278 = vunpack.c.l.b16 %v4229
      %v4279 = vunpack.c.l.b16 %v4233
      %v4280 = vunpack.c.l.b16 %v4236
      %v4281 = vunpack.c.l.b16 %v4240
      %v4282 = vunpack.c.l.b16 %v4243
      %v4283 = vunpack.c.l.b16 %v4247
      %v4284 = vunpack.c.l.b16 %v4250
      %v4285 = vpack.c.b16 %v4254, %v4253
      %v4286 = vpack.c.b16 %v4256, %v4255
      %v4287 = vpack.c.b16 %v4258, %v4257
      %v4288 = vpack.c.b16 %v4260, %v4259
      %v4289 = vpack.c.b16 %v4262, %v4261
      %v4290 = vpack.c.b16 %v4264, %v4263
      %v4291 = vpack.c.b16 %v4266, %v4265
      %v4292 = vpack.c.b16 %v4268, %v4267
      %v4293 = vpack.c.b16 %v4270, %v4269
      %v4294 = vpack.c.b16 %v4272, %v4271
      %v4295 = vpack.c.b16 %v4274, %v4273
      %v4296 = vpack.c.b16 %v4276, %v4275
      %v4297 = vpack.c.b16 %v4278, %v4277
      %v4298 = vpack.c.b16 %v4280, %v4279
      %v4299 = vpack.c.b16 %v4282, %v4281
      %v4300 = vpack.c.b16 %v4284, %v4283
      %v4302 = vsel %vm658, %v4285, 0
      %v4305 = vsel %vm658, %v4286, 0
      %v4308 = vsel %vm658, %v4287, 0
      %v4311 = vsel %vm658, %v4288, 0
      %v4314 = vsel %vm658, %v4289, 0
      %v4317 = vsel %vm658, %v4290, 0
      %v4320 = vsel %vm658, %v4291, 0
      %v4323 = vsel %vm658, %v4292, 0
      %v4326 = vsel %vm658, %v4293, 0
      %v4329 = vsel %vm658, %v4294, 0
      %v4332 = vsel %vm658, %v4295, 0
      %v4335 = vsel %vm658, %v4296, 0
      %v4338 = vsel %vm658, %v4297, 0
      %v4341 = vsel %vm658, %v4298, 0
      %v4344 = vsel %vm658, %v4299, 0
      %v4347 = vsel %vm658, %v4300, 0
      %v4350 = vsel %vm707, %v4252, 0
      %4352 = vmatprep.subr.bf16.mxu0 0
      %4353 = vmatpush1.bf16.msra.mxu0 %v4350
      %4354 = vmatprep.subr.bf16.mxu0 0
      %4355 = vmatpush1.bf16.msra.mxu0 0
      %4356 = vmatprep.subr.bf16.mxu0 0
      %4357 = vmatpush1.bf16.msra.mxu0 0
      %4358 = vmatprep.subr.bf16.mxu0 0
      %4359 = vmatpush1.bf16.msra.mxu0 0
      %4360 = vmatprep.subr.bf16.mxu0 0
      %4361 = vmatpush1.bf16.msra.mxu0 0
      %4362 = vmatprep.subr.bf16.mxu0 0
      %4363 = vmatpush1.bf16.msra.mxu0 0
      %4364 = vmatprep.subr.bf16.mxu0 0
      %4365 = vmatpush1.bf16.msra.mxu0 0
      %4366 = vmatprep.subr.bf16.mxu0 0
      %4367 = vmatpush1.bf16.msra.mxu0 0
      %4368 = vmatprep.subr.bf16.mxu0 0
      %4369 = vmatpush1.bf16.msra.mxu0 0
      %4370 = vmatprep.subr.bf16.mxu0 0
      %4371 = vmatpush1.bf16.msra.mxu0 0
      %4372 = vmatprep.subr.bf16.mxu0 0
      %4373 = vmatpush1.bf16.msra.mxu0 0
      %4374 = vmatprep.subr.bf16.mxu0 0
      %4375 = vmatpush1.bf16.msra.mxu0 0
      %4376 = vmatprep.subr.bf16.mxu0 0
      %4377 = vmatpush1.bf16.msra.mxu0 0
      %4378 = vmatprep.subr.bf16.mxu0 0
      %4379 = vmatpush1.bf16.msra.mxu0 0
      %4380 = vmatprep.subr.bf16.mxu0 0
      %4381 = vmatpush1.bf16.msra.mxu0 0
      %4382 = vmatprep.subr.bf16.mxu0 0
      %4383 = vmatpush1.bf16.msra.mxu0 0
      %4384 = vmatprep.mubr.bf16.mxu0 0
      %4385 = vmatmul.mubr.bf16.gmra.mrb[0].mxu0 %v4302
      %v4386 = vpop.f32.mrb[0].mxu0
      %v4387 = vadd.f32 0.0, %v4386
      %v4388 = vpop.f32.mrb[0].mxu0
      %v4389 = vpop.f32.mrb[0].mxu0
      %v4390 = vadd.f32 0.0, %v4389
      %v4391 = vpop.f32.mrb[0].mxu0
      %4392 = vmatprep.mubr.bf16.mxu0 0
      %4393 = vmatmul.mubr.bf16.gmra.mrb[0].mxu0 %v4305
      %v4394 = vpop.f32.mrb[0].mxu0
      %v4395 = vadd.f32 0.0, %v4394
      %v4396 = vpop.f32.mrb[0].mxu0
      %v4397 = vpop.f32.mrb[0].mxu0
      %v4398 = vadd.f32 0.0, %v4397
      %v4399 = vpop.f32.mrb[0].mxu0
      %4400 = vmatprep.mubr.bf16.mxu0 0
      %4401 = vmatmul.mubr.bf16.gmra.mrb[0].mxu0 %v4308
      %v4402 = vpop.f32.mrb[0].mxu0
      %v4403 = vadd.f32 0.0, %v4402
      %v4404 = vpop.f32.mrb[0].mxu0
      %v4405 = vpop.f32.mrb[0].mxu0
      %v4406 = vadd.f32 0.0, %v4405
      %v4407 = vpop.f32.mrb[0].mxu0
      %4408 = vmatprep.mubr.bf16.mxu0 0
      %4409 = vmatmul.mubr.bf16.gmra.mrb[0].mxu0 %v4311
      %v4410 = vpop.f32.mrb[0].mxu0
      %v4411 = vadd.f32 0.0, %v4410
      %v4412 = vpop.f32.mrb[0].mxu0
      %v4413 = vpop.f32.mrb[0].mxu0
      %v4414 = vadd.f32 0.0, %v4413
      %v4415 = vpop.f32.mrb[0].mxu0
      %4416 = vmatprep.mubr.bf16.mxu0 0
      %4417 = vmatmul.mubr.bf16.gmra.mrb[0].mxu0 %v4314
      %v4418 = vpop.f32.mrb[0].mxu0
      %v4419 = vadd.f32 0.0, %v4418
      %v4420 = vpop.f32.mrb[0].mxu0
      %v4421 = vpop.f32.mrb[0].mxu0
      %v4422 = vadd.f32 0.0, %v4421
      %v4423 = vpop.f32.mrb[0].mxu0
      %4424 = vmatprep.mubr.bf16.mxu0 0
      %4425 = vmatmul.mubr.bf16.gmra.mrb[0].mxu0 %v4317
      %v4426 = vpop.f32.mrb[0].mxu0
      %v4427 = vadd.f32 0.0, %v4426
      %v4428 = vpop.f32.mrb[0].mxu0
      %v4429 = vpop.f32.mrb[0].mxu0
      %v4430 = vadd.f32 0.0, %v4429
      %v4431 = vpop.f32.mrb[0].mxu0
      %4432 = vmatprep.mubr.bf16.mxu0 0
      %4433 = vmatmul.mubr.bf16.gmra.mrb[0].mxu0 %v4320
      %v4434 = vpop.f32.mrb[0].mxu0
      %v4435 = vadd.f32 0.0, %v4434
      %v4436 = vpop.f32.mrb[0].mxu0
      %v4437 = vpop.f32.mrb[0].mxu0
      %v4438 = vadd.f32 0.0, %v4437
      %v4439 = vpop.f32.mrb[0].mxu0
      %4440 = vmatprep.mubr.bf16.mxu0 0
      %4441 = vmatmul.mubr.bf16.gmra.mrb[0].mxu0 %v4323
      %v4442 = vpop.f32.mrb[0].mxu0
      %v4443 = vadd.f32 0.0, %v4442
      %v4444 = vpop.f32.mrb[0].mxu0
      %v4445 = vpop.f32.mrb[0].mxu0
      %v4446 = vadd.f32 0.0, %v4445
      %v4447 = vpop.f32.mrb[0].mxu0
      %4448 = vmatprep.mubr.bf16.mxu0 0
      %4449 = vmatmul.mubr.bf16.gmra.mrb[0].mxu0 %v4326
      %v4450 = vpop.f32.mrb[0].mxu0
      %v4451 = vadd.f32 0.0, %v4450
      %v4452 = vpop.f32.mrb[0].mxu0
      %v4453 = vpop.f32.mrb[0].mxu0
      %v4454 = vadd.f32 0.0, %v4453
      %v4455 = vpop.f32.mrb[0].mxu0
      %4456 = vmatprep.mubr.bf16.mxu0 0
      %4457 = vmatmul.mubr.bf16.gmra.mrb[0].mxu0 %v4329
      %v4458 = vpop.f32.mrb[0].mxu0
      %v4459 = vadd.f32 0.0, %v4458
      %v4460 = vpop.f32.mrb[0].mxu0
      %v4461 = vpop.f32.mrb[0].mxu0
      %v4462 = vadd.f32 0.0, %v4461
      %v4463 = vpop.f32.mrb[0].mxu0
      %4464 = vmatprep.mubr.bf16.mxu0 0
      %4465 = vmatmul.mubr.bf16.gmra.mrb[0].mxu0 %v4332
      %v4466 = vpop.f32.mrb[0].mxu0
      %v4467 = vadd.f32 0.0, %v4466
      %v4468 = vpop.f32.mrb[0].mxu0
      %v4469 = vpop.f32.mrb[0].mxu0
      %v4470 = vadd.f32 0.0, %v4469
      %v4471 = vpop.f32.mrb[0].mxu0
      %4472 = vmatprep.mubr.bf16.mxu0 0
      %4473 = vmatmul.mubr.bf16.gmra.mrb[0].mxu0 %v4335
      %v4474 = vpop.f32.mrb[0].mxu0
      %v4475 = vadd.f32 0.0, %v4474
      %v4476 = vpop.f32.mrb[0].mxu0
      %v4477 = vpop.f32.mrb[0].mxu0
      %v4478 = vadd.f32 0.0, %v4477
      %v4479 = vpop.f32.mrb[0].mxu0
      %4480 = vmatprep.mubr.bf16.mxu0 0
      %4481 = vmatmul.mubr.bf16.gmra.mrb[0].mxu0 %v4338
      %v4482 = vpop.f32.mrb[0].mxu0
      %v4483 = vadd.f32 0.0, %v4482
      %v4484 = vpop.f32.mrb[0].mxu0
      %v4485 = vpop.f32.mrb[0].mxu0
      %v4486 = vadd.f32 0.0, %v4485
      %v4487 = vpop.f32.mrb[0].mxu0
      %4488 = vmatprep.mubr.bf16.mxu0 0
      %4489 = vmatmul.mubr.bf16.gmra.mrb[0].mxu0 %v4341
      %v4490 = vpop.f32.mrb[0].mxu0
      %v4491 = vadd.f32 0.0, %v4490
      %v4492 = vpop.f32.mrb[0].mxu0
      %v4493 = vpop.f32.mrb[0].mxu0
      %v4494 = vadd.f32 0.0, %v4493
      %v4495 = vpop.f32.mrb[0].mxu0
      %4496 = vmatprep.mubr.bf16.mxu0 0
      %4497 = vmatmul.mubr.bf16.gmra.mrb[0].mxu0 %v4344
      %v4498 = vpop.f32.mrb[0].mxu0
      %v4499 = vadd.f32 0.0, %v4498
      %v4500 = vpop.f32.mrb[0].mxu0
      %v4501 = vpop.f32.mrb[0].mxu0
      %v4502 = vadd.f32 0.0, %v4501
      %v4503 = vpop.f32.mrb[0].mxu0
      %4504 = vmatprep.mubr.bf16.mxu0 0
      %4505 = vmatmul.mubr.bf16.gmra.mrb[0].mxu0 %v4347
      %v4506 = vpop.f32.mrb[0].mxu0
      %v4507 = vadd.f32 0.0, %v4506
      %v4508 = vpop.f32.mrb[0].mxu0
      %v4509 = vpop.f32.mrb[0].mxu0
      %v4510 = vadd.f32 0.0, %v4509
      %v4511 = vpop.f32.mrb[0].mxu0
      %4512 = vdwg.mxu0
      %v4513 = vadd.f32 %v4091, %v4387
      %v4514 = vadd.f32 %v4092, %v4390
      %v4515 = vadd.f32 %v4093, %v4395
      %v4516 = vadd.f32 %v4094, %v4398
      %v4517 = vadd.f32 %v4095, %v4403
      %v4518 = vadd.f32 %v4096, %v4406
      %v4519 = vadd.f32 %v4097, %v4411
      %v4520 = vadd.f32 %v4098, %v4414
      %v4521 = vadd.f32 %v4099, %v4419
      %v4522 = vadd.f32 %v4100, %v4422
      %v4523 = vadd.f32 %v4101, %v4427
      %v4524 = vadd.f32 %v4102, %v4430
      %v4525 = vadd.f32 %v4103, %v4435
      %v4526 = vadd.f32 %v4104, %v4438
      %v4527 = vadd.f32 %v4105, %v4443
      %v4528 = vadd.f32 %v4106, %v4446
      %v4529 = vadd.f32 %v4107, %v4451
      %v4530 = vadd.f32 %v4108, %v4454
      %v4531 = vadd.f32 %v4109, %v4459
      %v4532 = vadd.f32 %v4110, %v4462
      %v4533 = vadd.f32 %v4111, %v4467
      %v4534 = vadd.f32 %v4112, %v4470
      %v4535 = vadd.f32 %v4113, %v4475
      %v4536 = vadd.f32 %v4114, %v4478
      %v4537 = vadd.f32 %v4115, %v4483
      %v4538 = vadd.f32 %v4116, %v4486
      %v4539 = vadd.f32 %v4117, %v4491
      %v4540 = vadd.f32 %v4118, %v4494
      %v4541 = vadd.f32 %v4119, %v4499
      %v4542 = vadd.f32 %v4120, %v4502
      %v4543 = vadd.f32 %v4121, %v4507
      %v4544 = vadd.f32 %v4122, %v4510
      %4545 = vst [vmem:[%s165] sm:$0xff] %v4513
      %4546 = vst [vmem:[%s165 + $0x8] sm:$0xff] %v4514
      %4547 = vst [vmem:[%s165 + $0x10] sm:$0xff] %v4515
      %4548 = vst [vmem:[%s165 + $0x18] sm:$0xff] %v4516
      %4549 = vst [vmem:[%s165 + $0x20] sm:$0xff] %v4517
      %4550 = vst [vmem:[%s165 + $0x28] sm:$0xff] %v4518
      %4551 = vst [vmem:[%s165 + $0x30] sm:$0xff] %v4519
      %4552 = vst [vmem:[%s165 + $0x38] sm:$0xff] %v4520
      %4553 = vst [vmem:[%s165 + $0x40] sm:$0xff] %v4521
      %4554 = vst [vmem:[%s165 + $0x48] sm:$0xff] %v4522
      %4555 = vst [vmem:[%s165 + $0x50] sm:$0xff] %v4523
      %4556 = vst [vmem:[%s165 + $0x58] sm:$0xff] %v4524
      %4557 = vst [vmem:[%s165 + $0x60] sm:$0xff] %v4525
      %4558 = vst [vmem:[%s165 + $0x68] sm:$0xff] %v4526
      %4559 = vst [vmem:[%s165 + $0x70] sm:$0xff] %v4527
      %4560 = vst [vmem:[%s165 + $0x78] sm:$0xff] %v4528
      %4561 = vst [vmem:[%s165 + $0x80] sm:$0xff] %v4529
      %4562 = vst [vmem:[%s165 + $0x88] sm:$0xff] %v4530
      %4563 = vst [vmem:[%s165 + $0x90] sm:$0xff] %v4531
      %4564 = vst [vmem:[%s165 + $0x98] sm:$0xff] %v4532
      %4565 = vst [vmem:[%s165 + $0xa0] sm:$0xff] %v4533
      %4566 = vst [vmem:[%s165 + $0xa8] sm:$0xff] %v4534
      %4567 = vst [vmem:[%s165 + $0xb0] sm:$0xff] %v4535
      %4568 = vst [vmem:[%s165 + $0xb8] sm:$0xff] %v4536
      %4569 = vst [vmem:[%s165 + $0xc0] sm:$0xff] %v4537
      %4570 = vst [vmem:[%s165 + $0xc8] sm:$0xff] %v4538
      %4571 = vst [vmem:[%s165 + $0xd0] sm:$0xff] %v4539
      %4572 = vst [vmem:[%s165 + $0xd8] sm:$0xff] %v4540
      %4573 = vst [vmem:[%s165 + $0xe0] sm:$0xff] %v4541
      %4574 = vst [vmem:[%s165 + $0xe8] sm:$0xff] %v4542
      %4575 = vst [vmem:[%s165 + $0xf0] sm:$0xff] %v4543
      %4576 = vst [vmem:[%s165 + $0xf8] sm:$0xff] %v4544
      %s4577 = smul.u32 32, %s18
      %p4578 = scmp.lt.s32.totalorder %s17, 1
      %s4579 = scalar_select %p4578, %s17, 1
      %p4580 = scmp.lt.s32.totalorder %s4577, 31
      %s4581 = scalar_select %p4580, %s4577, 31
      %s4582 = smul.addr %s4579, 32
      %s4583 = sadd.s32 %s4581, %s4582
      %s4584 = smul.addr %s4583, 8
      %s4585 = scalar_lea.vmem %s2, %s4584
      // Predicated region
      $region29: #{conv2d_same.1} parent=27 // pred_check
        %p4586 = pneg %p92
      $region30: #{conv2d_same.1} parent=27 // pred_check_branch
        %4588 = sbr.rel (%p4586) target = $region32
      $region31: #{conv2d_same.1} parent=27 // pred_region
        %s4589 = smul.u32 32, %s18
      $region32: #{conv2d_same.1} parent=27 // pred_fallthru
        _
    $region28: #{conv2d_same.1} parent=5 // pred_fallthru
      _
    %p4590 = scmp.le.s32.totalorder 2, %s8
    // Predicated region
    $region33: #{conv2d_same.1} parent=5 // pred_check
      %p4591 = pneg %p4590
    $region34: #{conv2d_same.1} parent=5 // pred_check_branch
      %4593 = sbr.rel (%p4591) target = $region36
    $region35: #{conv2d_same.1} parent=5 // pred_region
      %s4594 = ssub.s32 %s8, 2
      // Predicated region
      $region37: #{conv2d_same.1} parent=35 // pred_check
        %p4595 = pneg %p98
      $region38: #{conv2d_same.1} parent=35 // pred_check_branch
        %4597 = sbr.rel (%p4595) target = $region40
      $region39: #{conv2d_same.1} parent=35 // pred_region
        %s4598 = smul.u32 32, %s20
        %p4599 = scmp.lt.s32.totalorder %s19, 1
        %s4600 = scalar_select %p4599, %s19, 1
        %p4601 = scmp.lt.s32.totalorder %s4598, 31
        %s4602 = scalar_select %p4601, %s4598, 31
        %s4603 = smul.addr %s4600, 32
        %s4604 = sadd.s32 %s4602, %s4603
        %s4605 = smul.addr %s4604, 8
        %s4606 = scalar_lea.vmem %s2, %s4605
      $region40: #{conv2d_same.1} parent=35 // pred_fallthru
        _
    $region36: #{conv2d_same.1} parent=5 // pred_fallthru
      _
  $region6: #{conv2d_same.1} parent=0 // loop_footer
    %s12 = sadd.s32 1, %s8
  $region7: #{conv2d_same.1} parent=0 // loop_footer_branch
    %7 = sbr.rel target = $region3
  $region8: #{conv2d_same.1} parent=0 // loop_exit
    _

</llo_original>
